<compile_context>
chip_gen: v7x
topology: tpu7x:2x2x1
jax: 0.10.0
libtpu: 0.0.40
codegen_flags: <defaults>
</compile_context>

<pallas_src>
import jax
import jax.numpy as jnp
from jax import lax
from jax.experimental import pallas as pl

# ----------------------------- model sizes ----------------------------------
V_SRC = 50      # idim (source vocab)
V_TGT = 48      # odim (target vocab); sos = eos = V_TGT - 1, pad = 0, ignore = -1
VPAD = 64       # vocab rows padded to a sublane multiple for the fused one-hot matmuls
E = 32          # eunits (src embedding / encoder hidden)
P = 32          # eprojs (encoder projection)
D = 32          # dunits (decoder hidden / tgt embedding)
A = 32          # attention dim (AttDot), scaling = 2.0
B = 2
T = 8           # Tmax (source)
LMAX = 6        # Lmax (target, without sos/eos)
LO = LMAX + 1   # decoder output steps
SOS = V_TGT - 1
EOS = V_TGT - 1
IGNORE = -1
NEG = -1e30


# ----------------------------- fused kernel ---------------------------------
def e2e_kernel(xs_ref, ysin_ref, yt_ref, mask_ref,
               emb_ih_ref, enc_whh_ref, enc_b_ref, enc_wp_ref, enc_bp_ref,
               att_we_ref, att_be_ref, att_wd_ref, att_bd_ref,
               emb_ie_ref, dec_wcz_ref, dec_b_ref, dec_wo_ref, dec_bo_ref,
               out_ref):
    f32 = jnp.float32

    # Hoist all weight / mask loads once (both loops below are fully unrolled).
    emb_ih = emb_ih_ref[...]      # (VPAD, 4E) = embed_src @ W_ih (embedding fused in)
    enc_whh = enc_whh_ref[...]    # (E, 4E)
    enc_b = enc_b_ref[...]        # (1, 4E)
    enc_wp = enc_wp_ref[...]      # (E, P)
    enc_bp = enc_bp_ref[...]      # (1, P)
    att_we = att_we_ref[...]      # (P, A)
    att_be = att_be_ref[...]      # (1, A)
    att_wd = att_wd_ref[...]      # (D, A)
    att_bd = att_bd_ref[...]      # (1, A)
    emb_ie = emb_ie_ref[...]      # (VPAD, 4D) = embed_tgt @ W_ie (embedding fused in)
    dec_wcz = dec_wcz_ref[...]    # (P+D, 4D)  = [W_ic ; W_hh]
    dec_b = dec_b_ref[...]        # (1, 4D)
    dec_wo = dec_wo_ref[...]      # (D, V_TGT)
    dec_bo = dec_bo_ref[...]      # (1, V_TGT)
    mask = mask_ref[...]          # (B, T*B)   block-diag source-length mask (1=valid)

    # ------------------- encoder: single-layer LSTM over T ------------------
    # Input-dependent gate halves for ALL timesteps in one MXU call, off the
    # serial chain; embedding lookup is the one-hot matmul itself.
    xs = xs_ref[...]                                                    # (T*B, 1)
    oh_x = (lax.broadcasted_iota(jnp.int32, (T * B, VPAD), 1) == xs).astype(f32)
    g_x = jnp.dot(oh_x, emb_ih, preferred_element_type=f32) + enc_b     # (T*B, 4E)

    h = jnp.zeros((B, E), f32)
    c = jnp.zeros((B, E), f32)
    h_rows = []
    for t in range(T):                       # fully unrolled serial recurrence
        g = g_x[t * B:(t + 1) * B, :] + jnp.dot(h, enc_whh,
                                                preferred_element_type=f32)
        sig = jax.nn.sigmoid(g)              # one EUP pass over the whole (B,4E) tile
        th = jnp.tanh(g)
        c = sig[:, E:2 * E] * c + sig[:, 0:E] * th[:, 2 * E:3 * E]
        h = sig[:, 3 * E:4 * E] * jnp.tanh(c)
        h_rows.append(h)
    h_all = jnp.concatenate(h_rows, axis=0)                             # (T*B, E)

    # Encoder output projection (RNN.l_last + tanh) and the AttDot enc-side
    # precompute, hoisted out of the decode loop as plain 2-D matmuls.
    hs = jnp.tanh(jnp.dot(h_all, enc_wp, preferred_element_type=f32) + enc_bp)  # (T*B, P)
    # AttDot scaling (2.0) folded in here (so no scaling after the -inf mask).
    hspre = 2.0 * jnp.tanh(jnp.dot(hs, att_we, preferred_element_type=f32)
                           + att_be)                                    # (T*B, A)
    hspre_t = hspre.T                                                   # (A, T*B), once

    # --------------- decoder: attention + LSTMCell (unrolled) ----------------
    ysin = ysin_ref[...]                                                # (LO*B, 1)
    oh_y = (lax.broadcasted_iota(jnp.int32, (LO * B, VPAD), 1) == ysin).astype(f32)
    g_ey = jnp.dot(oh_y, emb_ie, preferred_element_type=f32) + dec_b    # (LO*B, 4D)

    z = jnp.zeros((B, D), f32)
    cz = jnp.zeros((B, D), f32)
    d = jnp.broadcast_to(jnp.tanh(att_bd), (B, A))   # att query for step 0 (dec_z = 0)
    z_rows = []
    for j in range(LO):                      # fully unrolled
        # --- dot attention: one matmul for scores, lane softmax, one matmul
        #     for the context; off-batch entries masked by the block-diag mask.
        scores = jnp.dot(d, hspre_t, preferred_element_type=f32)        # (B, T*B)
        e = jnp.where(mask > 0.5, scores, NEG)
        mx = jnp.max(e, axis=1, keepdims=True)
        pe = jnp.exp(e - mx)
        s = jnp.sum(pe, axis=1, keepdims=True)
        w = pe * pl.reciprocal(s, approx=True)                          # (B, T*B)
        att_c = jnp.dot(w, hs, preferred_element_type=f32)              # (B, P)

        # --- LSTMCell: input-gate half precomputed (g_ey); in-loop K = P+D.
        g = g_ey[j * B:(j + 1) * B, :] + jnp.dot(
            jnp.concatenate([att_c, z], axis=-1), dec_wcz,
            preferred_element_type=f32)                                 # (B, 4D)
        sig = jax.nn.sigmoid(g)
        th = jnp.tanh(g)
        cz = sig[:, D:2 * D] * cz + sig[:, 0:D] * th[:, 2 * D:3 * D]
        z = sig[:, 3 * D:4 * D] * jnp.tanh(cz)
        z_rows.append(z)
        if j + 1 < LO:                       # next step's attention query
            d = jnp.tanh(jnp.dot(z, att_wd, preferred_element_type=f32) + att_bd)

    # --------- output projection + cross entropy, hoisted out of the loop ----
    z_all = jnp.concatenate(z_rows, axis=0)                             # (LO*B, D)
    logits = jnp.dot(z_all, dec_wo, preferred_element_type=f32) + dec_bo  # (LO*B, V)
    yt = yt_ref[...]                                                    # (LO*B, 1)
    valid = yt != IGNORE
    tgt = jnp.where(valid, yt, 0)
    onehot = (lax.broadcasted_iota(jnp.int32, logits.shape, 1) == tgt).astype(f32)
    picked = jnp.sum(logits * onehot, axis=1, keepdims=True)
    m = jnp.max(logits, axis=1, keepdims=True)
    lse = m + jnp.log(jnp.sum(jnp.exp(logits - m), axis=1, keepdims=True))
    validf = valid.astype(f32)
    ce_sum = jnp.sum((lse - picked) * validf, keepdims=True)            # (1, 1)
    cnt = jnp.sum(validf, keepdims=True)                                # (1, 1)
    # F.cross_entropy(reduction='mean', ignore_index=-1) * mean(len(y));
    # cnt = sum(ylens) + B  =>  mean(ylens) = (cnt - B) / B.
    loss = (ce_sum / cnt) * ((cnt - float(B)) / float(B))
    out_ref[...] = loss                                                 # single writeback


def run_e2e(xs_flat, ysin_flat, yt_flat, maskT, kp):
    """One fused pallas_call; all operands are whole-array VMEM blocks (no grid)."""
    return pl.pallas_call(
        e2e_kernel,
        out_shape=jax.ShapeDtypeStruct((1, 1), jnp.float32),
    )(xs_flat, ysin_flat, yt_flat, maskT,
      kp["emb_ih"], kp["enc_whh"], kp["enc_b"], kp["enc_wp"], kp["enc_bp"],
      kp["att_we"], kp["att_be"], kp["att_wd"], kp["att_bd"],
      kp["emb_ie"], kp["dec_wcz"], kp["dec_b"], kp["dec_wo"], kp["dec_bo"])


# ----------------------------- params ---------------------------------------
def init_params(key):
    """init_like_fairseq: everything ~ Uniform(-0.1, 0.1); embedding row 0 = 0."""
    ks = jax.random.split(key, 16)
    u = lambda k, shp: jax.random.uniform(k, shp, jnp.float32, -0.1, 0.1)
    emb_src = u(ks[0], (V_SRC, E)).at[0].set(0.0)     # padding_idx = 0
    emb_tgt = u(ks[1], (V_TGT, D)).at[0].set(0.0)     # dec.embed, row pad zeroed
    return {
        "embed_src": emb_src,
        "enc_wih": u(ks[2], (E, 4 * E)),
        "enc_whh": u(ks[3], (E, 4 * E)),
        "enc_b": u(ks[4], (1, 4 * E)),
        "enc_wp": u(ks[5], (E, P)),
        "enc_bp": u(ks[6], (1, P)),
        "att_we": u(ks[7], (P, A)),
        "att_be": u(ks[8], (1, A)),
        "att_wd": u(ks[9], (D, A)),
        "att_bd": u(ks[10], (1, A)),
        "embed_tgt": emb_tgt,
        "dec_wie": u(ks[11], (D, 4 * D)),
        "dec_wic": u(ks[12], (P, 4 * D)),
        "dec_whh": u(ks[13], (D, 4 * D)),
        "dec_b": u(ks[14], (1, 4 * D)),
        "dec_wo": u(ks[15], (D, V_TGT)),
        "dec_bo": jnp.zeros((1, V_TGT), jnp.float32),
    }


def pack_params(p):
    """Host-side: fuse embeddings into the input-gate weights and concatenate
    the decoder context/recurrent gate weights for single-matmul steps."""
    def pad_rows(w):
        return jnp.concatenate(
            [w, jnp.zeros((VPAD - w.shape[0], w.shape[1]), w.dtype)], axis=0)
    return {
        "emb_ih": pad_rows(p["embed_src"]) @ p["enc_wih"],                  # (VPAD, 4E)
        "enc_whh": p["enc_whh"],
        "enc_b": p["enc_b"],
        "enc_wp": p["enc_wp"],
        "enc_bp": p["enc_bp"],
        "att_we": p["att_we"],
        "att_be": p["att_be"],
        "att_wd": p["att_wd"],
        "att_bd": p["att_bd"],
        "emb_ie": pad_rows(p["embed_tgt"]) @ p["dec_wie"],                  # (VPAD, 4D)
        "dec_wcz": jnp.concatenate([p["dec_wic"], p["dec_whh"]], axis=0),   # (P+D, 4D)
        "dec_b": p["dec_b"],
        "dec_wo": p["dec_wo"],
        "dec_bo": p["dec_bo"],
    }


# ----------------------------- E2E forward ----------------------------------
@jax.jit
def e2e_forward(kp, xs_pad, ilens, ys_pad):
    """Mirrors E2E.forward: returns the scalar training loss."""
    # target_language_biasing: multilingual=False -> identity.
    # dropout_rate = 0.0 -> dropout is identity (deterministic).

    # Source ids flattened time-major (row t*B + b); embedding happens in-kernel.
    xs_flat = xs_pad.T.reshape(T * B, 1).astype(jnp.int32)

    # Block-diagonal (B, T*B) source-length mask for the packed attention.
    t_idx = jnp.repeat(jnp.arange(T), B)      # flat row -> t
    b_idx = jnp.tile(jnp.arange(B), T)        # flat row -> b
    maskT = ((b_idx[None, :] == jnp.arange(B)[:, None]) &
             (t_idx[None, :] < ilens[:, None])).astype(jnp.float32)     # (B, T*B)

    # ---- decoder target preparation (sos/eos, ignore_index padding) ----
    ylens = jnp.sum(ys_pad != IGNORE, axis=1)                           # (B,)
    ys_in = jnp.concatenate(
        [jnp.full((B, 1), SOS, ys_pad.dtype),
         jnp.where(ys_pad != IGNORE, ys_pad, EOS)], axis=1)             # (B, LO), pad=eos
    idx = jnp.arange(LO)[None, :]
    ys_pad_ext = jnp.concatenate(
        [ys_pad, jnp.full((B, 1), IGNORE, ys_pad.dtype)], axis=1)       # (B, LO)
    ys_out = jnp.where(idx < ylens[:, None], ys_pad_ext,
                       jnp.where(idx == ylens[:, None], EOS, IGNORE))   # (B, LO)

    ysin_flat = ys_in.T.reshape(LO * B, 1).astype(jnp.int32)
    yt_flat = ys_out.T.reshape(LO * B, 1).astype(jnp.int32)

    # Kernel returns the final scalar loss (CE-mean * mean target length)
    # directly; no wrapper-side reductions.
    loss = run_e2e(xs_flat, ysin_flat, yt_flat, maskT, kp)              # (1, 1)
    # TODO(synk): report_bleu beam-search / BLEU, acc/ppl and chainer Reporter
    # side-effects have no Pallas equivalent; forward returns the loss only.
    return loss[0, 0]


if __name__ == "__main__":
    key = jax.random.PRNGKey(0)
    kp_, kx, ky = jax.random.split(key, 3)
    params = init_params(kp_)
    packed = pack_params(params)                 # host-side weight fusion/concat

    ilens = jnp.array([8, 6], dtype=jnp.int32)
    ylens = jnp.array([6, 4], dtype=jnp.int32)

    xs_ids = jax.random.randint(kx, (B, T), 1, V_SRC, dtype=jnp.int32)
    xs_pad = jnp.where(jnp.arange(T)[None, :] < ilens[:, None], xs_ids, 0)

    ys_ids = jax.random.randint(ky, (B, LMAX), 1, V_TGT - 1, dtype=jnp.int32)
    ys_pad = jnp.where(jnp.arange(LMAX)[None, :] < ylens[:, None], ys_ids, IGNORE)

    loss = e2e_forward(packed, xs_pad, ilens, ys_pad)
    jax.block_until_ready(loss)
    assert jnp.isfinite(loss), f"loss is not finite: {loss}"
    print("KERNEL_OK")
</pallas_src>

<mosaic_0001>
module attributes {stable_mosaic.version = 11 : i64} {
  func.func @e2e_kernel(%arg0: memref<16x1xi32, #tpu.memory_space<vmem>>, %arg1: memref<14x1xi32, #tpu.memory_space<vmem>>, %arg2: memref<14x1xi32, #tpu.memory_space<vmem>>, %arg3: memref<2x16xf32, #tpu.memory_space<vmem>>, %arg4: memref<64x128xf32, #tpu.memory_space<vmem>>, %arg5: memref<32x128xf32, #tpu.memory_space<vmem>>, %arg6: memref<1x128xf32, #tpu.memory_space<vmem>>, %arg7: memref<32x32xf32, #tpu.memory_space<vmem>>, %arg8: memref<1x32xf32, #tpu.memory_space<vmem>>, %arg9: memref<32x32xf32, #tpu.memory_space<vmem>>, %arg10: memref<1x32xf32, #tpu.memory_space<vmem>>, %arg11: memref<32x32xf32, #tpu.memory_space<vmem>>, %arg12: memref<1x32xf32, #tpu.memory_space<vmem>>, %arg13: memref<64x128xf32, #tpu.memory_space<vmem>>, %arg14: memref<64x128xf32, #tpu.memory_space<vmem>>, %arg15: memref<1x128xf32, #tpu.memory_space<vmem>>, %arg16: memref<32x48xf32, #tpu.memory_space<vmem>>, %arg17: memref<1x48xf32, #tpu.memory_space<vmem>>, %arg18: memref<1x1xf32, #tpu.memory_space<vmem>>) attributes {dimension_semantics = [], scalar_prefetch = 0 : i64, scratch_operands = 0 : i64, tpu.core_type = #tpu.core_type<tc>} {
    %c0 = arith.constant 0 : index
    %c0_0 = arith.constant 0 : index
    %0 = vector.load %arg4[%c0, %c0_0] : memref<64x128xf32, #tpu.memory_space<vmem>>, vector<64x128xf32>
    %c0_1 = arith.constant 0 : index
    %c0_2 = arith.constant 0 : index
    %1 = vector.load %arg5[%c0_1, %c0_2] : memref<32x128xf32, #tpu.memory_space<vmem>>, vector<32x128xf32>
    %c0_3 = arith.constant 0 : index
    %c0_4 = arith.constant 0 : index
    %2 = vector.load %arg6[%c0_3, %c0_4] : memref<1x128xf32, #tpu.memory_space<vmem>>, vector<1x128xf32>
    %c0_5 = arith.constant 0 : index
    %c0_6 = arith.constant 0 : index
    %3 = vector.load %arg7[%c0_5, %c0_6] : memref<32x32xf32, #tpu.memory_space<vmem>>, vector<32x32xf32>
    %c0_7 = arith.constant 0 : index
    %c0_8 = arith.constant 0 : index
    %4 = vector.load %arg8[%c0_7, %c0_8] : memref<1x32xf32, #tpu.memory_space<vmem>>, vector<1x32xf32>
    %c0_9 = arith.constant 0 : index
    %c0_10 = arith.constant 0 : index
    %5 = vector.load %arg9[%c0_9, %c0_10] : memref<32x32xf32, #tpu.memory_space<vmem>>, vector<32x32xf32>
    %c0_11 = arith.constant 0 : index
    %c0_12 = arith.constant 0 : index
    %6 = vector.load %arg10[%c0_11, %c0_12] : memref<1x32xf32, #tpu.memory_space<vmem>>, vector<1x32xf32>
    %c0_13 = arith.constant 0 : index
    %c0_14 = arith.constant 0 : index
    %7 = vector.load %arg11[%c0_13, %c0_14] : memref<32x32xf32, #tpu.memory_space<vmem>>, vector<32x32xf32>
    %c0_15 = arith.constant 0 : index
    %c0_16 = arith.constant 0 : index
    %8 = vector.load %arg12[%c0_15, %c0_16] : memref<1x32xf32, #tpu.memory_space<vmem>>, vector<1x32xf32>
    %c0_17 = arith.constant 0 : index
    %c0_18 = arith.constant 0 : index
    %9 = vector.load %arg13[%c0_17, %c0_18] : memref<64x128xf32, #tpu.memory_space<vmem>>, vector<64x128xf32>
    %c0_19 = arith.constant 0 : index
    %c0_20 = arith.constant 0 : index
    %10 = vector.load %arg14[%c0_19, %c0_20] : memref<64x128xf32, #tpu.memory_space<vmem>>, vector<64x128xf32>
    %c0_21 = arith.constant 0 : index
    %c0_22 = arith.constant 0 : index
    %11 = vector.load %arg15[%c0_21, %c0_22] : memref<1x128xf32, #tpu.memory_space<vmem>>, vector<1x128xf32>
    %c0_23 = arith.constant 0 : index
    %c0_24 = arith.constant 0 : index
    %12 = vector.load %arg16[%c0_23, %c0_24] : memref<32x48xf32, #tpu.memory_space<vmem>>, vector<32x48xf32>
    %c0_25 = arith.constant 0 : index
    %c0_26 = arith.constant 0 : index
    %13 = vector.load %arg17[%c0_25, %c0_26] : memref<1x48xf32, #tpu.memory_space<vmem>>, vector<1x48xf32>
    %c0_27 = arith.constant 0 : index
    %c0_28 = arith.constant 0 : index
    %14 = vector.load %arg3[%c0_27, %c0_28] : memref<2x16xf32, #tpu.memory_space<vmem>>, vector<2x16xf32>
    %c0_29 = arith.constant 0 : index
    %c0_30 = arith.constant 0 : index
    %15 = vector.load %arg0[%c0_29, %c0_30] : memref<16x1xi32, #tpu.memory_space<vmem>>, vector<16x1xi32>
    %16 = tpu.iota {dimensions = array<i32: 1>} : vector<16x64xi32>
    %17 = vector.broadcast %15 : vector<16x1xi32> to vector<16x64xi32>
    %18 = arith.cmpi eq, %16, %17 : vector<16x64xi32>
    %19 = arith.extui %18 : vector<16x64xi1> to vector<16x64xi32>
    %20 = arith.sitofp %19 : vector<16x64xi32> to vector<16x64xf32>
    %cst = arith.constant dense<0.000000e+00> : vector<16x128xf32>
    %21 = tpu.matmul %20, %0, %cst {dimension_numbers = #tpu.dot_dimension_numbers<[1], [0], [0], [1], [0, 0, 1, 1], [], []>} : vector<16x64xf32>, vector<64x128xf32>, vector<16x128xf32> -> vector<16x128xf32>
    %22 = vector.broadcast %2 : vector<1x128xf32> to vector<16x128xf32>
    %23 = arith.addf %21, %22 : vector<16x128xf32>
    %cst_31 = arith.constant 0.000000e+00 : f32
    %24 = vector.broadcast %cst_31 : f32 to vector<2x32xf32>
    %cst_32 = arith.constant 0.000000e+00 : f32
    %25 = vector.broadcast %cst_32 : f32 to vector<2x32xf32>
    %26 = vector.extract_strided_slice %23 {offsets = [0, 0], sizes = [2, 128], strides = [1, 1]} : vector<16x128xf32> to vector<2x128xf32>
    %cst_33 = arith.constant dense<0.000000e+00> : vector<2x128xf32>
    %27 = tpu.matmul %24, %1, %cst_33 {dimension_numbers = #tpu.dot_dimension_numbers<[1], [0], [0], [1], [0, 0, 1, 1], [], []>} : vector<2x32xf32>, vector<32x128xf32>, vector<2x128xf32> -> vector<2x128xf32>
    %28 = arith.addf %26, %27 : vector<2x128xf32>
    %29 = arith.negf %28 : vector<2x128xf32>
    %30 = math.exp %29 : vector<2x128xf32>
    %cst_34 = arith.constant 1.000000e+00 : f32
    %31 = vector.broadcast %cst_34 : f32 to vector<2x128xf32>
    %32 = arith.addf %31, %30 : vector<2x128xf32>
    %33 = arith.divf %31, %32 : vector<2x128xf32>
    %34 = math.tanh %28 : vector<2x128xf32>
    %35 = vector.extract_strided_slice %33 {offsets = [0, 32], sizes = [2, 32], strides = [1, 1]} : vector<2x128xf32> to vector<2x32xf32>
    %36 = arith.mulf %35, %25 : vector<2x32xf32>
    %37 = vector.extract_strided_slice %33 {offsets = [0, 0], sizes = [2, 32], strides = [1, 1]} : vector<2x128xf32> to vector<2x32xf32>
    %38 = vector.extract_strided_slice %34 {offsets = [0, 64], sizes = [2, 32], strides = [1, 1]} : vector<2x128xf32> to vector<2x32xf32>
    %39 = arith.mulf %37, %38 : vector<2x32xf32>
    %40 = arith.addf %36, %39 : vector<2x32xf32>
    %41 = vector.extract_strided_slice %33 {offsets = [0, 96], sizes = [2, 32], strides = [1, 1]} : vector<2x128xf32> to vector<2x32xf32>
    %42 = math.tanh %40 : vector<2x32xf32>
    %43 = arith.mulf %41, %42 : vector<2x32xf32>
    %44 = vector.extract_strided_slice %23 {offsets = [2, 0], sizes = [2, 128], strides = [1, 1]} : vector<16x128xf32> to vector<2x128xf32>
    %cst_35 = arith.constant dense<0.000000e+00> : vector<2x128xf32>
    %45 = tpu.matmul %43, %1, %cst_35 {dimension_numbers = #tpu.dot_dimension_numbers<[1], [0], [0], [1], [0, 0, 1, 1], [], []>} : vector<2x32xf32>, vector<32x128xf32>, vector<2x128xf32> -> vector<2x128xf32>
    %46 = arith.addf %44, %45 : vector<2x128xf32>
    %47 = arith.negf %46 : vector<2x128xf32>
    %48 = math.exp %47 : vector<2x128xf32>
    %cst_36 = arith.constant 1.000000e+00 : f32
    %49 = vector.broadcast %cst_36 : f32 to vector<2x128xf32>
    %50 = arith.addf %49, %48 : vector<2x128xf32>
    %51 = arith.divf %49, %50 : vector<2x128xf32>
    %52 = math.tanh %46 : vector<2x128xf32>
    %53 = vector.extract_strided_slice %51 {offsets = [0, 32], sizes = [2, 32], strides = [1, 1]} : vector<2x128xf32> to vector<2x32xf32>
    %54 = arith.mulf %53, %40 : vector<2x32xf32>
    %55 = vector.extract_strided_slice %51 {offsets = [0, 0], sizes = [2, 32], strides = [1, 1]} : vector<2x128xf32> to vector<2x32xf32>
    %56 = vector.extract_strided_slice %52 {offsets = [0, 64], sizes = [2, 32], strides = [1, 1]} : vector<2x128xf32> to vector<2x32xf32>
    %57 = arith.mulf %55, %56 : vector<2x32xf32>
    %58 = arith.addf %54, %57 : vector<2x32xf32>
    %59 = vector.extract_strided_slice %51 {offsets = [0, 96], sizes = [2, 32], strides = [1, 1]} : vector<2x128xf32> to vector<2x32xf32>
    %60 = math.tanh %58 : vector<2x32xf32>
    %61 = arith.mulf %59, %60 : vector<2x32xf32>
    %62 = vector.extract_strided_slice %23 {offsets = [4, 0], sizes = [2, 128], strides = [1, 1]} : vector<16x128xf32> to vector<2x128xf32>
    %cst_37 = arith.constant dense<0.000000e+00> : vector<2x128xf32>
    %63 = tpu.matmul %61, %1, %cst_37 {dimension_numbers = #tpu.dot_dimension_numbers<[1], [0], [0], [1], [0, 0, 1, 1], [], []>} : vector<2x32xf32>, vector<32x128xf32>, vector<2x128xf32> -> vector<2x128xf32>
    %64 = arith.addf %62, %63 : vector<2x128xf32>
    %65 = arith.negf %64 : vector<2x128xf32>
    %66 = math.exp %65 : vector<2x128xf32>
    %cst_38 = arith.constant 1.000000e+00 : f32
    %67 = vector.broadcast %cst_38 : f32 to vector<2x128xf32>
    %68 = arith.addf %67, %66 : vector<2x128xf32>
    %69 = arith.divf %67, %68 : vector<2x128xf32>
    %70 = math.tanh %64 : vector<2x128xf32>
    %71 = vector.extract_strided_slice %69 {offsets = [0, 32], sizes = [2, 32], strides = [1, 1]} : vector<2x128xf32> to vector<2x32xf32>
    %72 = arith.mulf %71, %58 : vector<2x32xf32>
    %73 = vector.extract_strided_slice %69 {offsets = [0, 0], sizes = [2, 32], strides = [1, 1]} : vector<2x128xf32> to vector<2x32xf32>
    %74 = vector.extract_strided_slice %70 {offsets = [0, 64], sizes = [2, 32], strides = [1, 1]} : vector<2x128xf32> to vector<2x32xf32>
    %75 = arith.mulf %73, %74 : vector<2x32xf32>
    %76 = arith.addf %72, %75 : vector<2x32xf32>
    %77 = vector.extract_strided_slice %69 {offsets = [0, 96], sizes = [2, 32], strides = [1, 1]} : vector<2x128xf32> to vector<2x32xf32>
    %78 = math.tanh %76 : vector<2x32xf32>
    %79 = arith.mulf %77, %78 : vector<2x32xf32>
    %80 = vector.extract_strided_slice %23 {offsets = [6, 0], sizes = [2, 128], strides = [1, 1]} : vector<16x128xf32> to vector<2x128xf32>
    %cst_39 = arith.constant dense<0.000000e+00> : vector<2x128xf32>
    %81 = tpu.matmul %79, %1, %cst_39 {dimension_numbers = #tpu.dot_dimension_numbers<[1], [0], [0], [1], [0, 0, 1, 1], [], []>} : vector<2x32xf32>, vector<32x128xf32>, vector<2x128xf32> -> vector<2x128xf32>
    %82 = arith.addf %80, %81 : vector<2x128xf32>
    %83 = arith.negf %82 : vector<2x128xf32>
    %84 = math.exp %83 : vector<2x128xf32>
    %cst_40 = arith.constant 1.000000e+00 : f32
    %85 = vector.broadcast %cst_40 : f32 to vector<2x128xf32>
    %86 = arith.addf %85, %84 : vector<2x128xf32>
    %87 = arith.divf %85, %86 : vector<2x128xf32>
    %88 = math.tanh %82 : vector<2x128xf32>
    %89 = vector.extract_strided_slice %87 {offsets = [0, 32], sizes = [2, 32], strides = [1, 1]} : vector<2x128xf32> to vector<2x32xf32>
    %90 = arith.mulf %89, %76 : vector<2x32xf32>
    %91 = vector.extract_strided_slice %87 {offsets = [0, 0], sizes = [2, 32], strides = [1, 1]} : vector<2x128xf32> to vector<2x32xf32>
    %92 = vector.extract_strided_slice %88 {offsets = [0, 64], sizes = [2, 32], strides = [1, 1]} : vector<2x128xf32> to vector<2x32xf32>
    %93 = arith.mulf %91, %92 : vector<2x32xf32>
    %94 = arith.addf %90, %93 : vector<2x32xf32>
    %95 = vector.extract_strided_slice %87 {offsets = [0, 96], sizes = [2, 32], strides = [1, 1]} : vector<2x128xf32> to vector<2x32xf32>
    %96 = math.tanh %94 : vector<2x32xf32>
    %97 = arith.mulf %95, %96 : vector<2x32xf32>
    %98 = vector.extract_strided_slice %23 {offsets = [8, 0], sizes = [2, 128], strides = [1, 1]} : vector<16x128xf32> to vector<2x128xf32>
    %cst_41 = arith.constant dense<0.000000e+00> : vector<2x128xf32>
    %99 = tpu.matmul %97, %1, %cst_41 {dimension_numbers = #tpu.dot_dimension_numbers<[1], [0], [0], [1], [0, 0, 1, 1], [], []>} : vector<2x32xf32>, vector<32x128xf32>, vector<2x128xf32> -> vector<2x128xf32>
    %100 = arith.addf %98, %99 : vector<2x128xf32>
    %101 = arith.negf %100 : vector<2x128xf32>
    %102 = math.exp %101 : vector<2x128xf32>
    %cst_42 = arith.constant 1.000000e+00 : f32
    %103 = vector.broadcast %cst_42 : f32 to vector<2x128xf32>
    %104 = arith.addf %103, %102 : vector<2x128xf32>
    %105 = arith.divf %103, %104 : vector<2x128xf32>
    %106 = math.tanh %100 : vector<2x128xf32>
    %107 = vector.extract_strided_slice %105 {offsets = [0, 32], sizes = [2, 32], strides = [1, 1]} : vector<2x128xf32> to vector<2x32xf32>
    %108 = arith.mulf %107, %94 : vector<2x32xf32>
    %109 = vector.extract_strided_slice %105 {offsets = [0, 0], sizes = [2, 32], strides = [1, 1]} : vector<2x128xf32> to vector<2x32xf32>
    %110 = vector.extract_strided_slice %106 {offsets = [0, 64], sizes = [2, 32], strides = [1, 1]} : vector<2x128xf32> to vector<2x32xf32>
    %111 = arith.mulf %109, %110 : vector<2x32xf32>
    %112 = arith.addf %108, %111 : vector<2x32xf32>
    %113 = vector.extract_strided_slice %105 {offsets = [0, 96], sizes = [2, 32], strides = [1, 1]} : vector<2x128xf32> to vector<2x32xf32>
    %114 = math.tanh %112 : vector<2x32xf32>
    %115 = arith.mulf %113, %114 : vector<2x32xf32>
    %116 = vector.extract_strided_slice %23 {offsets = [10, 0], sizes = [2, 128], strides = [1, 1]} : vector<16x128xf32> to vector<2x128xf32>
    %cst_43 = arith.constant dense<0.000000e+00> : vector<2x128xf32>
    %117 = tpu.matmul %115, %1, %cst_43 {dimension_numbers = #tpu.dot_dimension_numbers<[1], [0], [0], [1], [0, 0, 1, 1], [], []>} : vector<2x32xf32>, vector<32x128xf32>, vector<2x128xf32> -> vector<2x128xf32>
    %118 = arith.addf %116, %117 : vector<2x128xf32>
    %119 = arith.negf %118 : vector<2x128xf32>
    %120 = math.exp %119 : vector<2x128xf32>
    %cst_44 = arith.constant 1.000000e+00 : f32
    %121 = vector.broadcast %cst_44 : f32 to vector<2x128xf32>
    %122 = arith.addf %121, %120 : vector<2x128xf32>
    %123 = arith.divf %121, %122 : vector<2x128xf32>
    %124 = math.tanh %118 : vector<2x128xf32>
    %125 = vector.extract_strided_slice %123 {offsets = [0, 32], sizes = [2, 32], strides = [1, 1]} : vector<2x128xf32> to vector<2x32xf32>
    %126 = arith.mulf %125, %112 : vector<2x32xf32>
    %127 = vector.extract_strided_slice %123 {offsets = [0, 0], sizes = [2, 32], strides = [1, 1]} : vector<2x128xf32> to vector<2x32xf32>
    %128 = vector.extract_strided_slice %124 {offsets = [0, 64], sizes = [2, 32], strides = [1, 1]} : vector<2x128xf32> to vector<2x32xf32>
    %129 = arith.mulf %127, %128 : vector<2x32xf32>
    %130 = arith.addf %126, %129 : vector<2x32xf32>
    %131 = vector.extract_strided_slice %123 {offsets = [0, 96], sizes = [2, 32], strides = [1, 1]} : vector<2x128xf32> to vector<2x32xf32>
    %132 = math.tanh %130 : vector<2x32xf32>
    %133 = arith.mulf %131, %132 : vector<2x32xf32>
    %134 = vector.extract_strided_slice %23 {offsets = [12, 0], sizes = [2, 128], strides = [1, 1]} : vector<16x128xf32> to vector<2x128xf32>
    %cst_45 = arith.constant dense<0.000000e+00> : vector<2x128xf32>
    %135 = tpu.matmul %133, %1, %cst_45 {dimension_numbers = #tpu.dot_dimension_numbers<[1], [0], [0], [1], [0, 0, 1, 1], [], []>} : vector<2x32xf32>, vector<32x128xf32>, vector<2x128xf32> -> vector<2x128xf32>
    %136 = arith.addf %134, %135 : vector<2x128xf32>
    %137 = arith.negf %136 : vector<2x128xf32>
    %138 = math.exp %137 : vector<2x128xf32>
    %cst_46 = arith.constant 1.000000e+00 : f32
    %139 = vector.broadcast %cst_46 : f32 to vector<2x128xf32>
    %140 = arith.addf %139, %138 : vector<2x128xf32>
    %141 = arith.divf %139, %140 : vector<2x128xf32>
    %142 = math.tanh %136 : vector<2x128xf32>
    %143 = vector.extract_strided_slice %141 {offsets = [0, 32], sizes = [2, 32], strides = [1, 1]} : vector<2x128xf32> to vector<2x32xf32>
    %144 = arith.mulf %143, %130 : vector<2x32xf32>
    %145 = vector.extract_strided_slice %141 {offsets = [0, 0], sizes = [2, 32], strides = [1, 1]} : vector<2x128xf32> to vector<2x32xf32>
    %146 = vector.extract_strided_slice %142 {offsets = [0, 64], sizes = [2, 32], strides = [1, 1]} : vector<2x128xf32> to vector<2x32xf32>
    %147 = arith.mulf %145, %146 : vector<2x32xf32>
    %148 = arith.addf %144, %147 : vector<2x32xf32>
    %149 = vector.extract_strided_slice %141 {offsets = [0, 96], sizes = [2, 32], strides = [1, 1]} : vector<2x128xf32> to vector<2x32xf32>
    %150 = math.tanh %148 : vector<2x32xf32>
    %151 = arith.mulf %149, %150 : vector<2x32xf32>
    %152 = vector.extract_strided_slice %23 {offsets = [14, 0], sizes = [2, 128], strides = [1, 1]} : vector<16x128xf32> to vector<2x128xf32>
    %cst_47 = arith.constant dense<0.000000e+00> : vector<2x128xf32>
    %153 = tpu.matmul %151, %1, %cst_47 {dimension_numbers = #tpu.dot_dimension_numbers<[1], [0], [0], [1], [0, 0, 1, 1], [], []>} : vector<2x32xf32>, vector<32x128xf32>, vector<2x128xf32> -> vector<2x128xf32>
    %154 = arith.addf %152, %153 : vector<2x128xf32>
    %155 = arith.negf %154 : vector<2x128xf32>
    %156 = math.exp %155 : vector<2x128xf32>
    %cst_48 = arith.constant 1.000000e+00 : f32
    %157 = vector.broadcast %cst_48 : f32 to vector<2x128xf32>
    %158 = arith.addf %157, %156 : vector<2x128xf32>
    %159 = arith.divf %157, %158 : vector<2x128xf32>
    %160 = math.tanh %154 : vector<2x128xf32>
    %161 = vector.extract_strided_slice %159 {offsets = [0, 32], sizes = [2, 32], strides = [1, 1]} : vector<2x128xf32> to vector<2x32xf32>
    %162 = arith.mulf %161, %148 : vector<2x32xf32>
    %163 = vector.extract_strided_slice %159 {offsets = [0, 0], sizes = [2, 32], strides = [1, 1]} : vector<2x128xf32> to vector<2x32xf32>
    %164 = vector.extract_strided_slice %160 {offsets = [0, 64], sizes = [2, 32], strides = [1, 1]} : vector<2x128xf32> to vector<2x32xf32>
    %165 = arith.mulf %163, %164 : vector<2x32xf32>
    %166 = arith.addf %162, %165 : vector<2x32xf32>
    %167 = vector.extract_strided_slice %159 {offsets = [0, 96], sizes = [2, 32], strides = [1, 1]} : vector<2x128xf32> to vector<2x32xf32>
    %168 = math.tanh %166 : vector<2x32xf32>
    %169 = arith.mulf %167, %168 : vector<2x32xf32>
    %170 = tpu.concatenate %43, %61, %79, %97, %115, %133, %151, %169 in 0 : vector<2x32xf32>, vector<2x32xf32>, vector<2x32xf32>, vector<2x32xf32>, vector<2x32xf32>, vector<2x32xf32>, vector<2x32xf32>, vector<2x32xf32> -> vector<16x32xf32>
    %cst_49 = arith.constant dense<0.000000e+00> : vector<16x32xf32>
    %171 = tpu.matmul %170, %3, %cst_49 {dimension_numbers = #tpu.dot_dimension_numbers<[1], [0], [0], [1], [0, 0, 1, 1], [], []>} : vector<16x32xf32>, vector<32x32xf32>, vector<16x32xf32> -> vector<16x32xf32>
    %172 = vector.broadcast %4 : vector<1x32xf32> to vector<16x32xf32>
    %173 = arith.addf %171, %172 : vector<16x32xf32>
    %174 = math.tanh %173 : vector<16x32xf32>
    %cst_50 = arith.constant dense<0.000000e+00> : vector<16x32xf32>
    %175 = tpu.matmul %174, %5, %cst_50 {dimension_numbers = #tpu.dot_dimension_numbers<[1], [0], [0], [1], [0, 0, 1, 1], [], []>} : vector<16x32xf32>, vector<32x32xf32>, vector<16x32xf32> -> vector<16x32xf32>
    %176 = vector.broadcast %6 : vector<1x32xf32> to vector<16x32xf32>
    %177 = arith.addf %175, %176 : vector<16x32xf32>
    %178 = math.tanh %177 : vector<16x32xf32>
    %cst_51 = arith.constant 2.000000e+00 : f32
    %179 = vector.broadcast %cst_51 : f32 to vector<16x32xf32>
    %180 = arith.mulf %179, %178 : vector<16x32xf32>
    %181 = tpu.transpose %180, [1, 0] : vector<16x32xf32> -> vector<32x16xf32>
    %c0_52 = arith.constant 0 : index
    %c0_53 = arith.constant 0 : index
    %182 = vector.load %arg1[%c0_52, %c0_53] : memref<14x1xi32, #tpu.memory_space<vmem>>, vector<14x1xi32>
    %183 = tpu.iota {dimensions = array<i32: 1>} : vector<14x64xi32>
    %184 = vector.broadcast %182 : vector<14x1xi32> to vector<14x64xi32>
    %185 = arith.cmpi eq, %183, %184 : vector<14x64xi32>
    %186 = arith.extui %185 : vector<14x64xi1> to vector<14x64xi32>
    %187 = arith.sitofp %186 : vector<14x64xi32> to vector<14x64xf32>
    %cst_54 = arith.constant dense<0.000000e+00> : vector<14x128xf32>
    %188 = tpu.matmul %187, %9, %cst_54 {dimension_numbers = #tpu.dot_dimension_numbers<[1], [0], [0], [1], [0, 0, 1, 1], [], []>} : vector<14x64xf32>, vector<64x128xf32>, vector<14x128xf32> -> vector<14x128xf32>
    %189 = vector.broadcast %11 : vector<1x128xf32> to vector<14x128xf32>
    %190 = arith.addf %188, %189 : vector<14x128xf32>
    %cst_55 = arith.constant 0.000000e+00 : f32
    %191 = vector.broadcast %cst_55 : f32 to vector<2x32xf32>
    %cst_56 = arith.constant 0.000000e+00 : f32
    %192 = vector.broadcast %cst_56 : f32 to vector<2x32xf32>
    %193 = math.tanh %8 : vector<1x32xf32>
    %194 = vector.shape_cast %193 : vector<1x32xf32> to vector<1x32xf32>
    %195 = vector.broadcast %194 : vector<1x32xf32> to vector<2x32xf32>
    %cst_57 = arith.constant dense<0.000000e+00> : vector<2x16xf32>
    %196 = tpu.matmul %195, %181, %cst_57 {dimension_numbers = #tpu.dot_dimension_numbers<[1], [0], [0], [1], [0, 0, 1, 1], [], []>} : vector<2x32xf32>, vector<32x16xf32>, vector<2x16xf32> -> vector<2x16xf32>
    %cst_58 = arith.constant 5.000000e-01 : f32
    %197 = vector.broadcast %cst_58 : f32 to vector<2x16xf32>
    %198 = arith.cmpf ogt, %14, %197 : vector<2x16xf32>
    %cst_59 = arith.constant -1.000000e+30 : f32
    %199 = vector.broadcast %cst_59 : f32 to vector<2x16xf32>
    %200 = arith.select %198, %196, %199 : vector<2x16xi1>, vector<2x16xf32>
    %cst_60 = arith.constant dense<0xFF800000> : vector<2xf32>
    %201 = vector.multi_reduction <maximumf>, %200, %cst_60 [1] : vector<2x16xf32> to vector<2xf32>
    %202 = vector.shape_cast %201 : vector<2xf32> to vector<2x1xf32>
    %203 = vector.broadcast %202 : vector<2x1xf32> to vector<2x16xf32>
    %204 = arith.subf %200, %203 : vector<2x16xf32>
    %205 = math.exp %204 : vector<2x16xf32>
    %cst_61 = arith.constant dense<0.000000e+00> : vector<2xf32>
    %206 = vector.multi_reduction <add>, %205, %cst_61 [1] : vector<2x16xf32> to vector<2xf32>
    %207 = vector.shape_cast %206 : vector<2xf32> to vector<2x1xf32>
    %208 = tpu.reciprocal %207 {approx = true} : vector<2x1xf32> -> vector<2x1xf32>
    %209 = vector.broadcast %208 : vector<2x1xf32> to vector<2x16xf32>
    %210 = arith.mulf %205, %209 : vector<2x16xf32>
    %cst_62 = arith.constant dense<0.000000e+00> : vector<2x32xf32>
    %211 = tpu.matmul %210, %174, %cst_62 {dimension_numbers = #tpu.dot_dimension_numbers<[1], [0], [0], [1], [0, 0, 1, 1], [], []>} : vector<2x16xf32>, vector<16x32xf32>, vector<2x32xf32> -> vector<2x32xf32>
    %212 = vector.extract_strided_slice %190 {offsets = [0, 0], sizes = [2, 128], strides = [1, 1]} : vector<14x128xf32> to vector<2x128xf32>
    %213 = tpu.concatenate %211, %191 in 1 : vector<2x32xf32>, vector<2x32xf32> -> vector<2x64xf32>
    %cst_63 = arith.constant dense<0.000000e+00> : vector<2x128xf32>
    %214 = tpu.matmul %213, %10, %cst_63 {dimension_numbers = #tpu.dot_dimension_numbers<[1], [0], [0], [1], [0, 0, 1, 1], [], []>} : vector<2x64xf32>, vector<64x128xf32>, vector<2x128xf32> -> vector<2x128xf32>
    %215 = arith.addf %212, %214 : vector<2x128xf32>
    %216 = arith.negf %215 : vector<2x128xf32>
    %217 = math.exp %216 : vector<2x128xf32>
    %cst_64 = arith.constant 1.000000e+00 : f32
    %218 = vector.broadcast %cst_64 : f32 to vector<2x128xf32>
    %219 = arith.addf %218, %217 : vector<2x128xf32>
    %220 = arith.divf %218, %219 : vector<2x128xf32>
    %221 = math.tanh %215 : vector<2x128xf32>
    %222 = vector.extract_strided_slice %220 {offsets = [0, 32], sizes = [2, 32], strides = [1, 1]} : vector<2x128xf32> to vector<2x32xf32>
    %223 = arith.mulf %222, %192 : vector<2x32xf32>
    %224 = vector.extract_strided_slice %220 {offsets = [0, 0], sizes = [2, 32], strides = [1, 1]} : vector<2x128xf32> to vector<2x32xf32>
    %225 = vector.extract_strided_slice %221 {offsets = [0, 64], sizes = [2, 32], strides = [1, 1]} : vector<2x128xf32> to vector<2x32xf32>
    %226 = arith.mulf %224, %225 : vector<2x32xf32>
    %227 = arith.addf %223, %226 : vector<2x32xf32>
    %228 = vector.extract_strided_slice %220 {offsets = [0, 96], sizes = [2, 32], strides = [1, 1]} : vector<2x128xf32> to vector<2x32xf32>
    %229 = math.tanh %227 : vector<2x32xf32>
    %230 = arith.mulf %228, %229 : vector<2x32xf32>
    %cst_65 = arith.constant dense<0.000000e+00> : vector<2x32xf32>
    %231 = tpu.matmul %230, %7, %cst_65 {dimension_numbers = #tpu.dot_dimension_numbers<[1], [0], [0], [1], [0, 0, 1, 1], [], []>} : vector<2x32xf32>, vector<32x32xf32>, vector<2x32xf32> -> vector<2x32xf32>
    %232 = vector.broadcast %8 : vector<1x32xf32> to vector<2x32xf32>
    %233 = arith.addf %231, %232 : vector<2x32xf32>
    %234 = math.tanh %233 : vector<2x32xf32>
    %cst_66 = arith.constant dense<0.000000e+00> : vector<2x16xf32>
    %235 = tpu.matmul %234, %181, %cst_66 {dimension_numbers = #tpu.dot_dimension_numbers<[1], [0], [0], [1], [0, 0, 1, 1], [], []>} : vector<2x32xf32>, vector<32x16xf32>, vector<2x16xf32> -> vector<2x16xf32>
    %cst_67 = arith.constant 5.000000e-01 : f32
    %236 = vector.broadcast %cst_67 : f32 to vector<2x16xf32>
    %237 = arith.cmpf ogt, %14, %236 : vector<2x16xf32>
    %cst_68 = arith.constant -1.000000e+30 : f32
    %238 = vector.broadcast %cst_68 : f32 to vector<2x16xf32>
    %239 = arith.select %237, %235, %238 : vector<2x16xi1>, vector<2x16xf32>
    %cst_69 = arith.constant dense<0xFF800000> : vector<2xf32>
    %240 = vector.multi_reduction <maximumf>, %239, %cst_69 [1] : vector<2x16xf32> to vector<2xf32>
    %241 = vector.shape_cast %240 : vector<2xf32> to vector<2x1xf32>
    %242 = vector.broadcast %241 : vector<2x1xf32> to vector<2x16xf32>
    %243 = arith.subf %239, %242 : vector<2x16xf32>
    %244 = math.exp %243 : vector<2x16xf32>
    %cst_70 = arith.constant dense<0.000000e+00> : vector<2xf32>
    %245 = vector.multi_reduction <add>, %244, %cst_70 [1] : vector<2x16xf32> to vector<2xf32>
    %246 = vector.shape_cast %245 : vector<2xf32> to vector<2x1xf32>
    %247 = tpu.reciprocal %246 {approx = true} : vector<2x1xf32> -> vector<2x1xf32>
    %248 = vector.broadcast %247 : vector<2x1xf32> to vector<2x16xf32>
    %249 = arith.mulf %244, %248 : vector<2x16xf32>
    %cst_71 = arith.constant dense<0.000000e+00> : vector<2x32xf32>
    %250 = tpu.matmul %249, %174, %cst_71 {dimension_numbers = #tpu.dot_dimension_numbers<[1], [0], [0], [1], [0, 0, 1, 1], [], []>} : vector<2x16xf32>, vector<16x32xf32>, vector<2x32xf32> -> vector<2x32xf32>
    %251 = vector.extract_strided_slice %190 {offsets = [2, 0], sizes = [2, 128], strides = [1, 1]} : vector<14x128xf32> to vector<2x128xf32>
    %252 = tpu.concatenate %250, %230 in 1 : vector<2x32xf32>, vector<2x32xf32> -> vector<2x64xf32>
    %cst_72 = arith.constant dense<0.000000e+00> : vector<2x128xf32>
    %253 = tpu.matmul %252, %10, %cst_72 {dimension_numbers = #tpu.dot_dimension_numbers<[1], [0], [0], [1], [0, 0, 1, 1], [], []>} : vector<2x64xf32>, vector<64x128xf32>, vector<2x128xf32> -> vector<2x128xf32>
    %254 = arith.addf %251, %253 : vector<2x128xf32>
    %255 = arith.negf %254 : vector<2x128xf32>
    %256 = math.exp %255 : vector<2x128xf32>
    %cst_73 = arith.constant 1.000000e+00 : f32
    %257 = vector.broadcast %cst_73 : f32 to vector<2x128xf32>
    %258 = arith.addf %257, %256 : vector<2x128xf32>
    %259 = arith.divf %257, %258 : vector<2x128xf32>
    %260 = math.tanh %254 : vector<2x128xf32>
    %261 = vector.extract_strided_slice %259 {offsets = [0, 32], sizes = [2, 32], strides = [1, 1]} : vector<2x128xf32> to vector<2x32xf32>
    %262 = arith.mulf %261, %227 : vector<2x32xf32>
    %263 = vector.extract_strided_slice %259 {offsets = [0, 0], sizes = [2, 32], strides = [1, 1]} : vector<2x128xf32> to vector<2x32xf32>
    %264 = vector.extract_strided_slice %260 {offsets = [0, 64], sizes = [2, 32], strides = [1, 1]} : vector<2x128xf32> to vector<2x32xf32>
    %265 = arith.mulf %263, %264 : vector<2x32xf32>
    %266 = arith.addf %262, %265 : vector<2x32xf32>
    %267 = vector.extract_strided_slice %259 {offsets = [0, 96], sizes = [2, 32], strides = [1, 1]} : vector<2x128xf32> to vector<2x32xf32>
    %268 = math.tanh %266 : vector<2x32xf32>
    %269 = arith.mulf %267, %268 : vector<2x32xf32>
    %cst_74 = arith.constant dense<0.000000e+00> : vector<2x32xf32>
    %270 = tpu.matmul %269, %7, %cst_74 {dimension_numbers = #tpu.dot_dimension_numbers<[1], [0], [0], [1], [0, 0, 1, 1], [], []>} : vector<2x32xf32>, vector<32x32xf32>, vector<2x32xf32> -> vector<2x32xf32>
    %271 = vector.broadcast %8 : vector<1x32xf32> to vector<2x32xf32>
    %272 = arith.addf %270, %271 : vector<2x32xf32>
    %273 = math.tanh %272 : vector<2x32xf32>
    %cst_75 = arith.constant dense<0.000000e+00> : vector<2x16xf32>
    %274 = tpu.matmul %273, %181, %cst_75 {dimension_numbers = #tpu.dot_dimension_numbers<[1], [0], [0], [1], [0, 0, 1, 1], [], []>} : vector<2x32xf32>, vector<32x16xf32>, vector<2x16xf32> -> vector<2x16xf32>
    %cst_76 = arith.constant 5.000000e-01 : f32
    %275 = vector.broadcast %cst_76 : f32 to vector<2x16xf32>
    %276 = arith.cmpf ogt, %14, %275 : vector<2x16xf32>
    %cst_77 = arith.constant -1.000000e+30 : f32
    %277 = vector.broadcast %cst_77 : f32 to vector<2x16xf32>
    %278 = arith.select %276, %274, %277 : vector<2x16xi1>, vector<2x16xf32>
    %cst_78 = arith.constant dense<0xFF800000> : vector<2xf32>
    %279 = vector.multi_reduction <maximumf>, %278, %cst_78 [1] : vector<2x16xf32> to vector<2xf32>
    %280 = vector.shape_cast %279 : vector<2xf32> to vector<2x1xf32>
    %281 = vector.broadcast %280 : vector<2x1xf32> to vector<2x16xf32>
    %282 = arith.subf %278, %281 : vector<2x16xf32>
    %283 = math.exp %282 : vector<2x16xf32>
    %cst_79 = arith.constant dense<0.000000e+00> : vector<2xf32>
    %284 = vector.multi_reduction <add>, %283, %cst_79 [1] : vector<2x16xf32> to vector<2xf32>
    %285 = vector.shape_cast %284 : vector<2xf32> to vector<2x1xf32>
    %286 = tpu.reciprocal %285 {approx = true} : vector<2x1xf32> -> vector<2x1xf32>
    %287 = vector.broadcast %286 : vector<2x1xf32> to vector<2x16xf32>
    %288 = arith.mulf %283, %287 : vector<2x16xf32>
    %cst_80 = arith.constant dense<0.000000e+00> : vector<2x32xf32>
    %289 = tpu.matmul %288, %174, %cst_80 {dimension_numbers = #tpu.dot_dimension_numbers<[1], [0], [0], [1], [0, 0, 1, 1], [], []>} : vector<2x16xf32>, vector<16x32xf32>, vector<2x32xf32> -> vector<2x32xf32>
    %290 = vector.extract_strided_slice %190 {offsets = [4, 0], sizes = [2, 128], strides = [1, 1]} : vector<14x128xf32> to vector<2x128xf32>
    %291 = tpu.concatenate %289, %269 in 1 : vector<2x32xf32>, vector<2x32xf32> -> vector<2x64xf32>
    %cst_81 = arith.constant dense<0.000000e+00> : vector<2x128xf32>
    %292 = tpu.matmul %291, %10, %cst_81 {dimension_numbers = #tpu.dot_dimension_numbers<[1], [0], [0], [1], [0, 0, 1, 1], [], []>} : vector<2x64xf32>, vector<64x128xf32>, vector<2x128xf32> -> vector<2x128xf32>
    %293 = arith.addf %290, %292 : vector<2x128xf32>
    %294 = arith.negf %293 : vector<2x128xf32>
    %295 = math.exp %294 : vector<2x128xf32>
    %cst_82 = arith.constant 1.000000e+00 : f32
    %296 = vector.broadcast %cst_82 : f32 to vector<2x128xf32>
    %297 = arith.addf %296, %295 : vector<2x128xf32>
    %298 = arith.divf %296, %297 : vector<2x128xf32>
    %299 = math.tanh %293 : vector<2x128xf32>
    %300 = vector.extract_strided_slice %298 {offsets = [0, 32], sizes = [2, 32], strides = [1, 1]} : vector<2x128xf32> to vector<2x32xf32>
    %301 = arith.mulf %300, %266 : vector<2x32xf32>
    %302 = vector.extract_strided_slice %298 {offsets = [0, 0], sizes = [2, 32], strides = [1, 1]} : vector<2x128xf32> to vector<2x32xf32>
    %303 = vector.extract_strided_slice %299 {offsets = [0, 64], sizes = [2, 32], strides = [1, 1]} : vector<2x128xf32> to vector<2x32xf32>
    %304 = arith.mulf %302, %303 : vector<2x32xf32>
    %305 = arith.addf %301, %304 : vector<2x32xf32>
    %306 = vector.extract_strided_slice %298 {offsets = [0, 96], sizes = [2, 32], strides = [1, 1]} : vector<2x128xf32> to vector<2x32xf32>
    %307 = math.tanh %305 : vector<2x32xf32>
    %308 = arith.mulf %306, %307 : vector<2x32xf32>
    %cst_83 = arith.constant dense<0.000000e+00> : vector<2x32xf32>
    %309 = tpu.matmul %308, %7, %cst_83 {dimension_numbers = #tpu.dot_dimension_numbers<[1], [0], [0], [1], [0, 0, 1, 1], [], []>} : vector<2x32xf32>, vector<32x32xf32>, vector<2x32xf32> -> vector<2x32xf32>
    %310 = vector.broadcast %8 : vector<1x32xf32> to vector<2x32xf32>
    %311 = arith.addf %309, %310 : vector<2x32xf32>
    %312 = math.tanh %311 : vector<2x32xf32>
    %cst_84 = arith.constant dense<0.000000e+00> : vector<2x16xf32>
    %313 = tpu.matmul %312, %181, %cst_84 {dimension_numbers = #tpu.dot_dimension_numbers<[1], [0], [0], [1], [0, 0, 1, 1], [], []>} : vector<2x32xf32>, vector<32x16xf32>, vector<2x16xf32> -> vector<2x16xf32>
    %cst_85 = arith.constant 5.000000e-01 : f32
    %314 = vector.broadcast %cst_85 : f32 to vector<2x16xf32>
    %315 = arith.cmpf ogt, %14, %314 : vector<2x16xf32>
    %cst_86 = arith.constant -1.000000e+30 : f32
    %316 = vector.broadcast %cst_86 : f32 to vector<2x16xf32>
    %317 = arith.select %315, %313, %316 : vector<2x16xi1>, vector<2x16xf32>
    %cst_87 = arith.constant dense<0xFF800000> : vector<2xf32>
    %318 = vector.multi_reduction <maximumf>, %317, %cst_87 [1] : vector<2x16xf32> to vector<2xf32>
    %319 = vector.shape_cast %318 : vector<2xf32> to vector<2x1xf32>
    %320 = vector.broadcast %319 : vector<2x1xf32> to vector<2x16xf32>
    %321 = arith.subf %317, %320 : vector<2x16xf32>
    %322 = math.exp %321 : vector<2x16xf32>
    %cst_88 = arith.constant dense<0.000000e+00> : vector<2xf32>
    %323 = vector.multi_reduction <add>, %322, %cst_88 [1] : vector<2x16xf32> to vector<2xf32>
    %324 = vector.shape_cast %323 : vector<2xf32> to vector<2x1xf32>
    %325 = tpu.reciprocal %324 {approx = true} : vector<2x1xf32> -> vector<2x1xf32>
    %326 = vector.broadcast %325 : vector<2x1xf32> to vector<2x16xf32>
    %327 = arith.mulf %322, %326 : vector<2x16xf32>
    %cst_89 = arith.constant dense<0.000000e+00> : vector<2x32xf32>
    %328 = tpu.matmul %327, %174, %cst_89 {dimension_numbers = #tpu.dot_dimension_numbers<[1], [0], [0], [1], [0, 0, 1, 1], [], []>} : vector<2x16xf32>, vector<16x32xf32>, vector<2x32xf32> -> vector<2x32xf32>
    %329 = vector.extract_strided_slice %190 {offsets = [6, 0], sizes = [2, 128], strides = [1, 1]} : vector<14x128xf32> to vector<2x128xf32>
    %330 = tpu.concatenate %328, %308 in 1 : vector<2x32xf32>, vector<2x32xf32> -> vector<2x64xf32>
    %cst_90 = arith.constant dense<0.000000e+00> : vector<2x128xf32>
    %331 = tpu.matmul %330, %10, %cst_90 {dimension_numbers = #tpu.dot_dimension_numbers<[1], [0], [0], [1], [0, 0, 1, 1], [], []>} : vector<2x64xf32>, vector<64x128xf32>, vector<2x128xf32> -> vector<2x128xf32>
    %332 = arith.addf %329, %331 : vector<2x128xf32>
    %333 = arith.negf %332 : vector<2x128xf32>
    %334 = math.exp %333 : vector<2x128xf32>
    %cst_91 = arith.constant 1.000000e+00 : f32
    %335 = vector.broadcast %cst_91 : f32 to vector<2x128xf32>
    %336 = arith.addf %335, %334 : vector<2x128xf32>
    %337 = arith.divf %335, %336 : vector<2x128xf32>
    %338 = math.tanh %332 : vector<2x128xf32>
    %339 = vector.extract_strided_slice %337 {offsets = [0, 32], sizes = [2, 32], strides = [1, 1]} : vector<2x128xf32> to vector<2x32xf32>
    %340 = arith.mulf %339, %305 : vector<2x32xf32>
    %341 = vector.extract_strided_slice %337 {offsets = [0, 0], sizes = [2, 32], strides = [1, 1]} : vector<2x128xf32> to vector<2x32xf32>
    %342 = vector.extract_strided_slice %338 {offsets = [0, 64], sizes = [2, 32], strides = [1, 1]} : vector<2x128xf32> to vector<2x32xf32>
    %343 = arith.mulf %341, %342 : vector<2x32xf32>
    %344 = arith.addf %340, %343 : vector<2x32xf32>
    %345 = vector.extract_strided_slice %337 {offsets = [0, 96], sizes = [2, 32], strides = [1, 1]} : vector<2x128xf32> to vector<2x32xf32>
    %346 = math.tanh %344 : vector<2x32xf32>
    %347 = arith.mulf %345, %346 : vector<2x32xf32>
    %cst_92 = arith.constant dense<0.000000e+00> : vector<2x32xf32>
    %348 = tpu.matmul %347, %7, %cst_92 {dimension_numbers = #tpu.dot_dimension_numbers<[1], [0], [0], [1], [0, 0, 1, 1], [], []>} : vector<2x32xf32>, vector<32x32xf32>, vector<2x32xf32> -> vector<2x32xf32>
    %349 = vector.broadcast %8 : vector<1x32xf32> to vector<2x32xf32>
    %350 = arith.addf %348, %349 : vector<2x32xf32>
    %351 = math.tanh %350 : vector<2x32xf32>
    %cst_93 = arith.constant dense<0.000000e+00> : vector<2x16xf32>
    %352 = tpu.matmul %351, %181, %cst_93 {dimension_numbers = #tpu.dot_dimension_numbers<[1], [0], [0], [1], [0, 0, 1, 1], [], []>} : vector<2x32xf32>, vector<32x16xf32>, vector<2x16xf32> -> vector<2x16xf32>
    %cst_94 = arith.constant 5.000000e-01 : f32
    %353 = vector.broadcast %cst_94 : f32 to vector<2x16xf32>
    %354 = arith.cmpf ogt, %14, %353 : vector<2x16xf32>
    %cst_95 = arith.constant -1.000000e+30 : f32
    %355 = vector.broadcast %cst_95 : f32 to vector<2x16xf32>
    %356 = arith.select %354, %352, %355 : vector<2x16xi1>, vector<2x16xf32>
    %cst_96 = arith.constant dense<0xFF800000> : vector<2xf32>
    %357 = vector.multi_reduction <maximumf>, %356, %cst_96 [1] : vector<2x16xf32> to vector<2xf32>
    %358 = vector.shape_cast %357 : vector<2xf32> to vector<2x1xf32>
    %359 = vector.broadcast %358 : vector<2x1xf32> to vector<2x16xf32>
    %360 = arith.subf %356, %359 : vector<2x16xf32>
    %361 = math.exp %360 : vector<2x16xf32>
    %cst_97 = arith.constant dense<0.000000e+00> : vector<2xf32>
    %362 = vector.multi_reduction <add>, %361, %cst_97 [1] : vector<2x16xf32> to vector<2xf32>
    %363 = vector.shape_cast %362 : vector<2xf32> to vector<2x1xf32>
    %364 = tpu.reciprocal %363 {approx = true} : vector<2x1xf32> -> vector<2x1xf32>
    %365 = vector.broadcast %364 : vector<2x1xf32> to vector<2x16xf32>
    %366 = arith.mulf %361, %365 : vector<2x16xf32>
    %cst_98 = arith.constant dense<0.000000e+00> : vector<2x32xf32>
    %367 = tpu.matmul %366, %174, %cst_98 {dimension_numbers = #tpu.dot_dimension_numbers<[1], [0], [0], [1], [0, 0, 1, 1], [], []>} : vector<2x16xf32>, vector<16x32xf32>, vector<2x32xf32> -> vector<2x32xf32>
    %368 = vector.extract_strided_slice %190 {offsets = [8, 0], sizes = [2, 128], strides = [1, 1]} : vector<14x128xf32> to vector<2x128xf32>
    %369 = tpu.concatenate %367, %347 in 1 : vector<2x32xf32>, vector<2x32xf32> -> vector<2x64xf32>
    %cst_99 = arith.constant dense<0.000000e+00> : vector<2x128xf32>
    %370 = tpu.matmul %369, %10, %cst_99 {dimension_numbers = #tpu.dot_dimension_numbers<[1], [0], [0], [1], [0, 0, 1, 1], [], []>} : vector<2x64xf32>, vector<64x128xf32>, vector<2x128xf32> -> vector<2x128xf32>
    %371 = arith.addf %368, %370 : vector<2x128xf32>
    %372 = arith.negf %371 : vector<2x128xf32>
    %373 = math.exp %372 : vector<2x128xf32>
    %cst_100 = arith.constant 1.000000e+00 : f32
    %374 = vector.broadcast %cst_100 : f32 to vector<2x128xf32>
    %375 = arith.addf %374, %373 : vector<2x128xf32>
    %376 = arith.divf %374, %375 : vector<2x128xf32>
    %377 = math.tanh %371 : vector<2x128xf32>
    %378 = vector.extract_strided_slice %376 {offsets = [0, 32], sizes = [2, 32], strides = [1, 1]} : vector<2x128xf32> to vector<2x32xf32>
    %379 = arith.mulf %378, %344 : vector<2x32xf32>
    %380 = vector.extract_strided_slice %376 {offsets = [0, 0], sizes = [2, 32], strides = [1, 1]} : vector<2x128xf32> to vector<2x32xf32>
    %381 = vector.extract_strided_slice %377 {offsets = [0, 64], sizes = [2, 32], strides = [1, 1]} : vector<2x128xf32> to vector<2x32xf32>
    %382 = arith.mulf %380, %381 : vector<2x32xf32>
    %383 = arith.addf %379, %382 : vector<2x32xf32>
    %384 = vector.extract_strided_slice %376 {offsets = [0, 96], sizes = [2, 32], strides = [1, 1]} : vector<2x128xf32> to vector<2x32xf32>
    %385 = math.tanh %383 : vector<2x32xf32>
    %386 = arith.mulf %384, %385 : vector<2x32xf32>
    %cst_101 = arith.constant dense<0.000000e+00> : vector<2x32xf32>
    %387 = tpu.matmul %386, %7, %cst_101 {dimension_numbers = #tpu.dot_dimension_numbers<[1], [0], [0], [1], [0, 0, 1, 1], [], []>} : vector<2x32xf32>, vector<32x32xf32>, vector<2x32xf32> -> vector<2x32xf32>
    %388 = vector.broadcast %8 : vector<1x32xf32> to vector<2x32xf32>
    %389 = arith.addf %387, %388 : vector<2x32xf32>
    %390 = math.tanh %389 : vector<2x32xf32>
    %cst_102 = arith.constant dense<0.000000e+00> : vector<2x16xf32>
    %391 = tpu.matmul %390, %181, %cst_102 {dimension_numbers = #tpu.dot_dimension_numbers<[1], [0], [0], [1], [0, 0, 1, 1], [], []>} : vector<2x32xf32>, vector<32x16xf32>, vector<2x16xf32> -> vector<2x16xf32>
    %cst_103 = arith.constant 5.000000e-01 : f32
    %392 = vector.broadcast %cst_103 : f32 to vector<2x16xf32>
    %393 = arith.cmpf ogt, %14, %392 : vector<2x16xf32>
    %cst_104 = arith.constant -1.000000e+30 : f32
    %394 = vector.broadcast %cst_104 : f32 to vector<2x16xf32>
    %395 = arith.select %393, %391, %394 : vector<2x16xi1>, vector<2x16xf32>
    %cst_105 = arith.constant dense<0xFF800000> : vector<2xf32>
    %396 = vector.multi_reduction <maximumf>, %395, %cst_105 [1] : vector<2x16xf32> to vector<2xf32>
    %397 = vector.shape_cast %396 : vector<2xf32> to vector<2x1xf32>
    %398 = vector.broadcast %397 : vector<2x1xf32> to vector<2x16xf32>
    %399 = arith.subf %395, %398 : vector<2x16xf32>
    %400 = math.exp %399 : vector<2x16xf32>
    %cst_106 = arith.constant dense<0.000000e+00> : vector<2xf32>
    %401 = vector.multi_reduction <add>, %400, %cst_106 [1] : vector<2x16xf32> to vector<2xf32>
    %402 = vector.shape_cast %401 : vector<2xf32> to vector<2x1xf32>
    %403 = tpu.reciprocal %402 {approx = true} : vector<2x1xf32> -> vector<2x1xf32>
    %404 = vector.broadcast %403 : vector<2x1xf32> to vector<2x16xf32>
    %405 = arith.mulf %400, %404 : vector<2x16xf32>
    %cst_107 = arith.constant dense<0.000000e+00> : vector<2x32xf32>
    %406 = tpu.matmul %405, %174, %cst_107 {dimension_numbers = #tpu.dot_dimension_numbers<[1], [0], [0], [1], [0, 0, 1, 1], [], []>} : vector<2x16xf32>, vector<16x32xf32>, vector<2x32xf32> -> vector<2x32xf32>
    %407 = vector.extract_strided_slice %190 {offsets = [10, 0], sizes = [2, 128], strides = [1, 1]} : vector<14x128xf32> to vector<2x128xf32>
    %408 = tpu.concatenate %406, %386 in 1 : vector<2x32xf32>, vector<2x32xf32> -> vector<2x64xf32>
    %cst_108 = arith.constant dense<0.000000e+00> : vector<2x128xf32>
    %409 = tpu.matmul %408, %10, %cst_108 {dimension_numbers = #tpu.dot_dimension_numbers<[1], [0], [0], [1], [0, 0, 1, 1], [], []>} : vector<2x64xf32>, vector<64x128xf32>, vector<2x128xf32> -> vector<2x128xf32>
    %410 = arith.addf %407, %409 : vector<2x128xf32>
    %411 = arith.negf %410 : vector<2x128xf32>
    %412 = math.exp %411 : vector<2x128xf32>
    %cst_109 = arith.constant 1.000000e+00 : f32
    %413 = vector.broadcast %cst_109 : f32 to vector<2x128xf32>
    %414 = arith.addf %413, %412 : vector<2x128xf32>
    %415 = arith.divf %413, %414 : vector<2x128xf32>
    %416 = math.tanh %410 : vector<2x128xf32>
    %417 = vector.extract_strided_slice %415 {offsets = [0, 32], sizes = [2, 32], strides = [1, 1]} : vector<2x128xf32> to vector<2x32xf32>
    %418 = arith.mulf %417, %383 : vector<2x32xf32>
    %419 = vector.extract_strided_slice %415 {offsets = [0, 0], sizes = [2, 32], strides = [1, 1]} : vector<2x128xf32> to vector<2x32xf32>
    %420 = vector.extract_strided_slice %416 {offsets = [0, 64], sizes = [2, 32], strides = [1, 1]} : vector<2x128xf32> to vector<2x32xf32>
    %421 = arith.mulf %419, %420 : vector<2x32xf32>
    %422 = arith.addf %418, %421 : vector<2x32xf32>
    %423 = vector.extract_strided_slice %415 {offsets = [0, 96], sizes = [2, 32], strides = [1, 1]} : vector<2x128xf32> to vector<2x32xf32>
    %424 = math.tanh %422 : vector<2x32xf32>
    %425 = arith.mulf %423, %424 : vector<2x32xf32>
    %cst_110 = arith.constant dense<0.000000e+00> : vector<2x32xf32>
    %426 = tpu.matmul %425, %7, %cst_110 {dimension_numbers = #tpu.dot_dimension_numbers<[1], [0], [0], [1], [0, 0, 1, 1], [], []>} : vector<2x32xf32>, vector<32x32xf32>, vector<2x32xf32> -> vector<2x32xf32>
    %427 = vector.broadcast %8 : vector<1x32xf32> to vector<2x32xf32>
    %428 = arith.addf %426, %427 : vector<2x32xf32>
    %429 = math.tanh %428 : vector<2x32xf32>
    %cst_111 = arith.constant dense<0.000000e+00> : vector<2x16xf32>
    %430 = tpu.matmul %429, %181, %cst_111 {dimension_numbers = #tpu.dot_dimension_numbers<[1], [0], [0], [1], [0, 0, 1, 1], [], []>} : vector<2x32xf32>, vector<32x16xf32>, vector<2x16xf32> -> vector<2x16xf32>
    %cst_112 = arith.constant 5.000000e-01 : f32
    %431 = vector.broadcast %cst_112 : f32 to vector<2x16xf32>
    %432 = arith.cmpf ogt, %14, %431 : vector<2x16xf32>
    %cst_113 = arith.constant -1.000000e+30 : f32
    %433 = vector.broadcast %cst_113 : f32 to vector<2x16xf32>
    %434 = arith.select %432, %430, %433 : vector<2x16xi1>, vector<2x16xf32>
    %cst_114 = arith.constant dense<0xFF800000> : vector<2xf32>
    %435 = vector.multi_reduction <maximumf>, %434, %cst_114 [1] : vector<2x16xf32> to vector<2xf32>
    %436 = vector.shape_cast %435 : vector<2xf32> to vector<2x1xf32>
    %437 = vector.broadcast %436 : vector<2x1xf32> to vector<2x16xf32>
    %438 = arith.subf %434, %437 : vector<2x16xf32>
    %439 = math.exp %438 : vector<2x16xf32>
    %cst_115 = arith.constant dense<0.000000e+00> : vector<2xf32>
    %440 = vector.multi_reduction <add>, %439, %cst_115 [1] : vector<2x16xf32> to vector<2xf32>
    %441 = vector.shape_cast %440 : vector<2xf32> to vector<2x1xf32>
    %442 = tpu.reciprocal %441 {approx = true} : vector<2x1xf32> -> vector<2x1xf32>
    %443 = vector.broadcast %442 : vector<2x1xf32> to vector<2x16xf32>
    %444 = arith.mulf %439, %443 : vector<2x16xf32>
    %cst_116 = arith.constant dense<0.000000e+00> : vector<2x32xf32>
    %445 = tpu.matmul %444, %174, %cst_116 {dimension_numbers = #tpu.dot_dimension_numbers<[1], [0], [0], [1], [0, 0, 1, 1], [], []>} : vector<2x16xf32>, vector<16x32xf32>, vector<2x32xf32> -> vector<2x32xf32>
    %446 = vector.extract_strided_slice %190 {offsets = [12, 0], sizes = [2, 128], strides = [1, 1]} : vector<14x128xf32> to vector<2x128xf32>
    %447 = tpu.concatenate %445, %425 in 1 : vector<2x32xf32>, vector<2x32xf32> -> vector<2x64xf32>
    %cst_117 = arith.constant dense<0.000000e+00> : vector<2x128xf32>
    %448 = tpu.matmul %447, %10, %cst_117 {dimension_numbers = #tpu.dot_dimension_numbers<[1], [0], [0], [1], [0, 0, 1, 1], [], []>} : vector<2x64xf32>, vector<64x128xf32>, vector<2x128xf32> -> vector<2x128xf32>
    %449 = arith.addf %446, %448 : vector<2x128xf32>
    %450 = arith.negf %449 : vector<2x128xf32>
    %451 = math.exp %450 : vector<2x128xf32>
    %cst_118 = arith.constant 1.000000e+00 : f32
    %452 = vector.broadcast %cst_118 : f32 to vector<2x128xf32>
    %453 = arith.addf %452, %451 : vector<2x128xf32>
    %454 = arith.divf %452, %453 : vector<2x128xf32>
    %455 = math.tanh %449 : vector<2x128xf32>
    %456 = vector.extract_strided_slice %454 {offsets = [0, 32], sizes = [2, 32], strides = [1, 1]} : vector<2x128xf32> to vector<2x32xf32>
    %457 = arith.mulf %456, %422 : vector<2x32xf32>
    %458 = vector.extract_strided_slice %454 {offsets = [0, 0], sizes = [2, 32], strides = [1, 1]} : vector<2x128xf32> to vector<2x32xf32>
    %459 = vector.extract_strided_slice %455 {offsets = [0, 64], sizes = [2, 32], strides = [1, 1]} : vector<2x128xf32> to vector<2x32xf32>
    %460 = arith.mulf %458, %459 : vector<2x32xf32>
    %461 = arith.addf %457, %460 : vector<2x32xf32>
    %462 = vector.extract_strided_slice %454 {offsets = [0, 96], sizes = [2, 32], strides = [1, 1]} : vector<2x128xf32> to vector<2x32xf32>
    %463 = math.tanh %461 : vector<2x32xf32>
    %464 = arith.mulf %462, %463 : vector<2x32xf32>
    %465 = tpu.concatenate %230, %269, %308, %347, %386, %425, %464 in 0 : vector<2x32xf32>, vector<2x32xf32>, vector<2x32xf32>, vector<2x32xf32>, vector<2x32xf32>, vector<2x32xf32>, vector<2x32xf32> -> vector<14x32xf32>
    %cst_119 = arith.constant dense<0.000000e+00> : vector<14x48xf32>
    %466 = tpu.matmul %465, %12, %cst_119 {dimension_numbers = #tpu.dot_dimension_numbers<[1], [0], [0], [1], [0, 0, 1, 1], [], []>} : vector<14x32xf32>, vector<32x48xf32>, vector<14x48xf32> -> vector<14x48xf32>
    %467 = vector.broadcast %13 : vector<1x48xf32> to vector<14x48xf32>
    %468 = arith.addf %466, %467 : vector<14x48xf32>
    %c0_120 = arith.constant 0 : index
    %c0_121 = arith.constant 0 : index
    %469 = vector.load %arg2[%c0_120, %c0_121] : memref<14x1xi32, #tpu.memory_space<vmem>>, vector<14x1xi32>
    %c-1_i32 = arith.constant -1 : i32
    %470 = vector.broadcast %c-1_i32 : i32 to vector<14x1xi32>
    %471 = arith.cmpi ne, %469, %470 : vector<14x1xi32>
    %c0_i32 = arith.constant 0 : i32
    %472 = vector.broadcast %c0_i32 : i32 to vector<14x1xi32>
    %473 = arith.select %471, %469, %472 : vector<14x1xi1>, vector<14x1xi32>
    %474 = tpu.iota {dimensions = array<i32: 1>} : vector<14x48xi32>
    %475 = vector.broadcast %473 : vector<14x1xi32> to vector<14x48xi32>
    %476 = arith.cmpi eq, %474, %475 : vector<14x48xi32>
    %477 = arith.extui %476 : vector<14x48xi1> to vector<14x48xi32>
    %478 = arith.sitofp %477 : vector<14x48xi32> to vector<14x48xf32>
    %479 = arith.mulf %468, %478 : vector<14x48xf32>
    %cst_122 = arith.constant dense<0.000000e+00> : vector<14xf32>
    %480 = vector.multi_reduction <add>, %479, %cst_122 [1] : vector<14x48xf32> to vector<14xf32>
    %481 = vector.shape_cast %480 : vector<14xf32> to vector<14x1xf32>
    %cst_123 = arith.constant dense<0xFF800000> : vector<14xf32>
    %482 = vector.multi_reduction <maximumf>, %468, %cst_123 [1] : vector<14x48xf32> to vector<14xf32>
    %483 = vector.shape_cast %482 : vector<14xf32> to vector<14x1xf32>
    %484 = vector.broadcast %483 : vector<14x1xf32> to vector<14x48xf32>
    %485 = arith.subf %468, %484 : vector<14x48xf32>
    %486 = math.exp %485 : vector<14x48xf32>
    %cst_124 = arith.constant dense<0.000000e+00> : vector<14xf32>
    %487 = vector.multi_reduction <add>, %486, %cst_124 [1] : vector<14x48xf32> to vector<14xf32>
    %488 = vector.shape_cast %487 : vector<14xf32> to vector<14x1xf32>
    %489 = math.log %488 : vector<14x1xf32>
    %490 = arith.addf %483, %489 : vector<14x1xf32>
    %491 = arith.extui %471 : vector<14x1xi1> to vector<14x1xi32>
    %492 = arith.sitofp %491 : vector<14x1xi32> to vector<14x1xf32>
    %493 = arith.subf %490, %481 : vector<14x1xf32>
    %494 = arith.mulf %493, %492 : vector<14x1xf32>
    %495 = vector.shape_cast %494 : vector<14x1xf32> to vector<1x14x1xf32>
    %cst_125 = arith.constant dense<0.000000e+00> : vector<1xf32>
    %496 = vector.multi_reduction <add>, %495, %cst_125 [1, 2] : vector<1x14x1xf32> to vector<1xf32>
    %497 = vector.shape_cast %496 : vector<1xf32> to vector<1x1x1xf32>
    %498 = vector.extract %497[0, 0, 0] : f32 from vector<1x1x1xf32>
    %499 = vector.broadcast %498 : f32 to vector<1x1xf32>
    %500 = vector.shape_cast %492 : vector<14x1xf32> to vector<1x14x1xf32>
    %cst_126 = arith.constant dense<0.000000e+00> : vector<1xf32>
    %501 = vector.multi_reduction <add>, %500, %cst_126 [1, 2] : vector<1x14x1xf32> to vector<1xf32>
    %502 = vector.shape_cast %501 : vector<1xf32> to vector<1x1x1xf32>
    %503 = vector.extract %502[0, 0, 0] : f32 from vector<1x1x1xf32>
    %504 = vector.broadcast %503 : f32 to vector<1x1xf32>
    %505 = arith.divf %499, %504 : vector<1x1xf32>
    %cst_127 = arith.constant 2.000000e+00 : f32
    %506 = vector.broadcast %cst_127 : f32 to vector<1x1xf32>
    %507 = arith.subf %504, %506 : vector<1x1xf32>
    %cst_128 = arith.constant 2.000000e+00 : f32
    %508 = vector.broadcast %cst_128 : f32 to vector<1x1xf32>
    %509 = arith.divf %507, %508 : vector<1x1xf32>
    %510 = arith.mulf %505, %509 : vector<1x1xf32>
    %c0_129 = arith.constant 0 : index
    %c0_130 = arith.constant 0 : index
    %511 = vector.load %arg18[%c0_129, %c0_130] : memref<1x1xf32, #tpu.memory_space<vmem>>, vector<1x1xf32>
    tpu.vector_store %arg18[%c0_129, %c0_130], %510 {strides = array<i32>} : memref<1x1xf32, #tpu.memory_space<vmem>>, vector<1x1xf32>,
    return
  }
}

</mosaic_0001>

<llo_original>
// kernel: eq.15
$region0: #{eq.15}
  %s0 = inlined_call_operand.vmem [shape: s32[8,2], index: 0, kind: input, shape index: {}]
  %s1 = inlined_call_operand.vmem [shape: s32[16], index: 1, kind: output, shape index: {}]
  $region1: #{eq.15} parent=0
    #allocation0 [shape = 'u8[4096]{0}', space=vmem, size = 0x1000, scoped, tag = 'scoped mem for output reshape']
    %v2 = vld [vmem:[%s0] sm:$0x1]
    %vm3 = vcmask 15360
    %4 = vst.msk [vmem:[#allocation0] sm:$0x1] %vm3, %v2
    %s5 = scalar_lea.vmem %s0, 7
    %v6 = vld [vmem:[%s5] sm:$0x1]
    %7 = vrot.lane.b32.xlu0 %v6, 14
    %v8 = vpop.permute.xlu0 %7
    %vm9 = vcmask 130160
    %10 = vst.msk [vmem:[#allocation0] sm:$0x1] %vm9, %v8
    %s11 = scalar_lea.vmem %s0, 6
    %v12 = vld [vmem:[%s11] sm:$0x1]
    %13 = vrot.lane.b32.xlu0 %v12, 12
    %v14 = vpop.permute.xlu0 %13
    %vm15 = vcmask 113760
    %16 = vst.msk [vmem:[#allocation0] sm:$0x1] %vm15, %v14
    %s17 = scalar_lea.vmem %s0, 5
    %v18 = vld [vmem:[%s17] sm:$0x1]
    %19 = vrot.lane.b32.xlu0 %v18, 10
    %v20 = vpop.permute.xlu0 %19
    %vm21 = vcmask 97360
    %22 = vst.msk [vmem:[#allocation0] sm:$0x1] %vm21, %v20
    %s23 = scalar_lea.vmem %s0, 4
    %v24 = vld [vmem:[%s23] sm:$0x1]
    %25 = vrot.lane.b32.xlu0 %v24, 8
    %v26 = vpop.permute.xlu0 %25
    %vm27 = vcmask 80960
    %28 = vst.msk [vmem:[#allocation0] sm:$0x1] %vm27, %v26
    %s29 = scalar_lea.vmem %s0, 3
    %v30 = vld [vmem:[%s29] sm:$0x1]
    %31 = vrot.lane.b32.xlu0 %v30, 6
    %v32 = vpop.permute.xlu0 %31
    %vm33 = vcmask 64560
    %34 = vst.msk [vmem:[#allocation0] sm:$0x1] %vm33, %v32
    %s35 = scalar_lea.vmem %s0, 2
    %v36 = vld [vmem:[%s35] sm:$0x1]
    %37 = vrot.lane.b32.xlu0 %v36, 4
    %v38 = vpop.permute.xlu0 %37
    %vm39 = vcmask 48160
    %40 = vst.msk [vmem:[#allocation0] sm:$0x1] %vm39, %v38
    %s41 = scalar_lea.vmem %s0, 1
    %v42 = vld [vmem:[%s41] sm:$0x1]
    %43 = vrot.lane.b32.xlu0 %v42, 2
    %v44 = vpop.permute.xlu0 %43
    %vm45 = vcmask 31760
    %46 = vst.msk [vmem:[#allocation0] sm:$0x1] %vm45, %v44
    %s48 = sshllo.u32 0, 1
    %v50 = vld [vmem:[#allocation0] sm:%s48]
    %s51 = sshllo.u32 0, 1
    %52 = vst [vmem:[%s1] sm:%s51] %v50

// kernel: e2e_forward.1
$region0: #{e2e_forward.1}
  #allocation0 [shape = 'u32[]', space=smem, size = 0x4, offset = 0x4, fixed_abs, tag = 'smem constant byte address 0x4 - core index']
  #allocation1 [shape = 'u32[144,128]{1,0:T(1,128)}', space=vmem, size = 0x12000, scoped, tag = 'internal scratch']
  %s0 = inlined_call_operand.vmem [shape: s32[16,1], index: 0, kind: input, shape index: {}]
  %s1 = inlined_call_operand.vmem [shape: s32[14,1], index: 1, kind: input, shape index: {}]
  %s2 = inlined_call_operand.vmem [shape: s32[14,1], index: 2, kind: input, shape index: {}]
  %s3 = inlined_call_operand.vmem [shape: f32[2,16], index: 3, kind: input, shape index: {}]
  %s4 = inlined_call_operand.vmem [shape: f32[64,128], index: 4, kind: input, shape index: {}]
  %s5 = inlined_call_operand.hbm [shape: f32[32,128], index: 5, kind: input, shape index: {}]
  %s6 = inlined_call_operand.vmem [shape: f32[1,128], index: 6, kind: input, shape index: {}]
  %s7 = inlined_call_operand.hbm [shape: f32[32,32], index: 7, kind: input, shape index: {}]
  %s8 = inlined_call_operand.vmem [shape: f32[1,32], index: 8, kind: input, shape index: {}]
  %s9 = inlined_call_operand.hbm [shape: f32[32,32], index: 9, kind: input, shape index: {}]
  %s10 = inlined_call_operand.hbm [shape: f32[1,32], index: 10, kind: input, shape index: {}]
  %s11 = inlined_call_operand.hbm [shape: f32[32,32], index: 11, kind: input, shape index: {}]
  %s12 = inlined_call_operand.hbm [shape: f32[1,32], index: 12, kind: input, shape index: {}]
  %s13 = inlined_call_operand.vmem [shape: f32[64,128], index: 13, kind: input, shape index: {}]
  %s14 = inlined_call_operand.vmem [shape: f32[64,128], index: 14, kind: input, shape index: {}]
  %s15 = inlined_call_operand.hbm [shape: f32[1,128], index: 15, kind: input, shape index: {}]
  %s16 = inlined_call_operand.hbm [shape: f32[32,48], index: 16, kind: input, shape index: {}]
  %s17 = inlined_call_operand.hbm [shape: f32[1,48], index: 17, kind: input, shape index: {}]
  %s18 = inlined_call_operand.hbm [shape: f32[1,1], index: 18, kind: output, shape index: {}]
  %s19 = sld [smem:[#allocation0]]
  $region118: #{e2e_forward.1} parent=0
    _
  %s21 = ssub.s32 1, %s19
  %s22 = scalar_select 0, %s21, %s19
  $region1: #{e2e_forward.1} parent=0
    #allocation2 [shape = 'u8[16384]{0}', space=vmem, size = 0x4000, scoped, tag = 'input window, operand 5, single buffered']
    #allocation3 [shape = 's32[1]{0}', space=sflag, size = 0x4, scoped, tag = 'scoped memory for e2e_forward.1']
    #allocation4 [shape = 's32[1]{0}', space=sflag, size = 0x4, scoped, tag = 'scoped memory for e2e_forward.1']
    #allocation5 [shape = 'u8[16384]{0}', space=vmem, size = 0x4000, scoped, tag = 'input window, operand 7, single buffered']
    #allocation6 [shape = 's32[1]{0}', space=sflag, size = 0x4, scoped, tag = 'scoped memory for e2e_forward.1']
    #allocation7 [shape = 'u8[16384]{0}', space=vmem, size = 0x4000, scoped, tag = 'input window, operand 9, single buffered']
    #allocation8 [shape = 'u8[512]{0}', space=vmem, size = 0x400, scoped, tag = 'input window, operand 10, single buffered']
    #allocation9 [shape = 's32[1]{0}', space=sflag, size = 0x4, scoped, tag = 'scoped memory for e2e_forward.1']
    #allocation10 [shape = 'u8[16384]{0}', space=vmem, size = 0x4000, scoped, tag = 'input window, operand 11, single buffered']
    #allocation11 [shape = 'u8[512]{0}', space=vmem, size = 0x400, scoped, tag = 'input window, operand 12, single buffered']
    #allocation12 [shape = 's32[1]{0}', space=sflag, size = 0x4, scoped, tag = 'scoped memory for e2e_forward.1']
    #allocation13 [shape = 'u8[512]{0}', space=vmem, size = 0x400, scoped, tag = 'input window, operand 15, single buffered']
    #allocation14 [shape = 'u8[16384]{0}', space=vmem, size = 0x4000, scoped, tag = 'input window, operand 16, single buffered']
    #allocation15 [shape = 's32[1]{0}', space=sflag, size = 0x4, scoped, tag = 'scoped memory for e2e_forward.1']
    #allocation16 [shape = 'u8[512]{0}', space=vmem, size = 0x400, scoped, tag = 'input window, operand 17, single buffered']
    #allocation17 [shape = 'u8[512]{0}', space=vmem, size = 0x400, scoped, tag = 'output window, operand 0, single buffered']
    %23 = vsyncpa [#allocation3], 0
    %24 = vsyncpa [#allocation6], 0
    %25 = vsyncpa [#allocation9], 0
    %26 = vsyncpa [#allocation12], 0
    %27 = vsyncpa [#allocation15], 0
    %28 = vsyncpa [#allocation4], 0
    // Predicated region
    $region2: #{e2e_forward.1} parent=1 // pred_check
      _
    $region3: #{e2e_forward.1} parent=1 // pred_check_branch
      %30 = sbr.rel (0) target = $region5
    $region4: #{e2e_forward.1} parent=1 // pred_region
      _
    $region5: #{e2e_forward.1} parent=1 // pred_fallthru
      _
    // Predicated region
    $region6: #{e2e_forward.1} parent=1 // pred_check
      _
    $region7: #{e2e_forward.1} parent=1 // pred_check_branch
      %32 = sbr.rel (0) target = $region9
    $region8: #{e2e_forward.1} parent=1 // pred_region
      _
    $region9: #{e2e_forward.1} parent=1 // pred_fallthru
      _
    // Predicated region
    $region10: #{e2e_forward.1} parent=1 // pred_check
      _
    $region11: #{e2e_forward.1} parent=1 // pred_check_branch
      %34 = sbr.rel (0) target = $region13
    $region12: #{e2e_forward.1} parent=1 // pred_region
      _
    $region13: #{e2e_forward.1} parent=1 // pred_fallthru
      _
    // Predicated region
    $region14: #{e2e_forward.1} parent=1 // pred_check
      _
    $region15: #{e2e_forward.1} parent=1 // pred_check_branch
      %36 = sbr.rel (0) target = $region17
    $region16: #{e2e_forward.1} parent=1 // pred_region
      _
    $region17: #{e2e_forward.1} parent=1 // pred_fallthru
      _
    // Predicated region
    $region18: #{e2e_forward.1} parent=1 // pred_check
      _
    $region19: #{e2e_forward.1} parent=1 // pred_check_branch
      %38 = sbr.rel (0) target = $region21
    $region20: #{e2e_forward.1} parent=1 // pred_region
      _
    $region21: #{e2e_forward.1} parent=1 // pred_fallthru
      _
    // Predicated region
    $region22: #{e2e_forward.1} parent=1 // pred_check
      _
    $region23: #{e2e_forward.1} parent=1 // pred_check_branch
      %40 = sbr.rel (0) target = $region25
    $region24: #{e2e_forward.1} parent=1 // pred_region
      %s42 = ssub.s32 512, 512
      %43 = vsyncadd [#allocation3], %s42
      %s44 = sshll.u32 [#allocation2], 4
      %s45 = int_to_ptr.vmem [resolvable:$true] %s44
      %50 = dma.hbm_to_vmem [thread:$0]  %s5, 512, %s45, [#allocation3], 128, 128, 8
    $region25: #{e2e_forward.1} parent=1 // pred_fallthru
      _
    // Predicated region
    $region26: #{e2e_forward.1} parent=1 // pred_check
      _
    $region27: #{e2e_forward.1} parent=1 // pred_check_branch
      %52 = sbr.rel (0) target = $region29
    $region28: #{e2e_forward.1} parent=1 // pred_region
      _
    $region29: #{e2e_forward.1} parent=1 // pred_fallthru
      _
    // Predicated region
    $region30: #{e2e_forward.1} parent=1 // pred_check
      _
    $region31: #{e2e_forward.1} parent=1 // pred_check_branch
      %54 = sbr.rel (0) target = $region33
    $region32: #{e2e_forward.1} parent=1 // pred_region
      %s56 = ssub.s32 512, 512
      %57 = vsyncadd [#allocation6], %s56
      %s58 = sshll.u32 [#allocation5], 4
      %s59 = int_to_ptr.vmem [resolvable:$true] %s58
      %64 = dma.hbm_to_vmem [thread:$0]  %s7, 512, %s59, [#allocation6], 128, 128, 8
    $region33: #{e2e_forward.1} parent=1 // pred_fallthru
      _
    // Predicated region
    $region34: #{e2e_forward.1} parent=1 // pred_check
      _
    $region35: #{e2e_forward.1} parent=1 // pred_check_branch
      %66 = sbr.rel (0) target = $region37
    $region36: #{e2e_forward.1} parent=1 // pred_region
      _
    $region37: #{e2e_forward.1} parent=1 // pred_fallthru
      _
    // Predicated region
    $region38: #{e2e_forward.1} parent=1 // pred_check
      _
    $region39: #{e2e_forward.1} parent=1 // pred_check_branch
      %68 = sbr.rel (0) target = $region41
    $region40: #{e2e_forward.1} parent=1 // pred_region
      %s70 = ssub.s32 512, 512
      %71 = vsyncadd [#allocation6], %s70
      %s72 = sshll.u32 [#allocation7], 4
      %s73 = int_to_ptr.vmem [resolvable:$true] %s72
      %78 = dma.hbm_to_vmem [thread:$0]  %s9, 512, %s73, [#allocation6], 128, 128, 8
    $region41: #{e2e_forward.1} parent=1 // pred_fallthru
      _
    // Predicated region
    $region42: #{e2e_forward.1} parent=1 // pred_check
      _
    $region43: #{e2e_forward.1} parent=1 // pred_check_branch
      %80 = sbr.rel (0) target = $region45
    $region44: #{e2e_forward.1} parent=1 // pred_region
      %s82 = ssub.s32 16, 16
      %83 = vsyncadd [#allocation9], %s82
      %s85 = sshll.u32 [#allocation8], 4
      %s86 = int_to_ptr.vmem [resolvable:$true] %s85
      %88 = dma.hbm_to_vmem [thread:$0]  %s10, 16, %s86, [#allocation9]
    $region45: #{e2e_forward.1} parent=1 // pred_fallthru
      _
    // Predicated region
    $region46: #{e2e_forward.1} parent=1 // pred_check
      _
    $region47: #{e2e_forward.1} parent=1 // pred_check_branch
      %90 = sbr.rel (0) target = $region49
    $region48: #{e2e_forward.1} parent=1 // pred_region
      %s92 = ssub.s32 512, 512
      %93 = vsyncadd [#allocation9], %s92
      %s94 = sshll.u32 [#allocation10], 4
      %s95 = int_to_ptr.vmem [resolvable:$true] %s94
      %100 = dma.hbm_to_vmem [thread:$0]  %s11, 512, %s95, [#allocation9], 128, 128, 8
    $region49: #{e2e_forward.1} parent=1 // pred_fallthru
      _
    // Predicated region
    $region50: #{e2e_forward.1} parent=1 // pred_check
      _
    $region51: #{e2e_forward.1} parent=1 // pred_check_branch
      %102 = sbr.rel (0) target = $region53
    $region52: #{e2e_forward.1} parent=1 // pred_region
      %s104 = ssub.s32 16, 16
      %105 = vsyncadd [#allocation12], %s104
      %s107 = sshll.u32 [#allocation11], 4
      %s108 = int_to_ptr.vmem [resolvable:$true] %s107
      %110 = dma.hbm_to_vmem [thread:$0]  %s12, 16, %s108, [#allocation12]
    $region53: #{e2e_forward.1} parent=1 // pred_fallthru
      _
    // Predicated region
    $region54: #{e2e_forward.1} parent=1 // pred_check
      _
    $region55: #{e2e_forward.1} parent=1 // pred_check_branch
      %112 = sbr.rel (0) target = $region57
    $region56: #{e2e_forward.1} parent=1 // pred_region
      _
    $region57: #{e2e_forward.1} parent=1 // pred_fallthru
      _
    // Predicated region
    $region58: #{e2e_forward.1} parent=1 // pred_check
      _
    $region59: #{e2e_forward.1} parent=1 // pred_check_branch
      %114 = sbr.rel (0) target = $region61
    $region60: #{e2e_forward.1} parent=1 // pred_region
      _
    $region61: #{e2e_forward.1} parent=1 // pred_fallthru
      _
    // Predicated region
    $region62: #{e2e_forward.1} parent=1 // pred_check
      _
    $region63: #{e2e_forward.1} parent=1 // pred_check_branch
      %116 = sbr.rel (0) target = $region65
    $region64: #{e2e_forward.1} parent=1 // pred_region
      %s118 = ssub.s32 16, 16
      %119 = vsyncadd [#allocation12], %s118
      %s121 = sshll.u32 [#allocation13], 4
      %s122 = int_to_ptr.vmem [resolvable:$true] %s121
      %124 = dma.hbm_to_vmem [thread:$0]  %s15, 16, %s122, [#allocation12]
    $region65: #{e2e_forward.1} parent=1 // pred_fallthru
      _
    // Predicated region
    $region66: #{e2e_forward.1} parent=1 // pred_check
      _
    $region67: #{e2e_forward.1} parent=1 // pred_check_branch
      %126 = sbr.rel (0) target = $region69
    $region68: #{e2e_forward.1} parent=1 // pred_region
      %s128 = ssub.s32 512, 512
      %129 = vsyncadd [#allocation15], %s128
      %s130 = sshll.u32 [#allocation14], 4
      %s131 = int_to_ptr.vmem [resolvable:$true] %s130
      %136 = dma.hbm_to_vmem [thread:$0]  %s16, 512, %s131, [#allocation15], 128, 128, 8
    $region69: #{e2e_forward.1} parent=1 // pred_fallthru
      _
    // Predicated region
    $region70: #{e2e_forward.1} parent=1 // pred_check
      _
    $region71: #{e2e_forward.1} parent=1 // pred_check_branch
      %138 = sbr.rel (0) target = $region73
    $region72: #{e2e_forward.1} parent=1 // pred_region
      %s140 = ssub.s32 16, 16
      %141 = vsyncadd [#allocation15], %s140
      %s143 = sshll.u32 [#allocation16], 4
      %s144 = int_to_ptr.vmem [resolvable:$true] %s143
      %146 = dma.hbm_to_vmem [thread:$0]  %s17, 16, %s144, [#allocation15]
    $region73: #{e2e_forward.1} parent=1 // pred_fallthru
      _
    // Predicated region
    $region74: #{e2e_forward.1} parent=1 // pred_check
      _
    $region75: #{e2e_forward.1} parent=1 // pred_check_branch
      %148 = sbr.rel (0) target = $region77
    $region76: #{e2e_forward.1} parent=1 // pred_region
      %149 = dma.done [#allocation3], 512
    $region77: #{e2e_forward.1} parent=1 // pred_fallthru
      _
    // Predicated region
    $region78: #{e2e_forward.1} parent=1 // pred_check
      _
    $region79: #{e2e_forward.1} parent=1 // pred_check_branch
      %151 = sbr.rel (0) target = $region81
    $region80: #{e2e_forward.1} parent=1 // pred_region
      %152 = dma.done [#allocation6], 512
    $region81: #{e2e_forward.1} parent=1 // pred_fallthru
      _
    // Predicated region
    $region82: #{e2e_forward.1} parent=1 // pred_check
      _
    $region83: #{e2e_forward.1} parent=1 // pred_check_branch
      %154 = sbr.rel (0) target = $region85
    $region84: #{e2e_forward.1} parent=1 // pred_region
      %155 = dma.done [#allocation6], 512
    $region85: #{e2e_forward.1} parent=1 // pred_fallthru
      _
    // Predicated region
    $region86: #{e2e_forward.1} parent=1 // pred_check
      _
    $region87: #{e2e_forward.1} parent=1 // pred_check_branch
      %157 = sbr.rel (0) target = $region89
    $region88: #{e2e_forward.1} parent=1 // pred_region
      %158 = dma.done [#allocation9], 16
    $region89: #{e2e_forward.1} parent=1 // pred_fallthru
      _
    // Predicated region
    $region90: #{e2e_forward.1} parent=1 // pred_check
      _
    $region91: #{e2e_forward.1} parent=1 // pred_check_branch
      %160 = sbr.rel (0) target = $region93
    $region92: #{e2e_forward.1} parent=1 // pred_region
      %161 = dma.done [#allocation9], 512
    $region93: #{e2e_forward.1} parent=1 // pred_fallthru
      _
    // Predicated region
    $region94: #{e2e_forward.1} parent=1 // pred_check
      _
    $region95: #{e2e_forward.1} parent=1 // pred_check_branch
      %163 = sbr.rel (0) target = $region97
    $region96: #{e2e_forward.1} parent=1 // pred_region
      %164 = dma.done [#allocation12], 16
    $region97: #{e2e_forward.1} parent=1 // pred_fallthru
      _
    // Predicated region
    $region98: #{e2e_forward.1} parent=1 // pred_check
      _
    $region99: #{e2e_forward.1} parent=1 // pred_check_branch
      %166 = sbr.rel (0) target = $region101
    $region100: #{e2e_forward.1} parent=1 // pred_region
      %167 = dma.done [#allocation12], 16
    $region101: #{e2e_forward.1} parent=1 // pred_fallthru
      _
    // Predicated region
    $region102: #{e2e_forward.1} parent=1 // pred_check
      _
    $region103: #{e2e_forward.1} parent=1 // pred_check_branch
      %169 = sbr.rel (0) target = $region105
    $region104: #{e2e_forward.1} parent=1 // pred_region
      %170 = dma.done [#allocation15], 512
    $region105: #{e2e_forward.1} parent=1 // pred_fallthru
      _
    // Predicated region
    $region106: #{e2e_forward.1} parent=1 // pred_check
      _
    $region107: #{e2e_forward.1} parent=1 // pred_check_branch
      %172 = sbr.rel (0) target = $region109
    $region108: #{e2e_forward.1} parent=1 // pred_region
      %173 = dma.done [#allocation15], 16
    $region109: #{e2e_forward.1} parent=1 // pred_fallthru
      _
    %v174 = vld [vmem:[%s4] sm:$0xff]
    %v175 = vld [vmem:[%s4 + $0x8] sm:$0xff]
    %v176 = vld [vmem:[%s4 + $0x10] sm:$0xff]
    %v177 = vld [vmem:[%s4 + $0x18] sm:$0xff]
    %v178 = vld [vmem:[%s4 + $0x20] sm:$0xff]
    %v179 = vld [vmem:[%s4 + $0x28] sm:$0xff]
    %v180 = vld [vmem:[%s4 + $0x30] sm:$0xff]
    %v181 = vld [vmem:[%s4 + $0x38] sm:$0xff]
    %v182 = vld [vmem:[#allocation2] sm:$0xff]
    %v183 = vld [vmem:[#allocation2 + $0x8] sm:$0xff]
    %v184 = vld [vmem:[#allocation2 + $0x10] sm:$0xff]
    %v185 = vld [vmem:[#allocation2 + $0x18] sm:$0xff]
    %v186 = vld [vmem:[%s6] sm:$0x1]
    %v187 = vld [vmem:[#allocation5] sm:$0xff]
    %v188 = vld [vmem:[#allocation5 + $0x8] sm:$0xff]
    %v189 = vld [vmem:[#allocation5 + $0x10] sm:$0xff]
    %v190 = vld [vmem:[#allocation5 + $0x18] sm:$0xff]
    %v191 = vld [vmem:[%s8] sm:$0x1]
    %v192 = vld [vmem:[#allocation7] sm:$0xff]
    %v193 = vld [vmem:[#allocation7 + $0x8] sm:$0xff]
    %v194 = vld [vmem:[#allocation7 + $0x10] sm:$0xff]
    %v195 = vld [vmem:[#allocation7 + $0x18] sm:$0xff]
    %v196 = vld [vmem:[#allocation8] sm:$0x1]
    %v197 = vld [vmem:[#allocation10] sm:$0xff]
    %v198 = vld [vmem:[#allocation10 + $0x8] sm:$0xff]
    %v199 = vld [vmem:[#allocation10 + $0x10] sm:$0xff]
    %v200 = vld [vmem:[#allocation10 + $0x18] sm:$0xff]
    %v201 = vld [vmem:[#allocation11] sm:$0x1]
    %v202 = vld [vmem:[%s13] sm:$0xff]
    %v203 = vld [vmem:[%s13 + $0x8] sm:$0xff]
    %v204 = vld [vmem:[%s13 + $0x10] sm:$0xff]
    %v205 = vld [vmem:[%s13 + $0x18] sm:$0xff]
    %v206 = vld [vmem:[%s13 + $0x20] sm:$0xff]
    %v207 = vld [vmem:[%s13 + $0x28] sm:$0xff]
    %v208 = vld [vmem:[%s13 + $0x30] sm:$0xff]
    %v209 = vld [vmem:[%s13 + $0x38] sm:$0xff]
    %v210 = vld [vmem:[%s14] sm:$0xff]
    %v211 = vld [vmem:[%s14 + $0x8] sm:$0xff]
    %v212 = vld [vmem:[%s14 + $0x10] sm:$0xff]
    %v213 = vld [vmem:[%s14 + $0x18] sm:$0xff]
    %v214 = vld [vmem:[%s14 + $0x20] sm:$0xff]
    %v215 = vld [vmem:[%s14 + $0x28] sm:$0xff]
    %v216 = vld [vmem:[%s14 + $0x30] sm:$0xff]
    %v217 = vld [vmem:[%s14 + $0x38] sm:$0xff]
    %v218 = vld [vmem:[#allocation13] sm:$0x1]
    %v219 = vld [vmem:[#allocation14] sm:$0xff]
    %v220 = vld [vmem:[#allocation14 + $0x8] sm:$0xff]
    %v221 = vld [vmem:[#allocation14 + $0x10] sm:$0xff]
    %v222 = vld [vmem:[#allocation14 + $0x18] sm:$0xff]
    %v223 = vld [vmem:[#allocation16] sm:$0x1]
    %v224 = vld [vmem:[%s3] sm:$0x3]
    %v225 = vld [vmem:[%s0] sm:$0xff]
    %v226 = vld [vmem:[%s0 + $0x8] sm:$0xff]
    %v227 = vlaneseq
    %v228 = vand.u32 %v227, 127
    %229 = vset.pattern.permute.xlu0 0
    %230 = vperm.xlu0 %229, %v225
    %v231 = vpop.permute.xlu0 %230
    %232 = vset.pattern.permute.xlu0 0
    %233 = vperm.xlu0 %232, %v226
    %v234 = vpop.permute.xlu0 %233
    %vm235 = vcmp.eq.s32.totalorder %v228, %v231
    %vm236 = vcmp.eq.s32.totalorder %v228, %v234
    %v237 = vsel %vm235, 1, 0
    %v238 = vsel %vm236, 1, 0
    %v239 = vcvt.s32.f32 %v237
    %v240 = vcvt.s32.f32 %v238
    %v242 = vlaneseq
    %v243 = vshrl.u32 %v242, 7
    %v244 = vsub.s32 0, %v243
    %v245 = vrot.slane %v186, %v244
    %vm247 = vcmask 523264
    %v249 = vsel %vm247, %v239, 0
    %v252 = vsel %vm247, %v240, 0
    %254 = vmatprep.subr.mxu0 0.0
    %255 = vmatpush1.msra.mxu0 %v174
    %256 = vmatprep.subr.mxu0 0.0
    %257 = vmatpush1.msra.mxu0 %v175
    %258 = vmatprep.subr.mxu0 0.0
    %259 = vmatpush1.msra.mxu0 %v176
    %260 = vmatprep.subr.mxu0 0.0
    %261 = vmatpush1.msra.mxu0 %v177
    %262 = vmatprep.subr.mxu0 0.0
    %263 = vmatpush1.msra.mxu0 %v178
    %264 = vmatprep.subr.mxu0 0.0
    %265 = vmatpush1.msra.mxu0 %v179
    %266 = vmatprep.subr.mxu0 0.0
    %267 = vmatpush1.msra.mxu0 %v180
    %268 = vmatprep.subr.mxu0 0.0
    %269 = vmatpush1.msra.mxu0 %v181
    %270 = vmatprep.subr.mxu0 0.0
    %271 = vmatpush1.msra.mxu0 0.0
    %272 = vmatprep.subr.mxu0 0.0
    %273 = vmatpush1.msra.mxu0 0.0
    %274 = vmatprep.subr.mxu0 0.0
    %275 = vmatpush1.msra.mxu0 0.0
    %276 = vmatprep.subr.mxu0 0.0
    %277 = vmatpush1.msra.mxu0 0.0
    %278 = vmatprep.subr.mxu0 0.0
    %279 = vmatpush1.msra.mxu0 0.0
    %280 = vmatprep.subr.mxu0 0.0
    %281 = vmatpush1.msra.mxu0 0.0
    %282 = vmatprep.subr.mxu0 0.0
    %283 = vmatpush1.msra.mxu0 0.0
    %284 = vmatprep.subr.mxu0 0.0
    %285 = vmatpush1.msra.mxu0 0.0
    %286 = vmatprep.subr.mxu0 0.0
    %287 = vmatpush1.msra.mxu0 0.0
    %288 = vmatprep.subr.mxu0 0.0
    %289 = vmatpush1.msra.mxu0 0.0
    %290 = vmatprep.subr.mxu0 0.0
    %291 = vmatpush1.msra.mxu0 0.0
    %292 = vmatprep.subr.mxu0 0.0
    %293 = vmatpush1.msra.mxu0 0.0
    %294 = vmatprep.subr.mxu0 0.0
    %295 = vmatpush1.msra.mxu0 0.0
    %296 = vmatprep.subr.mxu0 0.0
    %297 = vmatpush1.msra.mxu0 0.0
    %298 = vmatprep.subr.mxu0 0.0
    %299 = vmatpush1.msra.mxu0 0.0
    %300 = vmatprep.subr.mxu0 0.0
    %301 = vmatpush1.msra.mxu0 0.0
    %302 = vmatprep.subr.mxu0 0.0
    %303 = vmatpush1.msra.mxu0 0.0
    %304 = vmatprep.subr.mxu0 0.0
    %305 = vmatpush1.msra.mxu0 0.0
    %306 = vmatprep.subr.mxu0 0.0
    %307 = vmatpush1.msra.mxu0 0.0
    %308 = vmatprep.subr.mxu0 0.0
    %309 = vmatpush1.msra.mxu0 0.0
    %310 = vmatprep.subr.mxu0 0.0
    %311 = vmatpush1.msra.mxu0 0.0
    %312 = vmatprep.subr.mxu0 0.0
    %313 = vmatpush1.msra.mxu0 0.0
    %314 = vmatprep.subr.mxu0 0.0
    %315 = vmatpush1.msra.mxu0 0.0
    %316 = vmatprep.subr.mxu0 0.0
    %317 = vmatpush1.msra.mxu0 0.0
    %318 = vmatprep.mubr.f32.mxu0 0.0
    %319 = vmatmul.mubr.f32.gmra.mrb[0].mxu0 %v249
    %v320 = vpop.f32.mrb[0].mxu0
    %v321 = vadd.f32 %v245, %v320
    %v322 = vpop.f32.mrb[0].mxu0
    %323 = vmatprep.mubr.f32.mxu0 0.0
    %324 = vmatmul.mubr.f32.gmra.mrb[0].mxu0 %v252
    %v325 = vpop.f32.mrb[0].mxu0
    %v326 = vadd.f32 %v245, %v325
    %v327 = vpop.f32.mrb[0].mxu0
    %328 = vdwg.mxu0
    %vm329 = vcmask 261120
    %v331 = vsel %vm329, 0.0, 0
    %333 = vmatprep.subr.mxu0 0.0
    %334 = vmatpush1.msra.mxu0 %v182
    %335 = vmatprep.subr.mxu0 0.0
    %336 = vmatpush1.msra.mxu0 %v183
    %337 = vmatprep.subr.mxu0 0.0
    %338 = vmatpush1.msra.mxu0 %v184
    %339 = vmatprep.subr.mxu0 0.0
    %340 = vmatpush1.msra.mxu0 %v185
    %341 = vmatprep.subr.mxu0 0.0
    %342 = vmatpush1.msra.mxu0 0.0
    %343 = vmatprep.subr.mxu0 0.0
    %344 = vmatpush1.msra.mxu0 0.0
    %345 = vmatprep.subr.mxu0 0.0
    %346 = vmatpush1.msra.mxu0 0.0
    %347 = vmatprep.subr.mxu0 0.0
    %348 = vmatpush1.msra.mxu0 0.0
    %349 = vmatprep.subr.mxu0 0.0
    %350 = vmatpush1.msra.mxu0 0.0
    %351 = vmatprep.subr.mxu0 0.0
    %352 = vmatpush1.msra.mxu0 0.0
    %353 = vmatprep.subr.mxu0 0.0
    %354 = vmatpush1.msra.mxu0 0.0
    %355 = vmatprep.subr.mxu0 0.0
    %356 = vmatpush1.msra.mxu0 0.0
    %357 = vmatprep.subr.mxu0 0.0
    %358 = vmatpush1.msra.mxu0 0.0
    %359 = vmatprep.subr.mxu0 0.0
    %360 = vmatpush1.msra.mxu0 0.0
    %361 = vmatprep.subr.mxu0 0.0
    %362 = vmatpush1.msra.mxu0 0.0
    %363 = vmatprep.subr.mxu0 0.0
    %364 = vmatpush1.msra.mxu0 0.0
    %365 = vmatprep.subr.mxu0 0.0
    %366 = vmatpush1.msra.mxu0 0.0
    %367 = vmatprep.subr.mxu0 0.0
    %368 = vmatpush1.msra.mxu0 0.0
    %369 = vmatprep.subr.mxu0 0.0
    %370 = vmatpush1.msra.mxu0 0.0
    %371 = vmatprep.subr.mxu0 0.0
    %372 = vmatpush1.msra.mxu0 0.0
    %373 = vmatprep.subr.mxu0 0.0
    %374 = vmatpush1.msra.mxu0 0.0
    %375 = vmatprep.subr.mxu0 0.0
    %376 = vmatpush1.msra.mxu0 0.0
    %377 = vmatprep.subr.mxu0 0.0
    %378 = vmatpush1.msra.mxu0 0.0
    %379 = vmatprep.subr.mxu0 0.0
    %380 = vmatpush1.msra.mxu0 0.0
    %381 = vmatprep.subr.mxu0 0.0
    %382 = vmatpush1.msra.mxu0 0.0
    %383 = vmatprep.subr.mxu0 0.0
    %384 = vmatpush1.msra.mxu0 0.0
    %385 = vmatprep.subr.mxu0 0.0
    %386 = vmatpush1.msra.mxu0 0.0
    %387 = vmatprep.subr.mxu0 0.0
    %388 = vmatpush1.msra.mxu0 0.0
    %389 = vmatprep.subr.mxu0 0.0
    %390 = vmatpush1.msra.mxu0 0.0
    %391 = vmatprep.subr.mxu0 0.0
    %392 = vmatpush1.msra.mxu0 0.0
    %393 = vmatprep.subr.mxu0 0.0
    %394 = vmatpush1.msra.mxu0 0.0
    %395 = vmatprep.subr.mxu0 0.0
    %396 = vmatpush1.msra.mxu0 0.0
    %397 = vmatprep.mubr.f32.mxu0 0.0
    %398 = vmatmul.mubr.f32.gmra.mrb[0].mxu0 %v331
    %v399 = vpop.f32.mrb[0].mxu0
    %v400 = vadd.f32 0.0, %v399
    %v401 = vpop.f32.mrb[0].mxu0
    %402 = vdwg.mxu0
    %v403 = vadd.f32 %v321, %v400
    %v404 = vxor.u32 %v403, 2147483648
    %v405 = vmul.f32 %v404, 1.442695
    %v406 = vpow.pop %v405
    %v407 = vadd.f32 %v406, 1.0
    %v408 = vrcp.pop %v407
    %v409 = vmul.f32 1.0, %v408
    %v410 = vtanh.pop %v403
    %v411 = vmul.f32 %v409, 0.0
    %413 = vrot.lane.b32.xlu0 %v410, 64
    %v414 = vpop.permute.xlu0 %413
    %v416 = vmul.f32 %v409, %v414
    %418 = vrot.lane.b32.xlu0 %v416, 32
    %v419 = vpop.permute.xlu0 %418
    %v421 = vadd.f32 %v411, %v419
    %v422 = vtanh.pop %v421
    %424 = vrot.lane.b32.xlu0 %v422, 64
    %v425 = vpop.permute.xlu0 %424
    %v427 = vmul.f32 %v409, %v425
    %429 = vrot.lane.b32.xlu0 %v427, 32
    %v430 = vpop.permute.xlu0 %429
    %v431 = vsel %vm329, %v430, 0
    %433 = vmatprep.subr.mxu0 0.0
    %434 = vmatpush1.msra.mxu0 %v182
    %435 = vmatprep.subr.mxu0 0.0
    %436 = vmatpush1.msra.mxu0 %v183
    %437 = vmatprep.subr.mxu0 0.0
    %438 = vmatpush1.msra.mxu0 %v184
    %439 = vmatprep.subr.mxu0 0.0
    %440 = vmatpush1.msra.mxu0 %v185
    %441 = vmatprep.subr.mxu0 0.0
    %442 = vmatpush1.msra.mxu0 0.0
    %443 = vmatprep.subr.mxu0 0.0
    %444 = vmatpush1.msra.mxu0 0.0
    %445 = vmatprep.subr.mxu0 0.0
    %446 = vmatpush1.msra.mxu0 0.0
    %447 = vmatprep.subr.mxu0 0.0
    %448 = vmatpush1.msra.mxu0 0.0
    %449 = vmatprep.subr.mxu0 0.0
    %450 = vmatpush1.msra.mxu0 0.0
    %451 = vmatprep.subr.mxu0 0.0
    %452 = vmatpush1.msra.mxu0 0.0
    %453 = vmatprep.subr.mxu0 0.0
    %454 = vmatpush1.msra.mxu0 0.0
    %455 = vmatprep.subr.mxu0 0.0
    %456 = vmatpush1.msra.mxu0 0.0
    %457 = vmatprep.subr.mxu0 0.0
    %458 = vmatpush1.msra.mxu0 0.0
    %459 = vmatprep.subr.mxu0 0.0
    %460 = vmatpush1.msra.mxu0 0.0
    %461 = vmatprep.subr.mxu0 0.0
    %462 = vmatpush1.msra.mxu0 0.0
    %463 = vmatprep.subr.mxu0 0.0
    %464 = vmatpush1.msra.mxu0 0.0
    %465 = vmatprep.subr.mxu0 0.0
    %466 = vmatpush1.msra.mxu0 0.0
    %467 = vmatprep.subr.mxu0 0.0
    %468 = vmatpush1.msra.mxu0 0.0
    %469 = vmatprep.subr.mxu0 0.0
    %470 = vmatpush1.msra.mxu0 0.0
    %471 = vmatprep.subr.mxu0 0.0
    %472 = vmatpush1.msra.mxu0 0.0
    %473 = vmatprep.subr.mxu0 0.0
    %474 = vmatpush1.msra.mxu0 0.0
    %475 = vmatprep.subr.mxu0 0.0
    %476 = vmatpush1.msra.mxu0 0.0
    %477 = vmatprep.subr.mxu0 0.0
    %478 = vmatpush1.msra.mxu0 0.0
    %479 = vmatprep.subr.mxu0 0.0
    %480 = vmatpush1.msra.mxu0 0.0
    %481 = vmatprep.subr.mxu0 0.0
    %482 = vmatpush1.msra.mxu0 0.0
    %483 = vmatprep.subr.mxu0 0.0
    %484 = vmatpush1.msra.mxu0 0.0
    %485 = vmatprep.subr.mxu0 0.0
    %486 = vmatpush1.msra.mxu0 0.0
    %487 = vmatprep.subr.mxu0 0.0
    %488 = vmatpush1.msra.mxu0 0.0
    %489 = vmatprep.subr.mxu0 0.0
    %490 = vmatpush1.msra.mxu0 0.0
    %491 = vmatprep.subr.mxu0 0.0
    %492 = vmatpush1.msra.mxu0 0.0
    %493 = vmatprep.subr.mxu0 0.0
    %494 = vmatpush1.msra.mxu0 0.0
    %495 = vmatprep.subr.mxu0 0.0
    %496 = vmatpush1.msra.mxu0 0.0
    %497 = vmatprep.mubr.f32.mxu0 0.0
    %498 = vmatmul.mubr.f32.gmra.mrb[0].mxu0 %v431
    %v499 = vpop.f32.mrb[0].mxu0
    %v500 = vadd.f32 0.0, %v499
    %v501 = vpop.f32.mrb[0].mxu0
    %502 = vdwg.mxu0
    %v504 = vrot.slane %v500, 6
    %v506 = vadd.f32 %v321, %v504
    %v507 = vxor.u32 %v506, 2147483648
    %v508 = vmul.f32 %v507, 1.442695
    %v509 = vpow.pop %v508
    %v510 = vadd.f32 %v509, 1.0
    %v511 = vrcp.pop %v510
    %v512 = vmul.f32 1.0, %v511
    %v513 = vtanh.pop %v506
    %v515 = vrot.slane %v421, 6
    %v517 = vmul.f32 %v512, %v515
    %519 = vrot.lane.b32.xlu0 %v513, 64
    %v520 = vpop.permute.xlu0 %519
    %v522 = vmul.f32 %v512, %v520
    %524 = vrot.lane.b32.xlu0 %v522, 32
    %v525 = vpop.permute.xlu0 %524
    %v527 = vadd.f32 %v517, %v525
    %v528 = vtanh.pop %v527
    %530 = vrot.lane.b32.xlu0 %v528, 64
    %v531 = vpop.permute.xlu0 %530
    %v533 = vmul.f32 %v512, %v531
    %v535 = vrot.slane %v533, 2
    %536 = vrot.lane.b32.xlu0 %v535, 32
    %v537 = vpop.permute.xlu0 %536
    %v538 = vsel %vm329, %v537, 0
    %540 = vmatprep.subr.mxu0 0.0
    %541 = vmatpush1.msra.mxu0 %v182
    %542 = vmatprep.subr.mxu0 0.0
    %543 = vmatpush1.msra.mxu0 %v183
    %544 = vmatprep.subr.mxu0 0.0
    %545 = vmatpush1.msra.mxu0 %v184
    %546 = vmatprep.subr.mxu0 0.0
    %547 = vmatpush1.msra.mxu0 %v185
    %548 = vmatprep.subr.mxu0 0.0
    %549 = vmatpush1.msra.mxu0 0.0
    %550 = vmatprep.subr.mxu0 0.0
    %551 = vmatpush1.msra.mxu0 0.0
    %552 = vmatprep.subr.mxu0 0.0
    %553 = vmatpush1.msra.mxu0 0.0
    %554 = vmatprep.subr.mxu0 0.0
    %555 = vmatpush1.msra.mxu0 0.0
    %556 = vmatprep.subr.mxu0 0.0
    %557 = vmatpush1.msra.mxu0 0.0
    %558 = vmatprep.subr.mxu0 0.0
    %559 = vmatpush1.msra.mxu0 0.0
    %560 = vmatprep.subr.mxu0 0.0
    %561 = vmatpush1.msra.mxu0 0.0
    %562 = vmatprep.subr.mxu0 0.0
    %563 = vmatpush1.msra.mxu0 0.0
    %564 = vmatprep.subr.mxu0 0.0
    %565 = vmatpush1.msra.mxu0 0.0
    %566 = vmatprep.subr.mxu0 0.0
    %567 = vmatpush1.msra.mxu0 0.0
    %568 = vmatprep.subr.mxu0 0.0
    %569 = vmatpush1.msra.mxu0 0.0
    %570 = vmatprep.subr.mxu0 0.0
    %571 = vmatpush1.msra.mxu0 0.0
    %572 = vmatprep.subr.mxu0 0.0
    %573 = vmatpush1.msra.mxu0 0.0
    %574 = vmatprep.subr.mxu0 0.0
    %575 = vmatpush1.msra.mxu0 0.0
    %576 = vmatprep.subr.mxu0 0.0
    %577 = vmatpush1.msra.mxu0 0.0
    %578 = vmatprep.subr.mxu0 0.0
    %579 = vmatpush1.msra.mxu0 0.0
    %580 = vmatprep.subr.mxu0 0.0
    %581 = vmatpush1.msra.mxu0 0.0
    %582 = vmatprep.subr.mxu0 0.0
    %583 = vmatpush1.msra.mxu0 0.0
    %584 = vmatprep.subr.mxu0 0.0
    %585 = vmatpush1.msra.mxu0 0.0
    %586 = vmatprep.subr.mxu0 0.0
    %587 = vmatpush1.msra.mxu0 0.0
    %588 = vmatprep.subr.mxu0 0.0
    %589 = vmatpush1.msra.mxu0 0.0
    %590 = vmatprep.subr.mxu0 0.0
    %591 = vmatpush1.msra.mxu0 0.0
    %592 = vmatprep.subr.mxu0 0.0
    %593 = vmatpush1.msra.mxu0 0.0
    %594 = vmatprep.subr.mxu0 0.0
    %595 = vmatpush1.msra.mxu0 0.0
    %596 = vmatprep.subr.mxu0 0.0
    %597 = vmatpush1.msra.mxu0 0.0
    %598 = vmatprep.subr.mxu0 0.0
    %599 = vmatpush1.msra.mxu0 0.0
    %600 = vmatprep.subr.mxu0 0.0
    %601 = vmatpush1.msra.mxu0 0.0
    %602 = vmatprep.subr.mxu0 0.0
    %603 = vmatpush1.msra.mxu0 0.0
    %604 = vmatprep.mubr.f32.mxu0 0.0
    %605 = vmatmul.mubr.f32.gmra.mrb[0].mxu0 %v538
    %v606 = vpop.f32.mrb[0].mxu0
    %v607 = vadd.f32 0.0, %v606
    %v608 = vpop.f32.mrb[0].mxu0
    %609 = vdwg.mxu0
    %v611 = vrot.slane %v607, 4
    %v613 = vadd.f32 %v321, %v611
    %v614 = vxor.u32 %v613, 2147483648
    %v615 = vmul.f32 %v614, 1.442695
    %v616 = vpow.pop %v615
    %v617 = vadd.f32 %v616, 1.0
    %v618 = vrcp.pop %v617
    %v619 = vmul.f32 1.0, %v618
    %v620 = vtanh.pop %v613
    %v622 = vrot.slane %v527, 6
    %v624 = vmul.f32 %v619, %v622
    %626 = vrot.lane.b32.xlu0 %v620, 64
    %v627 = vpop.permute.xlu0 %626
    %v629 = vmul.f32 %v619, %v627
    %631 = vrot.lane.b32.xlu0 %v629, 32
    %v632 = vpop.permute.xlu0 %631
    %v634 = vadd.f32 %v624, %v632
    %v635 = vtanh.pop %v634
    %637 = vrot.lane.b32.xlu0 %v635, 64
    %v638 = vpop.permute.xlu0 %637
    %v640 = vmul.f32 %v619, %v638
    %v642 = vrot.slane %v640, 4
    %643 = vrot.lane.b32.xlu0 %v642, 32
    %v644 = vpop.permute.xlu0 %643
    %v645 = vsel %vm329, %v644, 0
    %647 = vmatprep.subr.mxu0 0.0
    %648 = vmatpush1.msra.mxu0 %v182
    %649 = vmatprep.subr.mxu0 0.0
    %650 = vmatpush1.msra.mxu0 %v183
    %651 = vmatprep.subr.mxu0 0.0
    %652 = vmatpush1.msra.mxu0 %v184
    %653 = vmatprep.subr.mxu0 0.0
    %654 = vmatpush1.msra.mxu0 %v185
    %655 = vmatprep.subr.mxu0 0.0
    %656 = vmatpush1.msra.mxu0 0.0
    %657 = vmatprep.subr.mxu0 0.0
    %658 = vmatpush1.msra.mxu0 0.0
    %659 = vmatprep.subr.mxu0 0.0
    %660 = vmatpush1.msra.mxu0 0.0
    %661 = vmatprep.subr.mxu0 0.0
    %662 = vmatpush1.msra.mxu0 0.0
    %663 = vmatprep.subr.mxu0 0.0
    %664 = vmatpush1.msra.mxu0 0.0
    %665 = vmatprep.subr.mxu0 0.0
    %666 = vmatpush1.msra.mxu0 0.0
    %667 = vmatprep.subr.mxu0 0.0
    %668 = vmatpush1.msra.mxu0 0.0
    %669 = vmatprep.subr.mxu0 0.0
    %670 = vmatpush1.msra.mxu0 0.0
    %671 = vmatprep.subr.mxu0 0.0
    %672 = vmatpush1.msra.mxu0 0.0
    %673 = vmatprep.subr.mxu0 0.0
    %674 = vmatpush1.msra.mxu0 0.0
    %675 = vmatprep.subr.mxu0 0.0
    %676 = vmatpush1.msra.mxu0 0.0
    %677 = vmatprep.subr.mxu0 0.0
    %678 = vmatpush1.msra.mxu0 0.0
    %679 = vmatprep.subr.mxu0 0.0
    %680 = vmatpush1.msra.mxu0 0.0
    %681 = vmatprep.subr.mxu0 0.0
    %682 = vmatpush1.msra.mxu0 0.0
    %683 = vmatprep.subr.mxu0 0.0
    %684 = vmatpush1.msra.mxu0 0.0
    %685 = vmatprep.subr.mxu0 0.0
    %686 = vmatpush1.msra.mxu0 0.0
    %687 = vmatprep.subr.mxu0 0.0
    %688 = vmatpush1.msra.mxu0 0.0
    %689 = vmatprep.subr.mxu0 0.0
    %690 = vmatpush1.msra.mxu0 0.0
    %691 = vmatprep.subr.mxu0 0.0
    %692 = vmatpush1.msra.mxu0 0.0
    %693 = vmatprep.subr.mxu0 0.0
    %694 = vmatpush1.msra.mxu0 0.0
    %695 = vmatprep.subr.mxu0 0.0
    %696 = vmatpush1.msra.mxu0 0.0
    %697 = vmatprep.subr.mxu0 0.0
    %698 = vmatpush1.msra.mxu0 0.0
    %699 = vmatprep.subr.mxu0 0.0
    %700 = vmatpush1.msra.mxu0 0.0
    %701 = vmatprep.subr.mxu0 0.0
    %702 = vmatpush1.msra.mxu0 0.0
    %703 = vmatprep.subr.mxu0 0.0
    %704 = vmatpush1.msra.mxu0 0.0
    %705 = vmatprep.subr.mxu0 0.0
    %706 = vmatpush1.msra.mxu0 0.0
    %707 = vmatprep.subr.mxu0 0.0
    %708 = vmatpush1.msra.mxu0 0.0
    %709 = vmatprep.subr.mxu0 0.0
    %710 = vmatpush1.msra.mxu0 0.0
    %711 = vmatprep.mubr.f32.mxu0 0.0
    %712 = vmatmul.mubr.f32.gmra.mrb[0].mxu0 %v645
    %v713 = vpop.f32.mrb[0].mxu0
    %v714 = vadd.f32 0.0, %v713
    %v715 = vpop.f32.mrb[0].mxu0
    %716 = vdwg.mxu0
    %v718 = vrot.slane %v714, 2
    %v720 = vadd.f32 %v321, %v718
    %v721 = vxor.u32 %v720, 2147483648
    %v722 = vmul.f32 %v721, 1.442695
    %v723 = vpow.pop %v722
    %v724 = vadd.f32 %v723, 1.0
    %v725 = vrcp.pop %v724
    %v726 = vmul.f32 1.0, %v725
    %v727 = vtanh.pop %v720
    %v729 = vrot.slane %v634, 6
    %v731 = vmul.f32 %v726, %v729
    %733 = vrot.lane.b32.xlu0 %v727, 64
    %v734 = vpop.permute.xlu0 %733
    %v736 = vmul.f32 %v726, %v734
    %738 = vrot.lane.b32.xlu0 %v736, 32
    %v739 = vpop.permute.xlu0 %738
    %v741 = vadd.f32 %v731, %v739
    %v742 = vtanh.pop %v741
    %744 = vrot.lane.b32.xlu0 %v742, 64
    %v745 = vpop.permute.xlu0 %744
    %v747 = vmul.f32 %v726, %v745
    %v749 = vrot.slane %v747, 6
    %750 = vrot.lane.b32.xlu0 %v749, 32
    %v751 = vpop.permute.xlu0 %750
    %v752 = vsel %vm329, %v751, 0
    %754 = vmatprep.subr.mxu0 0.0
    %755 = vmatpush1.msra.mxu0 %v182
    %756 = vmatprep.subr.mxu0 0.0
    %757 = vmatpush1.msra.mxu0 %v183
    %758 = vmatprep.subr.mxu0 0.0
    %759 = vmatpush1.msra.mxu0 %v184
    %760 = vmatprep.subr.mxu0 0.0
    %761 = vmatpush1.msra.mxu0 %v185
    %762 = vmatprep.subr.mxu0 0.0
    %763 = vmatpush1.msra.mxu0 0.0
    %764 = vmatprep.subr.mxu0 0.0
    %765 = vmatpush1.msra.mxu0 0.0
    %766 = vmatprep.subr.mxu0 0.0
    %767 = vmatpush1.msra.mxu0 0.0
    %768 = vmatprep.subr.mxu0 0.0
    %769 = vmatpush1.msra.mxu0 0.0
    %770 = vmatprep.subr.mxu0 0.0
    %771 = vmatpush1.msra.mxu0 0.0
    %772 = vmatprep.subr.mxu0 0.0
    %773 = vmatpush1.msra.mxu0 0.0
    %774 = vmatprep.subr.mxu0 0.0
    %775 = vmatpush1.msra.mxu0 0.0
    %776 = vmatprep.subr.mxu0 0.0
    %777 = vmatpush1.msra.mxu0 0.0
    %778 = vmatprep.subr.mxu0 0.0
    %779 = vmatpush1.msra.mxu0 0.0
    %780 = vmatprep.subr.mxu0 0.0
    %781 = vmatpush1.msra.mxu0 0.0
    %782 = vmatprep.subr.mxu0 0.0
    %783 = vmatpush1.msra.mxu0 0.0
    %784 = vmatprep.subr.mxu0 0.0
    %785 = vmatpush1.msra.mxu0 0.0
    %786 = vmatprep.subr.mxu0 0.0
    %787 = vmatpush1.msra.mxu0 0.0
    %788 = vmatprep.subr.mxu0 0.0
    %789 = vmatpush1.msra.mxu0 0.0
    %790 = vmatprep.subr.mxu0 0.0
    %791 = vmatpush1.msra.mxu0 0.0
    %792 = vmatprep.subr.mxu0 0.0
    %793 = vmatpush1.msra.mxu0 0.0
    %794 = vmatprep.subr.mxu0 0.0
    %795 = vmatpush1.msra.mxu0 0.0
    %796 = vmatprep.subr.mxu0 0.0
    %797 = vmatpush1.msra.mxu0 0.0
    %798 = vmatprep.subr.mxu0 0.0
    %799 = vmatpush1.msra.mxu0 0.0
    %800 = vmatprep.subr.mxu0 0.0
    %801 = vmatpush1.msra.mxu0 0.0
    %802 = vmatprep.subr.mxu0 0.0
    %803 = vmatpush1.msra.mxu0 0.0
    %804 = vmatprep.subr.mxu0 0.0
    %805 = vmatpush1.msra.mxu0 0.0
    %806 = vmatprep.subr.mxu0 0.0
    %807 = vmatpush1.msra.mxu0 0.0
    %808 = vmatprep.subr.mxu0 0.0
    %809 = vmatpush1.msra.mxu0 0.0
    %810 = vmatprep.subr.mxu0 0.0
    %811 = vmatpush1.msra.mxu0 0.0
    %812 = vmatprep.subr.mxu0 0.0
    %813 = vmatpush1.msra.mxu0 0.0
    %814 = vmatprep.subr.mxu0 0.0
    %815 = vmatpush1.msra.mxu0 0.0
    %816 = vmatprep.subr.mxu0 0.0
    %817 = vmatpush1.msra.mxu0 0.0
    %818 = vmatprep.mubr.f32.mxu0 0.0
    %819 = vmatmul.mubr.f32.gmra.mrb[0].mxu0 %v752
    %v820 = vpop.f32.mrb[0].mxu0
    %v821 = vadd.f32 0.0, %v820
    %v822 = vpop.f32.mrb[0].mxu0
    %823 = vdwg.mxu0
    %v824 = vadd.f32 %v326, %v821
    %v825 = vxor.u32 %v824, 2147483648
    %v826 = vmul.f32 %v825, 1.442695
    %v827 = vpow.pop %v826
    %v828 = vadd.f32 %v827, 1.0
    %v829 = vrcp.pop %v828
    %v830 = vmul.f32 1.0, %v829
    %v831 = vtanh.pop %v824
    %v833 = vrot.slane %v741, 6
    %v835 = vmul.f32 %v830, %v833
    %837 = vrot.lane.b32.xlu0 %v831, 64
    %v838 = vpop.permute.xlu0 %837
    %v840 = vmul.f32 %v830, %v838
    %842 = vrot.lane.b32.xlu0 %v840, 32
    %v843 = vpop.permute.xlu0 %842
    %v845 = vadd.f32 %v835, %v843
    %v846 = vtanh.pop %v845
    %848 = vrot.lane.b32.xlu0 %v846, 64
    %v849 = vpop.permute.xlu0 %848
    %v851 = vmul.f32 %v830, %v849
    %853 = vrot.lane.b32.xlu0 %v851, 32
    %v854 = vpop.permute.xlu0 %853
    %v855 = vsel %vm329, %v854, 0
    %857 = vmatprep.subr.mxu0 0.0
    %858 = vmatpush1.msra.mxu0 %v182
    %859 = vmatprep.subr.mxu0 0.0
    %860 = vmatpush1.msra.mxu0 %v183
    %861 = vmatprep.subr.mxu0 0.0
    %862 = vmatpush1.msra.mxu0 %v184
    %863 = vmatprep.subr.mxu0 0.0
    %864 = vmatpush1.msra.mxu0 %v185
    %865 = vmatprep.subr.mxu0 0.0
    %866 = vmatpush1.msra.mxu0 0.0
    %867 = vmatprep.subr.mxu0 0.0
    %868 = vmatpush1.msra.mxu0 0.0
    %869 = vmatprep.subr.mxu0 0.0
    %870 = vmatpush1.msra.mxu0 0.0
    %871 = vmatprep.subr.mxu0 0.0
    %872 = vmatpush1.msra.mxu0 0.0
    %873 = vmatprep.subr.mxu0 0.0
    %874 = vmatpush1.msra.mxu0 0.0
    %875 = vmatprep.subr.mxu0 0.0
    %876 = vmatpush1.msra.mxu0 0.0
    %877 = vmatprep.subr.mxu0 0.0
    %878 = vmatpush1.msra.mxu0 0.0
    %879 = vmatprep.subr.mxu0 0.0
    %880 = vmatpush1.msra.mxu0 0.0
    %881 = vmatprep.subr.mxu0 0.0
    %882 = vmatpush1.msra.mxu0 0.0
    %883 = vmatprep.subr.mxu0 0.0
    %884 = vmatpush1.msra.mxu0 0.0
    %885 = vmatprep.subr.mxu0 0.0
    %886 = vmatpush1.msra.mxu0 0.0
    %887 = vmatprep.subr.mxu0 0.0
    %888 = vmatpush1.msra.mxu0 0.0
    %889 = vmatprep.subr.mxu0 0.0
    %890 = vmatpush1.msra.mxu0 0.0
    %891 = vmatprep.subr.mxu0 0.0
    %892 = vmatpush1.msra.mxu0 0.0
    %893 = vmatprep.subr.mxu0 0.0
    %894 = vmatpush1.msra.mxu0 0.0
    %895 = vmatprep.subr.mxu0 0.0
    %896 = vmatpush1.msra.mxu0 0.0
    %897 = vmatprep.subr.mxu0 0.0
    %898 = vmatpush1.msra.mxu0 0.0
    %899 = vmatprep.subr.mxu0 0.0
    %900 = vmatpush1.msra.mxu0 0.0
    %901 = vmatprep.subr.mxu0 0.0
    %902 = vmatpush1.msra.mxu0 0.0
    %903 = vmatprep.subr.mxu0 0.0
    %904 = vmatpush1.msra.mxu0 0.0
    %905 = vmatprep.subr.mxu0 0.0
    %906 = vmatpush1.msra.mxu0 0.0
    %907 = vmatprep.subr.mxu0 0.0
    %908 = vmatpush1.msra.mxu0 0.0
    %909 = vmatprep.subr.mxu0 0.0
    %910 = vmatpush1.msra.mxu0 0.0
    %911 = vmatprep.subr.mxu0 0.0
    %912 = vmatpush1.msra.mxu0 0.0
    %913 = vmatprep.subr.mxu0 0.0
    %914 = vmatpush1.msra.mxu0 0.0
    %915 = vmatprep.subr.mxu0 0.0
    %916 = vmatpush1.msra.mxu0 0.0
    %917 = vmatprep.subr.mxu0 0.0
    %918 = vmatpush1.msra.mxu0 0.0
    %919 = vmatprep.subr.mxu0 0.0
    %920 = vmatpush1.msra.mxu0 0.0
    %921 = vmatprep.mubr.f32.mxu0 0.0
    %922 = vmatmul.mubr.f32.gmra.mrb[0].mxu0 %v855
    %v923 = vpop.f32.mrb[0].mxu0
    %v924 = vadd.f32 0.0, %v923
    %v925 = vpop.f32.mrb[0].mxu0
    %926 = vdwg.mxu0
    %v928 = vrot.slane %v924, 6
    %v930 = vadd.f32 %v326, %v928
    %v931 = vxor.u32 %v930, 2147483648
    %v932 = vmul.f32 %v931, 1.442695
    %v933 = vpow.pop %v932
    %v934 = vadd.f32 %v933, 1.0
    %v935 = vrcp.pop %v934
    %v936 = vmul.f32 1.0, %v935
    %v937 = vtanh.pop %v930
    %v939 = vrot.slane %v845, 6
    %v941 = vmul.f32 %v936, %v939
    %943 = vrot.lane.b32.xlu0 %v937, 64
    %v944 = vpop.permute.xlu0 %943
    %v946 = vmul.f32 %v936, %v944
    %948 = vrot.lane.b32.xlu0 %v946, 32
    %v949 = vpop.permute.xlu0 %948
    %v951 = vadd.f32 %v941, %v949
    %v952 = vtanh.pop %v951
    %954 = vrot.lane.b32.xlu0 %v952, 64
    %v955 = vpop.permute.xlu0 %954
    %v957 = vmul.f32 %v936, %v955
    %v959 = vrot.slane %v957, 2
    %960 = vrot.lane.b32.xlu0 %v959, 32
    %v961 = vpop.permute.xlu0 %960
    %v962 = vsel %vm329, %v961, 0
    %964 = vmatprep.subr.mxu0 0.0
    %965 = vmatpush1.msra.mxu0 %v182
    %966 = vmatprep.subr.mxu0 0.0
    %967 = vmatpush1.msra.mxu0 %v183
    %968 = vmatprep.subr.mxu0 0.0
    %969 = vmatpush1.msra.mxu0 %v184
    %970 = vmatprep.subr.mxu0 0.0
    %971 = vmatpush1.msra.mxu0 %v185
    %972 = vmatprep.subr.mxu0 0.0
    %973 = vmatpush1.msra.mxu0 0.0
    %974 = vmatprep.subr.mxu0 0.0
    %975 = vmatpush1.msra.mxu0 0.0
    %976 = vmatprep.subr.mxu0 0.0
    %977 = vmatpush1.msra.mxu0 0.0
    %978 = vmatprep.subr.mxu0 0.0
    %979 = vmatpush1.msra.mxu0 0.0
    %980 = vmatprep.subr.mxu0 0.0
    %981 = vmatpush1.msra.mxu0 0.0
    %982 = vmatprep.subr.mxu0 0.0
    %983 = vmatpush1.msra.mxu0 0.0
    %984 = vmatprep.subr.mxu0 0.0
    %985 = vmatpush1.msra.mxu0 0.0
    %986 = vmatprep.subr.mxu0 0.0
    %987 = vmatpush1.msra.mxu0 0.0
    %988 = vmatprep.subr.mxu0 0.0
    %989 = vmatpush1.msra.mxu0 0.0
    %990 = vmatprep.subr.mxu0 0.0
    %991 = vmatpush1.msra.mxu0 0.0
    %992 = vmatprep.subr.mxu0 0.0
    %993 = vmatpush1.msra.mxu0 0.0
    %994 = vmatprep.subr.mxu0 0.0
    %995 = vmatpush1.msra.mxu0 0.0
    %996 = vmatprep.subr.mxu0 0.0
    %997 = vmatpush1.msra.mxu0 0.0
    %998 = vmatprep.subr.mxu0 0.0
    %999 = vmatpush1.msra.mxu0 0.0
    %1000 = vmatprep.subr.mxu0 0.0
    %1001 = vmatpush1.msra.mxu0 0.0
    %1002 = vmatprep.subr.mxu0 0.0
    %1003 = vmatpush1.msra.mxu0 0.0
    %1004 = vmatprep.subr.mxu0 0.0
    %1005 = vmatpush1.msra.mxu0 0.0
    %1006 = vmatprep.subr.mxu0 0.0
    %1007 = vmatpush1.msra.mxu0 0.0
    %1008 = vmatprep.subr.mxu0 0.0
    %1009 = vmatpush1.msra.mxu0 0.0
    %1010 = vmatprep.subr.mxu0 0.0
    %1011 = vmatpush1.msra.mxu0 0.0
    %1012 = vmatprep.subr.mxu0 0.0
    %1013 = vmatpush1.msra.mxu0 0.0
    %1014 = vmatprep.subr.mxu0 0.0
    %1015 = vmatpush1.msra.mxu0 0.0
    %1016 = vmatprep.subr.mxu0 0.0
    %1017 = vmatpush1.msra.mxu0 0.0
    %1018 = vmatprep.subr.mxu0 0.0
    %1019 = vmatpush1.msra.mxu0 0.0
    %1020 = vmatprep.subr.mxu0 0.0
    %1021 = vmatpush1.msra.mxu0 0.0
    %1022 = vmatprep.subr.mxu0 0.0
    %1023 = vmatpush1.msra.mxu0 0.0
    %1024 = vmatprep.subr.mxu0 0.0
    %1025 = vmatpush1.msra.mxu0 0.0
    %1026 = vmatprep.subr.mxu0 0.0
    %1027 = vmatpush1.msra.mxu0 0.0
    %1028 = vmatprep.mubr.f32.mxu0 0.0
    %1029 = vmatmul.mubr.f32.gmra.mrb[0].mxu0 %v962
    %v1030 = vpop.f32.mrb[0].mxu0
    %v1031 = vadd.f32 0.0, %v1030
    %v1032 = vpop.f32.mrb[0].mxu0
    %1033 = vdwg.mxu0
    %v1035 = vrot.slane %v1031, 4
    %v1037 = vadd.f32 %v326, %v1035
    %v1038 = vxor.u32 %v1037, 2147483648
    %v1039 = vmul.f32 %v1038, 1.442695
    %v1040 = vpow.pop %v1039
    %v1041 = vadd.f32 %v1040, 1.0
    %v1042 = vrcp.pop %v1041
    %v1043 = vmul.f32 1.0, %v1042
    %v1044 = vtanh.pop %v1037
    %v1046 = vrot.slane %v951, 6
    %v1048 = vmul.f32 %v1043, %v1046
    %1050 = vrot.lane.b32.xlu0 %v1044, 64
    %v1051 = vpop.permute.xlu0 %1050
    %v1053 = vmul.f32 %v1043, %v1051
    %1055 = vrot.lane.b32.xlu0 %v1053, 32
    %v1056 = vpop.permute.xlu0 %1055
    %v1058 = vadd.f32 %v1048, %v1056
    %v1059 = vtanh.pop %v1058
    %1061 = vrot.lane.b32.xlu0 %v1059, 64
    %v1062 = vpop.permute.xlu0 %1061
    %v1064 = vmul.f32 %v1043, %v1062
    %v1066 = vrot.slane %v1064, 4
    %1067 = vrot.lane.b32.xlu0 %v1066, 32
    %v1068 = vpop.permute.xlu0 %1067
    %v1069 = vsel %vm329, %v1068, 0
    %1071 = vmatprep.subr.mxu0 0.0
    %1072 = vmatpush1.msra.mxu0 %v182
    %1073 = vmatprep.subr.mxu0 0.0
    %1074 = vmatpush1.msra.mxu0 %v183
    %1075 = vmatprep.subr.mxu0 0.0
    %1076 = vmatpush1.msra.mxu0 %v184
    %1077 = vmatprep.subr.mxu0 0.0
    %1078 = vmatpush1.msra.mxu0 %v185
    %1079 = vmatprep.subr.mxu0 0.0
    %1080 = vmatpush1.msra.mxu0 0.0
    %1081 = vmatprep.subr.mxu0 0.0
    %1082 = vmatpush1.msra.mxu0 0.0
    %1083 = vmatprep.subr.mxu0 0.0
    %1084 = vmatpush1.msra.mxu0 0.0
    %1085 = vmatprep.subr.mxu0 0.0
    %1086 = vmatpush1.msra.mxu0 0.0
    %1087 = vmatprep.subr.mxu0 0.0
    %1088 = vmatpush1.msra.mxu0 0.0
    %1089 = vmatprep.subr.mxu0 0.0
    %1090 = vmatpush1.msra.mxu0 0.0
    %1091 = vmatprep.subr.mxu0 0.0
    %1092 = vmatpush1.msra.mxu0 0.0
    %1093 = vmatprep.subr.mxu0 0.0
    %1094 = vmatpush1.msra.mxu0 0.0
    %1095 = vmatprep.subr.mxu0 0.0
    %1096 = vmatpush1.msra.mxu0 0.0
    %1097 = vmatprep.subr.mxu0 0.0
    %1098 = vmatpush1.msra.mxu0 0.0
    %1099 = vmatprep.subr.mxu0 0.0
    %1100 = vmatpush1.msra.mxu0 0.0
    %1101 = vmatprep.subr.mxu0 0.0
    %1102 = vmatpush1.msra.mxu0 0.0
    %1103 = vmatprep.subr.mxu0 0.0
    %1104 = vmatpush1.msra.mxu0 0.0
    %1105 = vmatprep.subr.mxu0 0.0
    %1106 = vmatpush1.msra.mxu0 0.0
    %1107 = vmatprep.subr.mxu0 0.0
    %1108 = vmatpush1.msra.mxu0 0.0
    %1109 = vmatprep.subr.mxu0 0.0
    %1110 = vmatpush1.msra.mxu0 0.0
    %1111 = vmatprep.subr.mxu0 0.0
    %1112 = vmatpush1.msra.mxu0 0.0
    %1113 = vmatprep.subr.mxu0 0.0
    %1114 = vmatpush1.msra.mxu0 0.0
    %1115 = vmatprep.subr.mxu0 0.0
    %1116 = vmatpush1.msra.mxu0 0.0
    %1117 = vmatprep.subr.mxu0 0.0
    %1118 = vmatpush1.msra.mxu0 0.0
    %1119 = vmatprep.subr.mxu0 0.0
    %1120 = vmatpush1.msra.mxu0 0.0
    %1121 = vmatprep.subr.mxu0 0.0
    %1122 = vmatpush1.msra.mxu0 0.0
    %1123 = vmatprep.subr.mxu0 0.0
    %1124 = vmatpush1.msra.mxu0 0.0
    %1125 = vmatprep.subr.mxu0 0.0
    %1126 = vmatpush1.msra.mxu0 0.0
    %1127 = vmatprep.subr.mxu0 0.0
    %1128 = vmatpush1.msra.mxu0 0.0
    %1129 = vmatprep.subr.mxu0 0.0
    %1130 = vmatpush1.msra.mxu0 0.0
    %1131 = vmatprep.subr.mxu0 0.0
    %1132 = vmatpush1.msra.mxu0 0.0
    %1133 = vmatprep.subr.mxu0 0.0
    %1134 = vmatpush1.msra.mxu0 0.0
    %1135 = vmatprep.mubr.f32.mxu0 0.0
    %1136 = vmatmul.mubr.f32.gmra.mrb[0].mxu0 %v1069
    %v1137 = vpop.f32.mrb[0].mxu0
    %v1138 = vadd.f32 0.0, %v1137
    %v1139 = vpop.f32.mrb[0].mxu0
    %1140 = vdwg.mxu0
    %v1142 = vrot.slane %v1138, 2
    %v1144 = vadd.f32 %v326, %v1142
    %v1145 = vxor.u32 %v1144, 2147483648
    %v1146 = vmul.f32 %v1145, 1.442695
    %v1147 = vpow.pop %v1146
    %v1148 = vadd.f32 %v1147, 1.0
    %v1149 = vrcp.pop %v1148
    %v1150 = vmul.f32 1.0, %v1149
    %v1151 = vtanh.pop %v1144
    %v1153 = vrot.slane %v1058, 6
    %v1155 = vmul.f32 %v1150, %v1153
    %1157 = vrot.lane.b32.xlu0 %v1151, 64
    %v1158 = vpop.permute.xlu0 %1157
    %v1160 = vmul.f32 %v1150, %v1158
    %1162 = vrot.lane.b32.xlu0 %v1160, 32
    %v1163 = vpop.permute.xlu0 %1162
    %v1165 = vadd.f32 %v1155, %v1163
    %v1166 = vtanh.pop %v1165
    %1168 = vrot.lane.b32.xlu0 %v1166, 64
    %v1169 = vpop.permute.xlu0 %1168
    %v1171 = vmul.f32 %v1150, %v1169
    %vm1172 = vcmask 1041408
    %v1173 = vsel %vm1172, %v427, %v533
    %vm1174 = vcmask 1043456
    %v1175 = vsel %vm1174, %v1173, %v640
    %vm1176 = vcmask 1045504
    %v1177 = vsel %vm1176, %v1175, %v747
    %v1178 = vsel %vm1172, %v851, %v957
    %v1179 = vsel %vm1174, %v1178, %v1064
    %v1180 = vsel %vm1176, %v1179, %v1171
    %v1182 = vlaneseq
    %v1183 = vshrl.u32 %v1182, 7
    %v1184 = vsub.s32 0, %v1183
    %v1185 = vrot.slane %v191, %v1184
    %1189 = vrot.lane.b32.xlu0 %v1177, 32
    %v1190 = vpop.permute.xlu0 %1189
    %1191 = vrot.lane.b32.xlu0 %v1180, 32
    %v1192 = vpop.permute.xlu0 %1191
    %v1193 = vsel %vm329, %v1190, 0
    %v1195 = vsel %vm329, %v1192, 0
    %1197 = vmatprep.subr.mxu0 0.0
    %1198 = vmatpush1.msra.mxu0 %v187
    %1199 = vmatprep.subr.mxu0 0.0
    %1200 = vmatpush1.msra.mxu0 %v188
    %1201 = vmatprep.subr.mxu0 0.0
    %1202 = vmatpush1.msra.mxu0 %v189
    %1203 = vmatprep.subr.mxu0 0.0
    %1204 = vmatpush1.msra.mxu0 %v190
    %1205 = vmatprep.subr.mxu0 0.0
    %1206 = vmatpush1.msra.mxu0 0.0
    %1207 = vmatprep.subr.mxu0 0.0
    %1208 = vmatpush1.msra.mxu0 0.0
    %1209 = vmatprep.subr.mxu0 0.0
    %1210 = vmatpush1.msra.mxu0 0.0
    %1211 = vmatprep.subr.mxu0 0.0
    %1212 = vmatpush1.msra.mxu0 0.0
    %1213 = vmatprep.subr.mxu0 0.0
    %1214 = vmatpush1.msra.mxu0 0.0
    %1215 = vmatprep.subr.mxu0 0.0
    %1216 = vmatpush1.msra.mxu0 0.0
    %1217 = vmatprep.subr.mxu0 0.0
    %1218 = vmatpush1.msra.mxu0 0.0
    %1219 = vmatprep.subr.mxu0 0.0
    %1220 = vmatpush1.msra.mxu0 0.0
    %1221 = vmatprep.subr.mxu0 0.0
    %1222 = vmatpush1.msra.mxu0 0.0
    %1223 = vmatprep.subr.mxu0 0.0
    %1224 = vmatpush1.msra.mxu0 0.0
    %1225 = vmatprep.subr.mxu0 0.0
    %1226 = vmatpush1.msra.mxu0 0.0
    %1227 = vmatprep.subr.mxu0 0.0
    %1228 = vmatpush1.msra.mxu0 0.0
    %1229 = vmatprep.subr.mxu0 0.0
    %1230 = vmatpush1.msra.mxu0 0.0
    %1231 = vmatprep.subr.mxu0 0.0
    %1232 = vmatpush1.msra.mxu0 0.0
    %1233 = vmatprep.subr.mxu0 0.0
    %1234 = vmatpush1.msra.mxu0 0.0
    %1235 = vmatprep.subr.mxu0 0.0
    %1236 = vmatpush1.msra.mxu0 0.0
    %1237 = vmatprep.subr.mxu0 0.0
    %1238 = vmatpush1.msra.mxu0 0.0
    %1239 = vmatprep.subr.mxu0 0.0
    %1240 = vmatpush1.msra.mxu0 0.0
    %1241 = vmatprep.subr.mxu0 0.0
    %1242 = vmatpush1.msra.mxu0 0.0
    %1243 = vmatprep.subr.mxu0 0.0
    %1244 = vmatpush1.msra.mxu0 0.0
    %1245 = vmatprep.subr.mxu0 0.0
    %1246 = vmatpush1.msra.mxu0 0.0
    %1247 = vmatprep.subr.mxu0 0.0
    %1248 = vmatpush1.msra.mxu0 0.0
    %1249 = vmatprep.subr.mxu0 0.0
    %1250 = vmatpush1.msra.mxu0 0.0
    %1251 = vmatprep.subr.mxu0 0.0
    %1252 = vmatpush1.msra.mxu0 0.0
    %1253 = vmatprep.subr.mxu0 0.0
    %1254 = vmatpush1.msra.mxu0 0.0
    %1255 = vmatprep.subr.mxu0 0.0
    %1256 = vmatpush1.msra.mxu0 0.0
    %1257 = vmatprep.subr.mxu0 0.0
    %1258 = vmatpush1.msra.mxu0 0.0
    %1259 = vmatprep.subr.mxu0 0.0
    %1260 = vmatpush1.msra.mxu0 0.0
    %1261 = vmatprep.mubr.f32.mxu0 0.0
    %1262 = vmatmul.mubr.f32.gmra.mrb[0].mxu0 %v1193
    %v1263 = vpop.f32.mrb[0].mxu0
    %v1264 = vadd.f32 %v1185, %v1263
    %v1265 = vpop.f32.mrb[0].mxu0
    %1266 = vmatprep.mubr.f32.mxu0 0.0
    %1267 = vmatmul.mubr.f32.gmra.mrb[0].mxu0 %v1195
    %v1268 = vpop.f32.mrb[0].mxu0
    %v1269 = vadd.f32 %v1185, %v1268
    %v1270 = vpop.f32.mrb[0].mxu0
    %1271 = vdwg.mxu0
    %v1272 = vtanh.pop %v1264
    %v1273 = vtanh.pop %v1269
    %v1275 = vlaneseq
    %v1276 = vshrl.u32 %v1275, 7
    %v1277 = vsub.s32 0, %v1276
    %v1278 = vrot.slane %v196, %v1277
    %v1281 = vsel %vm329, %v1272, 0
    %v1284 = vsel %vm329, %v1273, 0
    %1286 = vmatprep.subr.mxu0 0.0
    %1287 = vmatpush1.msra.mxu0 %v192
    %1288 = vmatprep.subr.mxu0 0.0
    %1289 = vmatpush1.msra.mxu0 %v193
    %1290 = vmatprep.subr.mxu0 0.0
    %1291 = vmatpush1.msra.mxu0 %v194
    %1292 = vmatprep.subr.mxu0 0.0
    %1293 = vmatpush1.msra.mxu0 %v195
    %1294 = vmatprep.subr.mxu0 0.0
    %1295 = vmatpush1.msra.mxu0 0.0
    %1296 = vmatprep.subr.mxu0 0.0
    %1297 = vmatpush1.msra.mxu0 0.0
    %1298 = vmatprep.subr.mxu0 0.0
    %1299 = vmatpush1.msra.mxu0 0.0
    %1300 = vmatprep.subr.mxu0 0.0
    %1301 = vmatpush1.msra.mxu0 0.0
    %1302 = vmatprep.subr.mxu0 0.0
    %1303 = vmatpush1.msra.mxu0 0.0
    %1304 = vmatprep.subr.mxu0 0.0
    %1305 = vmatpush1.msra.mxu0 0.0
    %1306 = vmatprep.subr.mxu0 0.0
    %1307 = vmatpush1.msra.mxu0 0.0
    %1308 = vmatprep.subr.mxu0 0.0
    %1309 = vmatpush1.msra.mxu0 0.0
    %1310 = vmatprep.subr.mxu0 0.0
    %1311 = vmatpush1.msra.mxu0 0.0
    %1312 = vmatprep.subr.mxu0 0.0
    %1313 = vmatpush1.msra.mxu0 0.0
    %1314 = vmatprep.subr.mxu0 0.0
    %1315 = vmatpush1.msra.mxu0 0.0
    %1316 = vmatprep.subr.mxu0 0.0
    %1317 = vmatpush1.msra.mxu0 0.0
    %1318 = vmatprep.subr.mxu0 0.0
    %1319 = vmatpush1.msra.mxu0 0.0
    %1320 = vmatprep.subr.mxu0 0.0
    %1321 = vmatpush1.msra.mxu0 0.0
    %1322 = vmatprep.subr.mxu0 0.0
    %1323 = vmatpush1.msra.mxu0 0.0
    %1324 = vmatprep.subr.mxu0 0.0
    %1325 = vmatpush1.msra.mxu0 0.0
    %1326 = vmatprep.subr.mxu0 0.0
    %1327 = vmatpush1.msra.mxu0 0.0
    %1328 = vmatprep.subr.mxu0 0.0
    %1329 = vmatpush1.msra.mxu0 0.0
    %1330 = vmatprep.subr.mxu0 0.0
    %1331 = vmatpush1.msra.mxu0 0.0
    %1332 = vmatprep.subr.mxu0 0.0
    %1333 = vmatpush1.msra.mxu0 0.0
    %1334 = vmatprep.subr.mxu0 0.0
    %1335 = vmatpush1.msra.mxu0 0.0
    %1336 = vmatprep.subr.mxu0 0.0
    %1337 = vmatpush1.msra.mxu0 0.0
    %1338 = vmatprep.subr.mxu0 0.0
    %1339 = vmatpush1.msra.mxu0 0.0
    %1340 = vmatprep.subr.mxu0 0.0
    %1341 = vmatpush1.msra.mxu0 0.0
    %1342 = vmatprep.subr.mxu0 0.0
    %1343 = vmatpush1.msra.mxu0 0.0
    %1344 = vmatprep.subr.mxu0 0.0
    %1345 = vmatpush1.msra.mxu0 0.0
    %1346 = vmatprep.subr.mxu0 0.0
    %1347 = vmatpush1.msra.mxu0 0.0
    %1348 = vmatprep.subr.mxu0 0.0
    %1349 = vmatpush1.msra.mxu0 0.0
    %1350 = vmatprep.mubr.f32.mxu0 0.0
    %1351 = vmatmul.mubr.f32.gmra.mrb[0].mxu0 %v1281
    %v1352 = vpop.f32.mrb[0].mxu0
    %v1353 = vadd.f32 %v1278, %v1352
    %v1354 = vpop.f32.mrb[0].mxu0
    %1355 = vmatprep.mubr.f32.mxu0 0.0
    %1356 = vmatmul.mubr.f32.gmra.mrb[0].mxu0 %v1284
    %v1357 = vpop.f32.mrb[0].mxu0
    %v1358 = vadd.f32 %v1278, %v1357
    %v1359 = vpop.f32.mrb[0].mxu0
    %1360 = vdwg.mxu0
    %v1361 = vtanh.pop %v1353
    %v1362 = vtanh.pop %v1358
    %v1363 = vmul.f32 %v1361, 2.0
    %v1364 = vmul.f32 %v1362, 2.0
    %v1365 = vld [vmem:[%s1] sm:$0xff]
    %v1366 = vld [vmem:[%s1 + $0x8] sm:$0x3f]
    %1367 = vset.pattern.permute.xlu0 0
    %1368 = vperm.xlu0 %1367, %v1365
    %v1369 = vpop.permute.xlu0 %1368
    %1370 = vset.pattern.permute.xlu0 0
    %1371 = vperm.xlu0 %1370, %v1366
    %v1372 = vpop.permute.xlu0 %1371
    %vm1373 = vcmp.eq.s32.totalorder %v228, %v1369
    %vm1374 = vcmp.eq.s32.totalorder %v228, %v1372
    %v1375 = vsel %vm1373, 1, 0
    %v1376 = vsel %vm1374, 1, 0
    %v1377 = vcvt.s32.f32 %v1375
    %v1378 = vcvt.s32.f32 %v1376
    %v1380 = vlaneseq
    %v1381 = vshrl.u32 %v1380, 7
    %v1382 = vsub.s32 0, %v1381
    %v1383 = vrot.slane %v218, %v1382
    %v1386 = vsel %vm247, %v1377, 0
    %v1389 = vsel %vm247, %v1378, 0
    %1391 = vmatprep.subr.mxu0 0.0
    %1392 = vmatpush1.msra.mxu0 %v202
    %1393 = vmatprep.subr.mxu0 0.0
    %1394 = vmatpush1.msra.mxu0 %v203
    %1395 = vmatprep.subr.mxu0 0.0
    %1396 = vmatpush1.msra.mxu0 %v204
    %1397 = vmatprep.subr.mxu0 0.0
    %1398 = vmatpush1.msra.mxu0 %v205
    %1399 = vmatprep.subr.mxu0 0.0
    %1400 = vmatpush1.msra.mxu0 %v206
    %1401 = vmatprep.subr.mxu0 0.0
    %1402 = vmatpush1.msra.mxu0 %v207
    %1403 = vmatprep.subr.mxu0 0.0
    %1404 = vmatpush1.msra.mxu0 %v208
    %1405 = vmatprep.subr.mxu0 0.0
    %1406 = vmatpush1.msra.mxu0 %v209
    %1407 = vmatprep.subr.mxu0 0.0
    %1408 = vmatpush1.msra.mxu0 0.0
    %1409 = vmatprep.subr.mxu0 0.0
    %1410 = vmatpush1.msra.mxu0 0.0
    %1411 = vmatprep.subr.mxu0 0.0
    %1412 = vmatpush1.msra.mxu0 0.0
    %1413 = vmatprep.subr.mxu0 0.0
    %1414 = vmatpush1.msra.mxu0 0.0
    %1415 = vmatprep.subr.mxu0 0.0
    %1416 = vmatpush1.msra.mxu0 0.0
    %1417 = vmatprep.subr.mxu0 0.0
    %1418 = vmatpush1.msra.mxu0 0.0
    %1419 = vmatprep.subr.mxu0 0.0
    %1420 = vmatpush1.msra.mxu0 0.0
    %1421 = vmatprep.subr.mxu0 0.0
    %1422 = vmatpush1.msra.mxu0 0.0
    %1423 = vmatprep.subr.mxu0 0.0
    %1424 = vmatpush1.msra.mxu0 0.0
    %1425 = vmatprep.subr.mxu0 0.0
    %1426 = vmatpush1.msra.mxu0 0.0
    %1427 = vmatprep.subr.mxu0 0.0
    %1428 = vmatpush1.msra.mxu0 0.0
    %1429 = vmatprep.subr.mxu0 0.0
    %1430 = vmatpush1.msra.mxu0 0.0
    %1431 = vmatprep.subr.mxu0 0.0
    %1432 = vmatpush1.msra.mxu0 0.0
    %1433 = vmatprep.subr.mxu0 0.0
    %1434 = vmatpush1.msra.mxu0 0.0
    %1435 = vmatprep.subr.mxu0 0.0
    %1436 = vmatpush1.msra.mxu0 0.0
    %1437 = vmatprep.subr.mxu0 0.0
    %1438 = vmatpush1.msra.mxu0 0.0
    %1439 = vmatprep.subr.mxu0 0.0
    %1440 = vmatpush1.msra.mxu0 0.0
    %1441 = vmatprep.subr.mxu0 0.0
    %1442 = vmatpush1.msra.mxu0 0.0
    %1443 = vmatprep.subr.mxu0 0.0
    %1444 = vmatpush1.msra.mxu0 0.0
    %1445 = vmatprep.subr.mxu0 0.0
    %1446 = vmatpush1.msra.mxu0 0.0
    %1447 = vmatprep.subr.mxu0 0.0
    %1448 = vmatpush1.msra.mxu0 0.0
    %1449 = vmatprep.subr.mxu0 0.0
    %1450 = vmatpush1.msra.mxu0 0.0
    %1451 = vmatprep.subr.mxu0 0.0
    %1452 = vmatpush1.msra.mxu0 0.0
    %1453 = vmatprep.subr.mxu0 0.0
    %1454 = vmatpush1.msra.mxu0 0.0
    %1455 = vmatprep.mubr.f32.mxu0 0.0
    %1456 = vmatmul.mubr.f32.gmra.mrb[0].mxu0 %v1386
    %v1457 = vpop.f32.mrb[0].mxu0
    %v1458 = vadd.f32 %v1383, %v1457
    %v1459 = vpop.f32.mrb[0].mxu0
    %1460 = vmatprep.mubr.f32.mxu0 0.0
    %1461 = vmatmul.mubr.f32.gmra.mrb[0].mxu0 %v1389
    %v1462 = vpop.f32.mrb[0].mxu0
    %v1463 = vadd.f32 %v1383, %v1462
    %v1464 = vpop.f32.mrb[0].mxu0
    %1465 = vdwg.mxu0
    %v1466 = vtanh.pop %v201
    %v1468 = vlaneseq
    %v1469 = vshrl.u32 %v1468, 7
    %v1470 = vsub.s32 0, %v1469
    %v1471 = vrot.slane %v1466, %v1470
    %v1472 = vsel %vm329, %v1471, 0
    %v1475 = vsel %vm329, %v1363, 0
    %v1478 = vsel %vm329, %v1364, 0
    %1480 = vmatprep.subr.mxu0 0.0
    %1481 = vmatpush1.xpose.msra.mxu0 %v1475
    %1482 = vmatprep.subr.mxu0 0.0
    %1483 = vmatpush1.xpose.msra.mxu0 %v1478
    %1484 = vmatprep.subr.mxu0 0.0
    %1485 = vmatpush1.xpose.msra.mxu0 0.0
    %1486 = vmatprep.subr.mxu0 0.0
    %1487 = vmatpush1.xpose.msra.mxu0 0.0
    %1488 = vmatprep.subr.mxu0 0.0
    %1489 = vmatpush1.xpose.msra.mxu0 0.0
    %1490 = vmatprep.subr.mxu0 0.0
    %1491 = vmatpush1.xpose.msra.mxu0 0.0
    %1492 = vmatprep.subr.mxu0 0.0
    %1493 = vmatpush1.xpose.msra.mxu0 0.0
    %1494 = vmatprep.subr.mxu0 0.0
    %1495 = vmatpush1.xpose.msra.mxu0 0.0
    %1496 = vmatprep.subr.mxu0 0.0
    %1497 = vmatpush1.xpose.msra.mxu0 0.0
    %1498 = vmatprep.subr.mxu0 0.0
    %1499 = vmatpush1.xpose.msra.mxu0 0.0
    %1500 = vmatprep.subr.mxu0 0.0
    %1501 = vmatpush1.xpose.msra.mxu0 0.0
    %1502 = vmatprep.subr.mxu0 0.0
    %1503 = vmatpush1.xpose.msra.mxu0 0.0
    %1504 = vmatprep.subr.mxu0 0.0
    %1505 = vmatpush1.xpose.msra.mxu0 0.0
    %1506 = vmatprep.subr.mxu0 0.0
    %1507 = vmatpush1.xpose.msra.mxu0 0.0
    %1508 = vmatprep.subr.mxu0 0.0
    %1509 = vmatpush1.xpose.msra.mxu0 0.0
    %1510 = vmatprep.subr.mxu0 0.0
    %1511 = vmatpush1.xpose.msra.mxu0 0.0
    %1512 = vmatprep.subr.mxu0 0.0
    %1513 = vmatpush1.xpose.msra.mxu0 0.0
    %1514 = vmatprep.subr.mxu0 0.0
    %1515 = vmatpush1.xpose.msra.mxu0 0.0
    %1516 = vmatprep.subr.mxu0 0.0
    %1517 = vmatpush1.xpose.msra.mxu0 0.0
    %1518 = vmatprep.subr.mxu0 0.0
    %1519 = vmatpush1.xpose.msra.mxu0 0.0
    %1520 = vmatprep.subr.mxu0 0.0
    %1521 = vmatpush1.xpose.msra.mxu0 0.0
    %1522 = vmatprep.subr.mxu0 0.0
    %1523 = vmatpush1.xpose.msra.mxu0 0.0
    %1524 = vmatprep.subr.mxu0 0.0
    %1525 = vmatpush1.xpose.msra.mxu0 0.0
    %1526 = vmatprep.subr.mxu0 0.0
    %1527 = vmatpush1.xpose.msra.mxu0 0.0
    %1528 = vmatprep.subr.mxu0 0.0
    %1529 = vmatpush1.xpose.msra.mxu0 0.0
    %1530 = vmatprep.subr.mxu0 0.0
    %1531 = vmatpush1.xpose.msra.mxu0 0.0
    %1532 = vmatprep.subr.mxu0 0.0
    %1533 = vmatpush1.xpose.msra.mxu0 0.0
    %1534 = vmatprep.subr.mxu0 0.0
    %1535 = vmatpush1.xpose.msra.mxu0 0.0
    %1536 = vmatprep.subr.mxu0 0.0
    %1537 = vmatpush1.xpose.msra.mxu0 0.0
    %1538 = vmatprep.subr.mxu0 0.0
    %1539 = vmatpush1.xpose.msra.mxu0 0.0
    %1540 = vmatprep.subr.mxu0 0.0
    %1541 = vmatpush1.xpose.msra.mxu0 0.0
    %1542 = vmatprep.subr.mxu0 0.0
    %1543 = vmatpush1.xpose.msra.mxu0 0.0
    %1544 = vmatprep.mubr.f32.mxu0 0.0
    %1545 = vmatmul.mubr.f32.gmra.mrb[0].mxu0 %v1472
    %v1546 = vpop.f32.mrb[0].mxu0
    %v1547 = vadd.f32 0.0, %v1546
    %v1548 = vpop.f32.mrb[0].mxu0
    %1549 = vdwg.mxu0
    %vm1550 = vcmp.gt.f32.partialorder %v224, 0.5
    %v1551 = vsel %vm1550, %v1547, -1e+30
    %vm1552 = vcmask 123904
    %v1553 = vsel %vm1552, %v1551, -inf
    %1554 = vmax.xlane.f32.xlu0 %v1553
    %v1555 = vpop.xlane.xlu0 %1554
    %v1556 = vsub.f32 %v1551, %v1555
    %v1557 = vmul.f32 %v1556, 1.442695
    %v1558 = vpow.pop %v1557
    %v1559 = vsel %vm1552, %v1558, 0.0
    %1560 = vadd.xlane.f32.xlu0 %v1559
    %v1561 = vpop.xlane.xlu0 %1560
    %v1562 = vrcp.pop %v1561
    %v1563 = vmul.f32 %v1558, %v1562
    %vm1564 = vcmask 130048
    %v1566 = vsel %vm1564, %v1563, 0
    %1568 = vmatprep.subr.mxu0 0.0
    %1569 = vmatpush1.msra.mxu0 %v1272
    %1570 = vmatprep.subr.mxu0 0.0
    %1571 = vmatpush1.msra.mxu0 %v1273
    %1572 = vmatprep.subr.mxu0 0.0
    %1573 = vmatpush1.msra.mxu0 0.0
    %1574 = vmatprep.subr.mxu0 0.0
    %1575 = vmatpush1.msra.mxu0 0.0
    %1576 = vmatprep.subr.mxu0 0.0
    %1577 = vmatpush1.msra.mxu0 0.0
    %1578 = vmatprep.subr.mxu0 0.0
    %1579 = vmatpush1.msra.mxu0 0.0
    %1580 = vmatprep.subr.mxu0 0.0
    %1581 = vmatpush1.msra.mxu0 0.0
    %1582 = vmatprep.subr.mxu0 0.0
    %1583 = vmatpush1.msra.mxu0 0.0
    %1584 = vmatprep.subr.mxu0 0.0
    %1585 = vmatpush1.msra.mxu0 0.0
    %1586 = vmatprep.subr.mxu0 0.0
    %1587 = vmatpush1.msra.mxu0 0.0
    %1588 = vmatprep.subr.mxu0 0.0
    %1589 = vmatpush1.msra.mxu0 0.0
    %1590 = vmatprep.subr.mxu0 0.0
    %1591 = vmatpush1.msra.mxu0 0.0
    %1592 = vmatprep.subr.mxu0 0.0
    %1593 = vmatpush1.msra.mxu0 0.0
    %1594 = vmatprep.subr.mxu0 0.0
    %1595 = vmatpush1.msra.mxu0 0.0
    %1596 = vmatprep.subr.mxu0 0.0
    %1597 = vmatpush1.msra.mxu0 0.0
    %1598 = vmatprep.subr.mxu0 0.0
    %1599 = vmatpush1.msra.mxu0 0.0
    %1600 = vmatprep.subr.mxu0 0.0
    %1601 = vmatpush1.msra.mxu0 0.0
    %1602 = vmatprep.subr.mxu0 0.0
    %1603 = vmatpush1.msra.mxu0 0.0
    %1604 = vmatprep.subr.mxu0 0.0
    %1605 = vmatpush1.msra.mxu0 0.0
    %1606 = vmatprep.subr.mxu0 0.0
    %1607 = vmatpush1.msra.mxu0 0.0
    %1608 = vmatprep.subr.mxu0 0.0
    %1609 = vmatpush1.msra.mxu0 0.0
    %1610 = vmatprep.subr.mxu0 0.0
    %1611 = vmatpush1.msra.mxu0 0.0
    %1612 = vmatprep.subr.mxu0 0.0
    %1613 = vmatpush1.msra.mxu0 0.0
    %1614 = vmatprep.subr.mxu0 0.0
    %1615 = vmatpush1.msra.mxu0 0.0
    %1616 = vmatprep.subr.mxu0 0.0
    %1617 = vmatpush1.msra.mxu0 0.0
    %1618 = vmatprep.subr.mxu0 0.0
    %1619 = vmatpush1.msra.mxu0 0.0
    %1620 = vmatprep.subr.mxu0 0.0
    %1621 = vmatpush1.msra.mxu0 0.0
    %1622 = vmatprep.subr.mxu0 0.0
    %1623 = vmatpush1.msra.mxu0 0.0
    %1624 = vmatprep.subr.mxu0 0.0
    %1625 = vmatpush1.msra.mxu0 0.0
    %1626 = vmatprep.subr.mxu0 0.0
    %1627 = vmatpush1.msra.mxu0 0.0
    %1628 = vmatprep.subr.mxu0 0.0
    %1629 = vmatpush1.msra.mxu0 0.0
    %1630 = vmatprep.subr.mxu0 0.0
    %1631 = vmatpush1.msra.mxu0 0.0
    %1632 = vmatprep.mubr.f32.mxu0 0.0
    %1633 = vmatmul.mubr.f32.gmra.mrb[0].mxu0 %v1566
    %v1634 = vpop.f32.mrb[0].mxu0
    %v1635 = vadd.f32 0.0, %v1634
    %v1636 = vpop.f32.mrb[0].mxu0
    %1637 = vdwg.mxu0
    %v1638 = vsel %vm329, %v1635, 0.0
    %v1640 = vsel %vm247, %v1638, 0
    %1642 = vmatprep.subr.mxu0 0.0
    %1643 = vmatpush1.msra.mxu0 %v210
    %1644 = vmatprep.subr.mxu0 0.0
    %1645 = vmatpush1.msra.mxu0 %v211
    %1646 = vmatprep.subr.mxu0 0.0
    %1647 = vmatpush1.msra.mxu0 %v212
    %1648 = vmatprep.subr.mxu0 0.0
    %1649 = vmatpush1.msra.mxu0 %v213
    %1650 = vmatprep.subr.mxu0 0.0
    %1651 = vmatpush1.msra.mxu0 %v214
    %1652 = vmatprep.subr.mxu0 0.0
    %1653 = vmatpush1.msra.mxu0 %v215
    %1654 = vmatprep.subr.mxu0 0.0
    %1655 = vmatpush1.msra.mxu0 %v216
    %1656 = vmatprep.subr.mxu0 0.0
    %1657 = vmatpush1.msra.mxu0 %v217
    %1658 = vmatprep.subr.mxu0 0.0
    %1659 = vmatpush1.msra.mxu0 0.0
    %1660 = vmatprep.subr.mxu0 0.0
    %1661 = vmatpush1.msra.mxu0 0.0
    %1662 = vmatprep.subr.mxu0 0.0
    %1663 = vmatpush1.msra.mxu0 0.0
    %1664 = vmatprep.subr.mxu0 0.0
    %1665 = vmatpush1.msra.mxu0 0.0
    %1666 = vmatprep.subr.mxu0 0.0
    %1667 = vmatpush1.msra.mxu0 0.0
    %1668 = vmatprep.subr.mxu0 0.0
    %1669 = vmatpush1.msra.mxu0 0.0
    %1670 = vmatprep.subr.mxu0 0.0
    %1671 = vmatpush1.msra.mxu0 0.0
    %1672 = vmatprep.subr.mxu0 0.0
    %1673 = vmatpush1.msra.mxu0 0.0
    %1674 = vmatprep.subr.mxu0 0.0
    %1675 = vmatpush1.msra.mxu0 0.0
    %1676 = vmatprep.subr.mxu0 0.0
    %1677 = vmatpush1.msra.mxu0 0.0
    %1678 = vmatprep.subr.mxu0 0.0
    %1679 = vmatpush1.msra.mxu0 0.0
    %1680 = vmatprep.subr.mxu0 0.0
    %1681 = vmatpush1.msra.mxu0 0.0
    %1682 = vmatprep.subr.mxu0 0.0
    %1683 = vmatpush1.msra.mxu0 0.0
    %1684 = vmatprep.subr.mxu0 0.0
    %1685 = vmatpush1.msra.mxu0 0.0
    %1686 = vmatprep.subr.mxu0 0.0
    %1687 = vmatpush1.msra.mxu0 0.0
    %1688 = vmatprep.subr.mxu0 0.0
    %1689 = vmatpush1.msra.mxu0 0.0
    %1690 = vmatprep.subr.mxu0 0.0
    %1691 = vmatpush1.msra.mxu0 0.0
    %1692 = vmatprep.subr.mxu0 0.0
    %1693 = vmatpush1.msra.mxu0 0.0
    %1694 = vmatprep.subr.mxu0 0.0
    %1695 = vmatpush1.msra.mxu0 0.0
    %1696 = vmatprep.subr.mxu0 0.0
    %1697 = vmatpush1.msra.mxu0 0.0
    %1698 = vmatprep.subr.mxu0 0.0
    %1699 = vmatpush1.msra.mxu0 0.0
    %1700 = vmatprep.subr.mxu0 0.0
    %1701 = vmatpush1.msra.mxu0 0.0
    %1702 = vmatprep.subr.mxu0 0.0
    %1703 = vmatpush1.msra.mxu0 0.0
    %1704 = vmatprep.subr.mxu0 0.0
    %1705 = vmatpush1.msra.mxu0 0.0
    %1706 = vmatprep.mubr.f32.mxu0 0.0
    %1707 = vmatmul.mubr.f32.gmra.mrb[0].mxu0 %v1640
    %v1708 = vpop.f32.mrb[0].mxu0
    %v1709 = vadd.f32 0.0, %v1708
    %v1710 = vpop.f32.mrb[0].mxu0
    %1711 = vdwg.mxu0
    %v1712 = vadd.f32 %v1458, %v1709
    %v1713 = vxor.u32 %v1712, 2147483648
    %v1714 = vmul.f32 %v1713, 1.442695
    %v1715 = vpow.pop %v1714
    %v1716 = vadd.f32 %v1715, 1.0
    %v1717 = vrcp.pop %v1716
    %v1718 = vmul.f32 1.0, %v1717
    %v1719 = vtanh.pop %v1712
    %v1720 = vmul.f32 %v1718, 0.0
    %1722 = vrot.lane.b32.xlu0 %v1719, 64
    %v1723 = vpop.permute.xlu0 %1722
    %v1725 = vmul.f32 %v1718, %v1723
    %1727 = vrot.lane.b32.xlu0 %v1725, 32
    %v1728 = vpop.permute.xlu0 %1727
    %v1730 = vadd.f32 %v1720, %v1728
    %v1731 = vtanh.pop %v1730
    %1733 = vrot.lane.b32.xlu0 %v1731, 64
    %v1734 = vpop.permute.xlu0 %1733
    %v1736 = vmul.f32 %v1718, %v1734
    %v1738 = vlaneseq
    %v1739 = vshrl.u32 %v1738, 7
    %v1740 = vsub.s32 0, %v1739
    %v1741 = vrot.slane %v201, %v1740
    %1744 = vrot.lane.b32.xlu0 %v1736, 32
    %v1745 = vpop.permute.xlu0 %1744
    %v1746 = vsel %vm329, %v1745, 0
    %1748 = vmatprep.subr.mxu0 0.0
    %1749 = vmatpush1.msra.mxu0 %v197
    %1750 = vmatprep.subr.mxu0 0.0
    %1751 = vmatpush1.msra.mxu0 %v198
    %1752 = vmatprep.subr.mxu0 0.0
    %1753 = vmatpush1.msra.mxu0 %v199
    %1754 = vmatprep.subr.mxu0 0.0
    %1755 = vmatpush1.msra.mxu0 %v200
    %1756 = vmatprep.subr.mxu0 0.0
    %1757 = vmatpush1.msra.mxu0 0.0
    %1758 = vmatprep.subr.mxu0 0.0
    %1759 = vmatpush1.msra.mxu0 0.0
    %1760 = vmatprep.subr.mxu0 0.0
    %1761 = vmatpush1.msra.mxu0 0.0
    %1762 = vmatprep.subr.mxu0 0.0
    %1763 = vmatpush1.msra.mxu0 0.0
    %1764 = vmatprep.subr.mxu0 0.0
    %1765 = vmatpush1.msra.mxu0 0.0
    %1766 = vmatprep.subr.mxu0 0.0
    %1767 = vmatpush1.msra.mxu0 0.0
    %1768 = vmatprep.subr.mxu0 0.0
    %1769 = vmatpush1.msra.mxu0 0.0
    %1770 = vmatprep.subr.mxu0 0.0
    %1771 = vmatpush1.msra.mxu0 0.0
    %1772 = vmatprep.subr.mxu0 0.0
    %1773 = vmatpush1.msra.mxu0 0.0
    %1774 = vmatprep.subr.mxu0 0.0
    %1775 = vmatpush1.msra.mxu0 0.0
    %1776 = vmatprep.subr.mxu0 0.0
    %1777 = vmatpush1.msra.mxu0 0.0
    %1778 = vmatprep.subr.mxu0 0.0
    %1779 = vmatpush1.msra.mxu0 0.0
    %1780 = vmatprep.subr.mxu0 0.0
    %1781 = vmatpush1.msra.mxu0 0.0
    %1782 = vmatprep.subr.mxu0 0.0
    %1783 = vmatpush1.msra.mxu0 0.0
    %1784 = vmatprep.subr.mxu0 0.0
    %1785 = vmatpush1.msra.mxu0 0.0
    %1786 = vmatprep.subr.mxu0 0.0
    %1787 = vmatpush1.msra.mxu0 0.0
    %1788 = vmatprep.subr.mxu0 0.0
    %1789 = vmatpush1.msra.mxu0 0.0
    %1790 = vmatprep.subr.mxu0 0.0
    %1791 = vmatpush1.msra.mxu0 0.0
    %1792 = vmatprep.subr.mxu0 0.0
    %1793 = vmatpush1.msra.mxu0 0.0
    %1794 = vmatprep.subr.mxu0 0.0
    %1795 = vmatpush1.msra.mxu0 0.0
    %1796 = vmatprep.subr.mxu0 0.0
    %1797 = vmatpush1.msra.mxu0 0.0
    %1798 = vmatprep.subr.mxu0 0.0
    %1799 = vmatpush1.msra.mxu0 0.0
    %1800 = vmatprep.subr.mxu0 0.0
    %1801 = vmatpush1.msra.mxu0 0.0
    %1802 = vmatprep.subr.mxu0 0.0
    %1803 = vmatpush1.msra.mxu0 0.0
    %1804 = vmatprep.subr.mxu0 0.0
    %1805 = vmatpush1.msra.mxu0 0.0
    %1806 = vmatprep.subr.mxu0 0.0
    %1807 = vmatpush1.msra.mxu0 0.0
    %1808 = vmatprep.subr.mxu0 0.0
    %1809 = vmatpush1.msra.mxu0 0.0
    %1810 = vmatprep.subr.mxu0 0.0
    %1811 = vmatpush1.msra.mxu0 0.0
    %1812 = vmatprep.mubr.f32.mxu0 0.0
    %1813 = vmatmul.mubr.f32.gmra.mrb[0].mxu0 %v1746
    %v1814 = vpop.f32.mrb[0].mxu0
    %v1815 = vadd.f32 %v1741, %v1814
    %v1816 = vpop.f32.mrb[0].mxu0
    %1817 = vdwg.mxu0
    %v1818 = vtanh.pop %v1815
    %v1820 = vsel %vm329, %v1818, 0
    %1822 = vmatprep.subr.mxu0 0.0
    %1823 = vmatpush1.xpose.msra.mxu0 %v1475
    %1824 = vmatprep.subr.mxu0 0.0
    %1825 = vmatpush1.xpose.msra.mxu0 %v1478
    %1826 = vmatprep.subr.mxu0 0.0
    %1827 = vmatpush1.xpose.msra.mxu0 0.0
    %1828 = vmatprep.subr.mxu0 0.0
    %1829 = vmatpush1.xpose.msra.mxu0 0.0
    %1830 = vmatprep.subr.mxu0 0.0
    %1831 = vmatpush1.xpose.msra.mxu0 0.0
    %1832 = vmatprep.subr.mxu0 0.0
    %1833 = vmatpush1.xpose.msra.mxu0 0.0
    %1834 = vmatprep.subr.mxu0 0.0
    %1835 = vmatpush1.xpose.msra.mxu0 0.0
    %1836 = vmatprep.subr.mxu0 0.0
    %1837 = vmatpush1.xpose.msra.mxu0 0.0
    %1838 = vmatprep.subr.mxu0 0.0
    %1839 = vmatpush1.xpose.msra.mxu0 0.0
    %1840 = vmatprep.subr.mxu0 0.0
    %1841 = vmatpush1.xpose.msra.mxu0 0.0
    %1842 = vmatprep.subr.mxu0 0.0
    %1843 = vmatpush1.xpose.msra.mxu0 0.0
    %1844 = vmatprep.subr.mxu0 0.0
    %1845 = vmatpush1.xpose.msra.mxu0 0.0
    %1846 = vmatprep.subr.mxu0 0.0
    %1847 = vmatpush1.xpose.msra.mxu0 0.0
    %1848 = vmatprep.subr.mxu0 0.0
    %1849 = vmatpush1.xpose.msra.mxu0 0.0
    %1850 = vmatprep.subr.mxu0 0.0
    %1851 = vmatpush1.xpose.msra.mxu0 0.0
    %1852 = vmatprep.subr.mxu0 0.0
    %1853 = vmatpush1.xpose.msra.mxu0 0.0
    %1854 = vmatprep.subr.mxu0 0.0
    %1855 = vmatpush1.xpose.msra.mxu0 0.0
    %1856 = vmatprep.subr.mxu0 0.0
    %1857 = vmatpush1.xpose.msra.mxu0 0.0
    %1858 = vmatprep.subr.mxu0 0.0
    %1859 = vmatpush1.xpose.msra.mxu0 0.0
    %1860 = vmatprep.subr.mxu0 0.0
    %1861 = vmatpush1.xpose.msra.mxu0 0.0
    %1862 = vmatprep.subr.mxu0 0.0
    %1863 = vmatpush1.xpose.msra.mxu0 0.0
    %1864 = vmatprep.subr.mxu0 0.0
    %1865 = vmatpush1.xpose.msra.mxu0 0.0
    %1866 = vmatprep.subr.mxu0 0.0
    %1867 = vmatpush1.xpose.msra.mxu0 0.0
    %1868 = vmatprep.subr.mxu0 0.0
    %1869 = vmatpush1.xpose.msra.mxu0 0.0
    %1870 = vmatprep.subr.mxu0 0.0
    %1871 = vmatpush1.xpose.msra.mxu0 0.0
    %1872 = vmatprep.subr.mxu0 0.0
    %1873 = vmatpush1.xpose.msra.mxu0 0.0
    %1874 = vmatprep.subr.mxu0 0.0
    %1875 = vmatpush1.xpose.msra.mxu0 0.0
    %1876 = vmatprep.subr.mxu0 0.0
    %1877 = vmatpush1.xpose.msra.mxu0 0.0
    %1878 = vmatprep.subr.mxu0 0.0
    %1879 = vmatpush1.xpose.msra.mxu0 0.0
    %1880 = vmatprep.subr.mxu0 0.0
    %1881 = vmatpush1.xpose.msra.mxu0 0.0
    %1882 = vmatprep.subr.mxu0 0.0
    %1883 = vmatpush1.xpose.msra.mxu0 0.0
    %1884 = vmatprep.subr.mxu0 0.0
    %1885 = vmatpush1.xpose.msra.mxu0 0.0
    %1886 = vmatprep.mubr.f32.mxu0 0.0
    %1887 = vmatmul.mubr.f32.gmra.mrb[0].mxu0 %v1820
    %v1888 = vpop.f32.mrb[0].mxu0
    %v1889 = vadd.f32 0.0, %v1888
    %v1890 = vpop.f32.mrb[0].mxu0
    %1891 = vdwg.mxu0
    %v1892 = vsel %vm1550, %v1889, -1e+30
    %v1893 = vsel %vm1552, %v1892, -inf
    %1894 = vmax.xlane.f32.xlu0 %v1893
    %v1895 = vpop.xlane.xlu0 %1894
    %v1896 = vsub.f32 %v1892, %v1895
    %v1897 = vmul.f32 %v1896, 1.442695
    %v1898 = vpow.pop %v1897
    %v1899 = vsel %vm1552, %v1898, 0.0
    %1900 = vadd.xlane.f32.xlu0 %v1899
    %v1901 = vpop.xlane.xlu0 %1900
    %v1902 = vrcp.pop %v1901
    %v1903 = vmul.f32 %v1898, %v1902
    %v1905 = vsel %vm1564, %v1903, 0
    %1907 = vmatprep.subr.mxu0 0.0
    %1908 = vmatpush1.msra.mxu0 %v1272
    %1909 = vmatprep.subr.mxu0 0.0
    %1910 = vmatpush1.msra.mxu0 %v1273
    %1911 = vmatprep.subr.mxu0 0.0
    %1912 = vmatpush1.msra.mxu0 0.0
    %1913 = vmatprep.subr.mxu0 0.0
    %1914 = vmatpush1.msra.mxu0 0.0
    %1915 = vmatprep.subr.mxu0 0.0
    %1916 = vmatpush1.msra.mxu0 0.0
    %1917 = vmatprep.subr.mxu0 0.0
    %1918 = vmatpush1.msra.mxu0 0.0
    %1919 = vmatprep.subr.mxu0 0.0
    %1920 = vmatpush1.msra.mxu0 0.0
    %1921 = vmatprep.subr.mxu0 0.0
    %1922 = vmatpush1.msra.mxu0 0.0
    %1923 = vmatprep.subr.mxu0 0.0
    %1924 = vmatpush1.msra.mxu0 0.0
    %1925 = vmatprep.subr.mxu0 0.0
    %1926 = vmatpush1.msra.mxu0 0.0
    %1927 = vmatprep.subr.mxu0 0.0
    %1928 = vmatpush1.msra.mxu0 0.0
    %1929 = vmatprep.subr.mxu0 0.0
    %1930 = vmatpush1.msra.mxu0 0.0
    %1931 = vmatprep.subr.mxu0 0.0
    %1932 = vmatpush1.msra.mxu0 0.0
    %1933 = vmatprep.subr.mxu0 0.0
    %1934 = vmatpush1.msra.mxu0 0.0
    %1935 = vmatprep.subr.mxu0 0.0
    %1936 = vmatpush1.msra.mxu0 0.0
    %1937 = vmatprep.subr.mxu0 0.0
    %1938 = vmatpush1.msra.mxu0 0.0
    %1939 = vmatprep.subr.mxu0 0.0
    %1940 = vmatpush1.msra.mxu0 0.0
    %1941 = vmatprep.subr.mxu0 0.0
    %1942 = vmatpush1.msra.mxu0 0.0
    %1943 = vmatprep.subr.mxu0 0.0
    %1944 = vmatpush1.msra.mxu0 0.0
    %1945 = vmatprep.subr.mxu0 0.0
    %1946 = vmatpush1.msra.mxu0 0.0
    %1947 = vmatprep.subr.mxu0 0.0
    %1948 = vmatpush1.msra.mxu0 0.0
    %1949 = vmatprep.subr.mxu0 0.0
    %1950 = vmatpush1.msra.mxu0 0.0
    %1951 = vmatprep.subr.mxu0 0.0
    %1952 = vmatpush1.msra.mxu0 0.0
    %1953 = vmatprep.subr.mxu0 0.0
    %1954 = vmatpush1.msra.mxu0 0.0
    %1955 = vmatprep.subr.mxu0 0.0
    %1956 = vmatpush1.msra.mxu0 0.0
    %1957 = vmatprep.subr.mxu0 0.0
    %1958 = vmatpush1.msra.mxu0 0.0
    %1959 = vmatprep.subr.mxu0 0.0
    %1960 = vmatpush1.msra.mxu0 0.0
    %1961 = vmatprep.subr.mxu0 0.0
    %1962 = vmatpush1.msra.mxu0 0.0
    %1963 = vmatprep.subr.mxu0 0.0
    %1964 = vmatpush1.msra.mxu0 0.0
    %1965 = vmatprep.subr.mxu0 0.0
    %1966 = vmatpush1.msra.mxu0 0.0
    %1967 = vmatprep.subr.mxu0 0.0
    %1968 = vmatpush1.msra.mxu0 0.0
    %1969 = vmatprep.subr.mxu0 0.0
    %1970 = vmatpush1.msra.mxu0 0.0
    %1971 = vmatprep.mubr.f32.mxu0 0.0
    %1972 = vmatmul.mubr.f32.gmra.mrb[0].mxu0 %v1905
    %v1973 = vpop.f32.mrb[0].mxu0
    %v1974 = vadd.f32 0.0, %v1973
    %v1975 = vpop.f32.mrb[0].mxu0
    %1976 = vdwg.mxu0
    %1977 = vrot.lane.b32.xlu0 %v1736, 64
    %v1978 = vpop.permute.xlu0 %1977
    %v1980 = vsel %vm329, %v1974, %v1978
    %v1982 = vsel %vm247, %v1980, 0
    %1984 = vmatprep.subr.mxu0 0.0
    %1985 = vmatpush1.msra.mxu0 %v210
    %1986 = vmatprep.subr.mxu0 0.0
    %1987 = vmatpush1.msra.mxu0 %v211
    %1988 = vmatprep.subr.mxu0 0.0
    %1989 = vmatpush1.msra.mxu0 %v212
    %1990 = vmatprep.subr.mxu0 0.0
    %1991 = vmatpush1.msra.mxu0 %v213
    %1992 = vmatprep.subr.mxu0 0.0
    %1993 = vmatpush1.msra.mxu0 %v214
    %1994 = vmatprep.subr.mxu0 0.0
    %1995 = vmatpush1.msra.mxu0 %v215
    %1996 = vmatprep.subr.mxu0 0.0
    %1997 = vmatpush1.msra.mxu0 %v216
    %1998 = vmatprep.subr.mxu0 0.0
    %1999 = vmatpush1.msra.mxu0 %v217
    %2000 = vmatprep.subr.mxu0 0.0
    %2001 = vmatpush1.msra.mxu0 0.0
    %2002 = vmatprep.subr.mxu0 0.0
    %2003 = vmatpush1.msra.mxu0 0.0
    %2004 = vmatprep.subr.mxu0 0.0
    %2005 = vmatpush1.msra.mxu0 0.0
    %2006 = vmatprep.subr.mxu0 0.0
    %2007 = vmatpush1.msra.mxu0 0.0
    %2008 = vmatprep.subr.mxu0 0.0
    %2009 = vmatpush1.msra.mxu0 0.0
    %2010 = vmatprep.subr.mxu0 0.0
    %2011 = vmatpush1.msra.mxu0 0.0
    %2012 = vmatprep.subr.mxu0 0.0
    %2013 = vmatpush1.msra.mxu0 0.0
    %2014 = vmatprep.subr.mxu0 0.0
    %2015 = vmatpush1.msra.mxu0 0.0
    %2016 = vmatprep.subr.mxu0 0.0
    %2017 = vmatpush1.msra.mxu0 0.0
    %2018 = vmatprep.subr.mxu0 0.0
    %2019 = vmatpush1.msra.mxu0 0.0
    %2020 = vmatprep.subr.mxu0 0.0
    %2021 = vmatpush1.msra.mxu0 0.0
    %2022 = vmatprep.subr.mxu0 0.0
    %2023 = vmatpush1.msra.mxu0 0.0
    %2024 = vmatprep.subr.mxu0 0.0
    %2025 = vmatpush1.msra.mxu0 0.0
    %2026 = vmatprep.subr.mxu0 0.0
    %2027 = vmatpush1.msra.mxu0 0.0
    %2028 = vmatprep.subr.mxu0 0.0
    %2029 = vmatpush1.msra.mxu0 0.0
    %2030 = vmatprep.subr.mxu0 0.0
    %2031 = vmatpush1.msra.mxu0 0.0
    %2032 = vmatprep.subr.mxu0 0.0
    %2033 = vmatpush1.msra.mxu0 0.0
    %2034 = vmatprep.subr.mxu0 0.0
    %2035 = vmatpush1.msra.mxu0 0.0
    %2036 = vmatprep.subr.mxu0 0.0
    %2037 = vmatpush1.msra.mxu0 0.0
    %2038 = vmatprep.subr.mxu0 0.0
    %2039 = vmatpush1.msra.mxu0 0.0
    %2040 = vmatprep.subr.mxu0 0.0
    %2041 = vmatpush1.msra.mxu0 0.0
    %2042 = vmatprep.subr.mxu0 0.0
    %2043 = vmatpush1.msra.mxu0 0.0
    %2044 = vmatprep.subr.mxu0 0.0
    %2045 = vmatpush1.msra.mxu0 0.0
    %2046 = vmatprep.subr.mxu0 0.0
    %2047 = vmatpush1.msra.mxu0 0.0
    %2048 = vmatprep.mubr.f32.mxu0 0.0
    %2049 = vmatmul.mubr.f32.gmra.mrb[0].mxu0 %v1982
    %v2050 = vpop.f32.mrb[0].mxu0
    %v2051 = vadd.f32 0.0, %v2050
    %v2052 = vpop.f32.mrb[0].mxu0
    %2053 = vdwg.mxu0
    %v2055 = vrot.slane %v2051, 6
    %v2057 = vadd.f32 %v1458, %v2055
    %v2058 = vxor.u32 %v2057, 2147483648
    %v2059 = vmul.f32 %v2058, 1.442695
    %v2060 = vpow.pop %v2059
    %v2061 = vadd.f32 %v2060, 1.0
    %v2062 = vrcp.pop %v2061
    %v2063 = vmul.f32 1.0, %v2062
    %v2064 = vtanh.pop %v2057
    %v2066 = vrot.slane %v1730, 6
    %v2068 = vmul.f32 %v2063, %v2066
    %2070 = vrot.lane.b32.xlu0 %v2064, 64
    %v2071 = vpop.permute.xlu0 %2070
    %v2073 = vmul.f32 %v2063, %v2071
    %2075 = vrot.lane.b32.xlu0 %v2073, 32
    %v2076 = vpop.permute.xlu0 %2075
    %v2078 = vadd.f32 %v2068, %v2076
    %v2079 = vtanh.pop %v2078
    %2081 = vrot.lane.b32.xlu0 %v2079, 64
    %v2082 = vpop.permute.xlu0 %2081
    %v2084 = vmul.f32 %v2063, %v2082
    %v2086 = vrot.slane %v2084, 2
    %2087 = vrot.lane.b32.xlu0 %v2086, 32
    %v2088 = vpop.permute.xlu0 %2087
    %v2089 = vsel %vm329, %v2088, 0
    %2091 = vmatprep.subr.mxu0 0.0
    %2092 = vmatpush1.msra.mxu0 %v197
    %2093 = vmatprep.subr.mxu0 0.0
    %2094 = vmatpush1.msra.mxu0 %v198
    %2095 = vmatprep.subr.mxu0 0.0
    %2096 = vmatpush1.msra.mxu0 %v199
    %2097 = vmatprep.subr.mxu0 0.0
    %2098 = vmatpush1.msra.mxu0 %v200
    %2099 = vmatprep.subr.mxu0 0.0
    %2100 = vmatpush1.msra.mxu0 0.0
    %2101 = vmatprep.subr.mxu0 0.0
    %2102 = vmatpush1.msra.mxu0 0.0
    %2103 = vmatprep.subr.mxu0 0.0
    %2104 = vmatpush1.msra.mxu0 0.0
    %2105 = vmatprep.subr.mxu0 0.0
    %2106 = vmatpush1.msra.mxu0 0.0
    %2107 = vmatprep.subr.mxu0 0.0
    %2108 = vmatpush1.msra.mxu0 0.0
    %2109 = vmatprep.subr.mxu0 0.0
    %2110 = vmatpush1.msra.mxu0 0.0
    %2111 = vmatprep.subr.mxu0 0.0
    %2112 = vmatpush1.msra.mxu0 0.0
    %2113 = vmatprep.subr.mxu0 0.0
    %2114 = vmatpush1.msra.mxu0 0.0
    %2115 = vmatprep.subr.mxu0 0.0
    %2116 = vmatpush1.msra.mxu0 0.0
    %2117 = vmatprep.subr.mxu0 0.0
    %2118 = vmatpush1.msra.mxu0 0.0
    %2119 = vmatprep.subr.mxu0 0.0
    %2120 = vmatpush1.msra.mxu0 0.0
    %2121 = vmatprep.subr.mxu0 0.0
    %2122 = vmatpush1.msra.mxu0 0.0
    %2123 = vmatprep.subr.mxu0 0.0
    %2124 = vmatpush1.msra.mxu0 0.0
    %2125 = vmatprep.subr.mxu0 0.0
    %2126 = vmatpush1.msra.mxu0 0.0
    %2127 = vmatprep.subr.mxu0 0.0
    %2128 = vmatpush1.msra.mxu0 0.0
    %2129 = vmatprep.subr.mxu0 0.0
    %2130 = vmatpush1.msra.mxu0 0.0
    %2131 = vmatprep.subr.mxu0 0.0
    %2132 = vmatpush1.msra.mxu0 0.0
    %2133 = vmatprep.subr.mxu0 0.0
    %2134 = vmatpush1.msra.mxu0 0.0
    %2135 = vmatprep.subr.mxu0 0.0
    %2136 = vmatpush1.msra.mxu0 0.0
    %2137 = vmatprep.subr.mxu0 0.0
    %2138 = vmatpush1.msra.mxu0 0.0
    %2139 = vmatprep.subr.mxu0 0.0
    %2140 = vmatpush1.msra.mxu0 0.0
    %2141 = vmatprep.subr.mxu0 0.0
    %2142 = vmatpush1.msra.mxu0 0.0
    %2143 = vmatprep.subr.mxu0 0.0
    %2144 = vmatpush1.msra.mxu0 0.0
    %2145 = vmatprep.subr.mxu0 0.0
    %2146 = vmatpush1.msra.mxu0 0.0
    %2147 = vmatprep.subr.mxu0 0.0
    %2148 = vmatpush1.msra.mxu0 0.0
    %2149 = vmatprep.subr.mxu0 0.0
    %2150 = vmatpush1.msra.mxu0 0.0
    %2151 = vmatprep.subr.mxu0 0.0
    %2152 = vmatpush1.msra.mxu0 0.0
    %2153 = vmatprep.subr.mxu0 0.0
    %2154 = vmatpush1.msra.mxu0 0.0
    %2155 = vmatprep.mubr.f32.mxu0 0.0
    %2156 = vmatmul.mubr.f32.gmra.mrb[0].mxu0 %v2089
    %v2157 = vpop.f32.mrb[0].mxu0
    %v2158 = vadd.f32 %v1741, %v2157
    %v2159 = vpop.f32.mrb[0].mxu0
    %2160 = vdwg.mxu0
    %v2161 = vtanh.pop %v2158
    %v2163 = vsel %vm329, %v2161, 0
    %2165 = vmatprep.subr.mxu0 0.0
    %2166 = vmatpush1.xpose.msra.mxu0 %v1475
    %2167 = vmatprep.subr.mxu0 0.0
    %2168 = vmatpush1.xpose.msra.mxu0 %v1478
    %2169 = vmatprep.subr.mxu0 0.0
    %2170 = vmatpush1.xpose.msra.mxu0 0.0
    %2171 = vmatprep.subr.mxu0 0.0
    %2172 = vmatpush1.xpose.msra.mxu0 0.0
    %2173 = vmatprep.subr.mxu0 0.0
    %2174 = vmatpush1.xpose.msra.mxu0 0.0
    %2175 = vmatprep.subr.mxu0 0.0
    %2176 = vmatpush1.xpose.msra.mxu0 0.0
    %2177 = vmatprep.subr.mxu0 0.0
    %2178 = vmatpush1.xpose.msra.mxu0 0.0
    %2179 = vmatprep.subr.mxu0 0.0
    %2180 = vmatpush1.xpose.msra.mxu0 0.0
    %2181 = vmatprep.subr.mxu0 0.0
    %2182 = vmatpush1.xpose.msra.mxu0 0.0
    %2183 = vmatprep.subr.mxu0 0.0
    %2184 = vmatpush1.xpose.msra.mxu0 0.0
    %2185 = vmatprep.subr.mxu0 0.0
    %2186 = vmatpush1.xpose.msra.mxu0 0.0
    %2187 = vmatprep.subr.mxu0 0.0
    %2188 = vmatpush1.xpose.msra.mxu0 0.0
    %2189 = vmatprep.subr.mxu0 0.0
    %2190 = vmatpush1.xpose.msra.mxu0 0.0
    %2191 = vmatprep.subr.mxu0 0.0
    %2192 = vmatpush1.xpose.msra.mxu0 0.0
    %2193 = vmatprep.subr.mxu0 0.0
    %2194 = vmatpush1.xpose.msra.mxu0 0.0
    %2195 = vmatprep.subr.mxu0 0.0
    %2196 = vmatpush1.xpose.msra.mxu0 0.0
    %2197 = vmatprep.subr.mxu0 0.0
    %2198 = vmatpush1.xpose.msra.mxu0 0.0
    %2199 = vmatprep.subr.mxu0 0.0
    %2200 = vmatpush1.xpose.msra.mxu0 0.0
    %2201 = vmatprep.subr.mxu0 0.0
    %2202 = vmatpush1.xpose.msra.mxu0 0.0
    %2203 = vmatprep.subr.mxu0 0.0
    %2204 = vmatpush1.xpose.msra.mxu0 0.0
    %2205 = vmatprep.subr.mxu0 0.0
    %2206 = vmatpush1.xpose.msra.mxu0 0.0
    %2207 = vmatprep.subr.mxu0 0.0
    %2208 = vmatpush1.xpose.msra.mxu0 0.0
    %2209 = vmatprep.subr.mxu0 0.0
    %2210 = vmatpush1.xpose.msra.mxu0 0.0
    %2211 = vmatprep.subr.mxu0 0.0
    %2212 = vmatpush1.xpose.msra.mxu0 0.0
    %2213 = vmatprep.subr.mxu0 0.0
    %2214 = vmatpush1.xpose.msra.mxu0 0.0
    %2215 = vmatprep.subr.mxu0 0.0
    %2216 = vmatpush1.xpose.msra.mxu0 0.0
    %2217 = vmatprep.subr.mxu0 0.0
    %2218 = vmatpush1.xpose.msra.mxu0 0.0
    %2219 = vmatprep.subr.mxu0 0.0
    %2220 = vmatpush1.xpose.msra.mxu0 0.0
    %2221 = vmatprep.subr.mxu0 0.0
    %2222 = vmatpush1.xpose.msra.mxu0 0.0
    %2223 = vmatprep.subr.mxu0 0.0
    %2224 = vmatpush1.xpose.msra.mxu0 0.0
    %2225 = vmatprep.subr.mxu0 0.0
    %2226 = vmatpush1.xpose.msra.mxu0 0.0
    %2227 = vmatprep.subr.mxu0 0.0
    %2228 = vmatpush1.xpose.msra.mxu0 0.0
    %2229 = vmatprep.mubr.f32.mxu0 0.0
    %2230 = vmatmul.mubr.f32.gmra.mrb[0].mxu0 %v2163
    %v2231 = vpop.f32.mrb[0].mxu0
    %v2232 = vadd.f32 0.0, %v2231
    %v2233 = vpop.f32.mrb[0].mxu0
    %2234 = vdwg.mxu0
    %v2235 = vsel %vm1550, %v2232, -1e+30
    %v2236 = vsel %vm1552, %v2235, -inf
    %2237 = vmax.xlane.f32.xlu0 %v2236
    %v2238 = vpop.xlane.xlu0 %2237
    %v2239 = vsub.f32 %v2235, %v2238
    %v2240 = vmul.f32 %v2239, 1.442695
    %v2241 = vpow.pop %v2240
    %v2242 = vsel %vm1552, %v2241, 0.0
    %2243 = vadd.xlane.f32.xlu0 %v2242
    %v2244 = vpop.xlane.xlu0 %2243
    %v2245 = vrcp.pop %v2244
    %v2246 = vmul.f32 %v2241, %v2245
    %v2248 = vsel %vm1564, %v2246, 0
    %2250 = vmatprep.subr.mxu0 0.0
    %2251 = vmatpush1.msra.mxu0 %v1272
    %2252 = vmatprep.subr.mxu0 0.0
    %2253 = vmatpush1.msra.mxu0 %v1273
    %2254 = vmatprep.subr.mxu0 0.0
    %2255 = vmatpush1.msra.mxu0 0.0
    %2256 = vmatprep.subr.mxu0 0.0
    %2257 = vmatpush1.msra.mxu0 0.0
    %2258 = vmatprep.subr.mxu0 0.0
    %2259 = vmatpush1.msra.mxu0 0.0
    %2260 = vmatprep.subr.mxu0 0.0
    %2261 = vmatpush1.msra.mxu0 0.0
    %2262 = vmatprep.subr.mxu0 0.0
    %2263 = vmatpush1.msra.mxu0 0.0
    %2264 = vmatprep.subr.mxu0 0.0
    %2265 = vmatpush1.msra.mxu0 0.0
    %2266 = vmatprep.subr.mxu0 0.0
    %2267 = vmatpush1.msra.mxu0 0.0
    %2268 = vmatprep.subr.mxu0 0.0
    %2269 = vmatpush1.msra.mxu0 0.0
    %2270 = vmatprep.subr.mxu0 0.0
    %2271 = vmatpush1.msra.mxu0 0.0
    %2272 = vmatprep.subr.mxu0 0.0
    %2273 = vmatpush1.msra.mxu0 0.0
    %2274 = vmatprep.subr.mxu0 0.0
    %2275 = vmatpush1.msra.mxu0 0.0
    %2276 = vmatprep.subr.mxu0 0.0
    %2277 = vmatpush1.msra.mxu0 0.0
    %2278 = vmatprep.subr.mxu0 0.0
    %2279 = vmatpush1.msra.mxu0 0.0
    %2280 = vmatprep.subr.mxu0 0.0
    %2281 = vmatpush1.msra.mxu0 0.0
    %2282 = vmatprep.subr.mxu0 0.0
    %2283 = vmatpush1.msra.mxu0 0.0
    %2284 = vmatprep.subr.mxu0 0.0
    %2285 = vmatpush1.msra.mxu0 0.0
    %2286 = vmatprep.subr.mxu0 0.0
    %2287 = vmatpush1.msra.mxu0 0.0
    %2288 = vmatprep.subr.mxu0 0.0
    %2289 = vmatpush1.msra.mxu0 0.0
    %2290 = vmatprep.subr.mxu0 0.0
    %2291 = vmatpush1.msra.mxu0 0.0
    %2292 = vmatprep.subr.mxu0 0.0
    %2293 = vmatpush1.msra.mxu0 0.0
    %2294 = vmatprep.subr.mxu0 0.0
    %2295 = vmatpush1.msra.mxu0 0.0
    %2296 = vmatprep.subr.mxu0 0.0
    %2297 = vmatpush1.msra.mxu0 0.0
    %2298 = vmatprep.subr.mxu0 0.0
    %2299 = vmatpush1.msra.mxu0 0.0
    %2300 = vmatprep.subr.mxu0 0.0
    %2301 = vmatpush1.msra.mxu0 0.0
    %2302 = vmatprep.subr.mxu0 0.0
    %2303 = vmatpush1.msra.mxu0 0.0
    %2304 = vmatprep.subr.mxu0 0.0
    %2305 = vmatpush1.msra.mxu0 0.0
    %2306 = vmatprep.subr.mxu0 0.0
    %2307 = vmatpush1.msra.mxu0 0.0
    %2308 = vmatprep.subr.mxu0 0.0
    %2309 = vmatpush1.msra.mxu0 0.0
    %2310 = vmatprep.subr.mxu0 0.0
    %2311 = vmatpush1.msra.mxu0 0.0
    %2312 = vmatprep.subr.mxu0 0.0
    %2313 = vmatpush1.msra.mxu0 0.0
    %2314 = vmatprep.mubr.f32.mxu0 0.0
    %2315 = vmatmul.mubr.f32.gmra.mrb[0].mxu0 %v2248
    %v2316 = vpop.f32.mrb[0].mxu0
    %v2317 = vadd.f32 0.0, %v2316
    %v2318 = vpop.f32.mrb[0].mxu0
    %2319 = vdwg.mxu0
    %2320 = vrot.lane.b32.xlu0 %v2086, 64
    %v2321 = vpop.permute.xlu0 %2320
    %v2323 = vsel %vm329, %v2317, %v2321
    %v2325 = vsel %vm247, %v2323, 0
    %2327 = vmatprep.subr.mxu0 0.0
    %2328 = vmatpush1.msra.mxu0 %v210
    %2329 = vmatprep.subr.mxu0 0.0
    %2330 = vmatpush1.msra.mxu0 %v211
    %2331 = vmatprep.subr.mxu0 0.0
    %2332 = vmatpush1.msra.mxu0 %v212
    %2333 = vmatprep.subr.mxu0 0.0
    %2334 = vmatpush1.msra.mxu0 %v213
    %2335 = vmatprep.subr.mxu0 0.0
    %2336 = vmatpush1.msra.mxu0 %v214
    %2337 = vmatprep.subr.mxu0 0.0
    %2338 = vmatpush1.msra.mxu0 %v215
    %2339 = vmatprep.subr.mxu0 0.0
    %2340 = vmatpush1.msra.mxu0 %v216
    %2341 = vmatprep.subr.mxu0 0.0
    %2342 = vmatpush1.msra.mxu0 %v217
    %2343 = vmatprep.subr.mxu0 0.0
    %2344 = vmatpush1.msra.mxu0 0.0
    %2345 = vmatprep.subr.mxu0 0.0
    %2346 = vmatpush1.msra.mxu0 0.0
    %2347 = vmatprep.subr.mxu0 0.0
    %2348 = vmatpush1.msra.mxu0 0.0
    %2349 = vmatprep.subr.mxu0 0.0
    %2350 = vmatpush1.msra.mxu0 0.0
    %2351 = vmatprep.subr.mxu0 0.0
    %2352 = vmatpush1.msra.mxu0 0.0
    %2353 = vmatprep.subr.mxu0 0.0
    %2354 = vmatpush1.msra.mxu0 0.0
    %2355 = vmatprep.subr.mxu0 0.0
    %2356 = vmatpush1.msra.mxu0 0.0
    %2357 = vmatprep.subr.mxu0 0.0
    %2358 = vmatpush1.msra.mxu0 0.0
    %2359 = vmatprep.subr.mxu0 0.0
    %2360 = vmatpush1.msra.mxu0 0.0
    %2361 = vmatprep.subr.mxu0 0.0
    %2362 = vmatpush1.msra.mxu0 0.0
    %2363 = vmatprep.subr.mxu0 0.0
    %2364 = vmatpush1.msra.mxu0 0.0
    %2365 = vmatprep.subr.mxu0 0.0
    %2366 = vmatpush1.msra.mxu0 0.0
    %2367 = vmatprep.subr.mxu0 0.0
    %2368 = vmatpush1.msra.mxu0 0.0
    %2369 = vmatprep.subr.mxu0 0.0
    %2370 = vmatpush1.msra.mxu0 0.0
    %2371 = vmatprep.subr.mxu0 0.0
    %2372 = vmatpush1.msra.mxu0 0.0
    %2373 = vmatprep.subr.mxu0 0.0
    %2374 = vmatpush1.msra.mxu0 0.0
    %2375 = vmatprep.subr.mxu0 0.0
    %2376 = vmatpush1.msra.mxu0 0.0
    %2377 = vmatprep.subr.mxu0 0.0
    %2378 = vmatpush1.msra.mxu0 0.0
    %2379 = vmatprep.subr.mxu0 0.0
    %2380 = vmatpush1.msra.mxu0 0.0
    %2381 = vmatprep.subr.mxu0 0.0
    %2382 = vmatpush1.msra.mxu0 0.0
    %2383 = vmatprep.subr.mxu0 0.0
    %2384 = vmatpush1.msra.mxu0 0.0
    %2385 = vmatprep.subr.mxu0 0.0
    %2386 = vmatpush1.msra.mxu0 0.0
    %2387 = vmatprep.subr.mxu0 0.0
    %2388 = vmatpush1.msra.mxu0 0.0
    %2389 = vmatprep.subr.mxu0 0.0
    %2390 = vmatpush1.msra.mxu0 0.0
    %2391 = vmatprep.mubr.f32.mxu0 0.0
    %2392 = vmatmul.mubr.f32.gmra.mrb[0].mxu0 %v2325
    %v2393 = vpop.f32.mrb[0].mxu0
    %v2394 = vadd.f32 0.0, %v2393
    %v2395 = vpop.f32.mrb[0].mxu0
    %2396 = vdwg.mxu0
    %v2398 = vrot.slane %v2394, 4
    %v2400 = vadd.f32 %v1458, %v2398
    %v2401 = vxor.u32 %v2400, 2147483648
    %v2402 = vmul.f32 %v2401, 1.442695
    %v2403 = vpow.pop %v2402
    %v2404 = vadd.f32 %v2403, 1.0
    %v2405 = vrcp.pop %v2404
    %v2406 = vmul.f32 1.0, %v2405
    %v2407 = vtanh.pop %v2400
    %v2409 = vrot.slane %v2078, 6
    %v2411 = vmul.f32 %v2406, %v2409
    %2413 = vrot.lane.b32.xlu0 %v2407, 64
    %v2414 = vpop.permute.xlu0 %2413
    %v2416 = vmul.f32 %v2406, %v2414
    %2418 = vrot.lane.b32.xlu0 %v2416, 32
    %v2419 = vpop.permute.xlu0 %2418
    %v2421 = vadd.f32 %v2411, %v2419
    %v2422 = vtanh.pop %v2421
    %2424 = vrot.lane.b32.xlu0 %v2422, 64
    %v2425 = vpop.permute.xlu0 %2424
    %v2427 = vmul.f32 %v2406, %v2425
    %v2429 = vrot.slane %v2427, 4
    %2430 = vrot.lane.b32.xlu0 %v2429, 32
    %v2431 = vpop.permute.xlu0 %2430
    %v2432 = vsel %vm329, %v2431, 0
    %2434 = vmatprep.subr.mxu0 0.0
    %2435 = vmatpush1.msra.mxu0 %v197
    %2436 = vmatprep.subr.mxu0 0.0
    %2437 = vmatpush1.msra.mxu0 %v198
    %2438 = vmatprep.subr.mxu0 0.0
    %2439 = vmatpush1.msra.mxu0 %v199
    %2440 = vmatprep.subr.mxu0 0.0
    %2441 = vmatpush1.msra.mxu0 %v200
    %2442 = vmatprep.subr.mxu0 0.0
    %2443 = vmatpush1.msra.mxu0 0.0
    %2444 = vmatprep.subr.mxu0 0.0
    %2445 = vmatpush1.msra.mxu0 0.0
    %2446 = vmatprep.subr.mxu0 0.0
    %2447 = vmatpush1.msra.mxu0 0.0
    %2448 = vmatprep.subr.mxu0 0.0
    %2449 = vmatpush1.msra.mxu0 0.0
    %2450 = vmatprep.subr.mxu0 0.0
    %2451 = vmatpush1.msra.mxu0 0.0
    %2452 = vmatprep.subr.mxu0 0.0
    %2453 = vmatpush1.msra.mxu0 0.0
    %2454 = vmatprep.subr.mxu0 0.0
    %2455 = vmatpush1.msra.mxu0 0.0
    %2456 = vmatprep.subr.mxu0 0.0
    %2457 = vmatpush1.msra.mxu0 0.0
    %2458 = vmatprep.subr.mxu0 0.0
    %2459 = vmatpush1.msra.mxu0 0.0
    %2460 = vmatprep.subr.mxu0 0.0
    %2461 = vmatpush1.msra.mxu0 0.0
    %2462 = vmatprep.subr.mxu0 0.0
    %2463 = vmatpush1.msra.mxu0 0.0
    %2464 = vmatprep.subr.mxu0 0.0
    %2465 = vmatpush1.msra.mxu0 0.0
    %2466 = vmatprep.subr.mxu0 0.0
    %2467 = vmatpush1.msra.mxu0 0.0
    %2468 = vmatprep.subr.mxu0 0.0
    %2469 = vmatpush1.msra.mxu0 0.0
    %2470 = vmatprep.subr.mxu0 0.0
    %2471 = vmatpush1.msra.mxu0 0.0
    %2472 = vmatprep.subr.mxu0 0.0
    %2473 = vmatpush1.msra.mxu0 0.0
    %2474 = vmatprep.subr.mxu0 0.0
    %2475 = vmatpush1.msra.mxu0 0.0
    %2476 = vmatprep.subr.mxu0 0.0
    %2477 = vmatpush1.msra.mxu0 0.0
    %2478 = vmatprep.subr.mxu0 0.0
    %2479 = vmatpush1.msra.mxu0 0.0
    %2480 = vmatprep.subr.mxu0 0.0
    %2481 = vmatpush1.msra.mxu0 0.0
    %2482 = vmatprep.subr.mxu0 0.0
    %2483 = vmatpush1.msra.mxu0 0.0
    %2484 = vmatprep.subr.mxu0 0.0
    %2485 = vmatpush1.msra.mxu0 0.0
    %2486 = vmatprep.subr.mxu0 0.0
    %2487 = vmatpush1.msra.mxu0 0.0
    %2488 = vmatprep.subr.mxu0 0.0
    %2489 = vmatpush1.msra.mxu0 0.0
    %2490 = vmatprep.subr.mxu0 0.0
    %2491 = vmatpush1.msra.mxu0 0.0
    %2492 = vmatprep.subr.mxu0 0.0
    %2493 = vmatpush1.msra.mxu0 0.0
    %2494 = vmatprep.subr.mxu0 0.0
    %2495 = vmatpush1.msra.mxu0 0.0
    %2496 = vmatprep.subr.mxu0 0.0
    %2497 = vmatpush1.msra.mxu0 0.0
    %2498 = vmatprep.mubr.f32.mxu0 0.0
    %2499 = vmatmul.mubr.f32.gmra.mrb[0].mxu0 %v2432
    %v2500 = vpop.f32.mrb[0].mxu0
    %v2501 = vadd.f32 %v1741, %v2500
    %v2502 = vpop.f32.mrb[0].mxu0
    %2503 = vdwg.mxu0
    %v2504 = vtanh.pop %v2501
    %v2506 = vsel %vm329, %v2504, 0
    %2508 = vmatprep.subr.mxu0 0.0
    %2509 = vmatpush1.xpose.msra.mxu0 %v1475
    %2510 = vmatprep.subr.mxu0 0.0
    %2511 = vmatpush1.xpose.msra.mxu0 %v1478
    %2512 = vmatprep.subr.mxu0 0.0
    %2513 = vmatpush1.xpose.msra.mxu0 0.0
    %2514 = vmatprep.subr.mxu0 0.0
    %2515 = vmatpush1.xpose.msra.mxu0 0.0
    %2516 = vmatprep.subr.mxu0 0.0
    %2517 = vmatpush1.xpose.msra.mxu0 0.0
    %2518 = vmatprep.subr.mxu0 0.0
    %2519 = vmatpush1.xpose.msra.mxu0 0.0
    %2520 = vmatprep.subr.mxu0 0.0
    %2521 = vmatpush1.xpose.msra.mxu0 0.0
    %2522 = vmatprep.subr.mxu0 0.0
    %2523 = vmatpush1.xpose.msra.mxu0 0.0
    %2524 = vmatprep.subr.mxu0 0.0
    %2525 = vmatpush1.xpose.msra.mxu0 0.0
    %2526 = vmatprep.subr.mxu0 0.0
    %2527 = vmatpush1.xpose.msra.mxu0 0.0
    %2528 = vmatprep.subr.mxu0 0.0
    %2529 = vmatpush1.xpose.msra.mxu0 0.0
    %2530 = vmatprep.subr.mxu0 0.0
    %2531 = vmatpush1.xpose.msra.mxu0 0.0
    %2532 = vmatprep.subr.mxu0 0.0
    %2533 = vmatpush1.xpose.msra.mxu0 0.0
    %2534 = vmatprep.subr.mxu0 0.0
    %2535 = vmatpush1.xpose.msra.mxu0 0.0
    %2536 = vmatprep.subr.mxu0 0.0
    %2537 = vmatpush1.xpose.msra.mxu0 0.0
    %2538 = vmatprep.subr.mxu0 0.0
    %2539 = vmatpush1.xpose.msra.mxu0 0.0
    %2540 = vmatprep.subr.mxu0 0.0
    %2541 = vmatpush1.xpose.msra.mxu0 0.0
    %2542 = vmatprep.subr.mxu0 0.0
    %2543 = vmatpush1.xpose.msra.mxu0 0.0
    %2544 = vmatprep.subr.mxu0 0.0
    %2545 = vmatpush1.xpose.msra.mxu0 0.0
    %2546 = vmatprep.subr.mxu0 0.0
    %2547 = vmatpush1.xpose.msra.mxu0 0.0
    %2548 = vmatprep.subr.mxu0 0.0
    %2549 = vmatpush1.xpose.msra.mxu0 0.0
    %2550 = vmatprep.subr.mxu0 0.0
    %2551 = vmatpush1.xpose.msra.mxu0 0.0
    %2552 = vmatprep.subr.mxu0 0.0
    %2553 = vmatpush1.xpose.msra.mxu0 0.0
    %2554 = vmatprep.subr.mxu0 0.0
    %2555 = vmatpush1.xpose.msra.mxu0 0.0
    %2556 = vmatprep.subr.mxu0 0.0
    %2557 = vmatpush1.xpose.msra.mxu0 0.0
    %2558 = vmatprep.subr.mxu0 0.0
    %2559 = vmatpush1.xpose.msra.mxu0 0.0
    %2560 = vmatprep.subr.mxu0 0.0
    %2561 = vmatpush1.xpose.msra.mxu0 0.0
    %2562 = vmatprep.subr.mxu0 0.0
    %2563 = vmatpush1.xpose.msra.mxu0 0.0
    %2564 = vmatprep.subr.mxu0 0.0
    %2565 = vmatpush1.xpose.msra.mxu0 0.0
    %2566 = vmatprep.subr.mxu0 0.0
    %2567 = vmatpush1.xpose.msra.mxu0 0.0
    %2568 = vmatprep.subr.mxu0 0.0
    %2569 = vmatpush1.xpose.msra.mxu0 0.0
    %2570 = vmatprep.subr.mxu0 0.0
    %2571 = vmatpush1.xpose.msra.mxu0 0.0
    %2572 = vmatprep.mubr.f32.mxu0 0.0
    %2573 = vmatmul.mubr.f32.gmra.mrb[0].mxu0 %v2506
    %v2574 = vpop.f32.mrb[0].mxu0
    %v2575 = vadd.f32 0.0, %v2574
    %v2576 = vpop.f32.mrb[0].mxu0
    %2577 = vdwg.mxu0
    %v2578 = vsel %vm1550, %v2575, -1e+30
    %v2579 = vsel %vm1552, %v2578, -inf
    %2580 = vmax.xlane.f32.xlu0 %v2579
    %v2581 = vpop.xlane.xlu0 %2580
    %v2582 = vsub.f32 %v2578, %v2581
    %v2583 = vmul.f32 %v2582, 1.442695
    %v2584 = vpow.pop %v2583
    %v2585 = vsel %vm1552, %v2584, 0.0
    %2586 = vadd.xlane.f32.xlu0 %v2585
    %v2587 = vpop.xlane.xlu0 %2586
    %v2588 = vrcp.pop %v2587
    %v2589 = vmul.f32 %v2584, %v2588
    %v2591 = vsel %vm1564, %v2589, 0
    %2593 = vmatprep.subr.mxu0 0.0
    %2594 = vmatpush1.msra.mxu0 %v1272
    %2595 = vmatprep.subr.mxu0 0.0
    %2596 = vmatpush1.msra.mxu0 %v1273
    %2597 = vmatprep.subr.mxu0 0.0
    %2598 = vmatpush1.msra.mxu0 0.0
    %2599 = vmatprep.subr.mxu0 0.0
    %2600 = vmatpush1.msra.mxu0 0.0
    %2601 = vmatprep.subr.mxu0 0.0
    %2602 = vmatpush1.msra.mxu0 0.0
    %2603 = vmatprep.subr.mxu0 0.0
    %2604 = vmatpush1.msra.mxu0 0.0
    %2605 = vmatprep.subr.mxu0 0.0
    %2606 = vmatpush1.msra.mxu0 0.0
    %2607 = vmatprep.subr.mxu0 0.0
    %2608 = vmatpush1.msra.mxu0 0.0
    %2609 = vmatprep.subr.mxu0 0.0
    %2610 = vmatpush1.msra.mxu0 0.0
    %2611 = vmatprep.subr.mxu0 0.0
    %2612 = vmatpush1.msra.mxu0 0.0
    %2613 = vmatprep.subr.mxu0 0.0
    %2614 = vmatpush1.msra.mxu0 0.0
    %2615 = vmatprep.subr.mxu0 0.0
    %2616 = vmatpush1.msra.mxu0 0.0
    %2617 = vmatprep.subr.mxu0 0.0
    %2618 = vmatpush1.msra.mxu0 0.0
    %2619 = vmatprep.subr.mxu0 0.0
    %2620 = vmatpush1.msra.mxu0 0.0
    %2621 = vmatprep.subr.mxu0 0.0
    %2622 = vmatpush1.msra.mxu0 0.0
    %2623 = vmatprep.subr.mxu0 0.0
    %2624 = vmatpush1.msra.mxu0 0.0
    %2625 = vmatprep.subr.mxu0 0.0
    %2626 = vmatpush1.msra.mxu0 0.0
    %2627 = vmatprep.subr.mxu0 0.0
    %2628 = vmatpush1.msra.mxu0 0.0
    %2629 = vmatprep.subr.mxu0 0.0
    %2630 = vmatpush1.msra.mxu0 0.0
    %2631 = vmatprep.subr.mxu0 0.0
    %2632 = vmatpush1.msra.mxu0 0.0
    %2633 = vmatprep.subr.mxu0 0.0
    %2634 = vmatpush1.msra.mxu0 0.0
    %2635 = vmatprep.subr.mxu0 0.0
    %2636 = vmatpush1.msra.mxu0 0.0
    %2637 = vmatprep.subr.mxu0 0.0
    %2638 = vmatpush1.msra.mxu0 0.0
    %2639 = vmatprep.subr.mxu0 0.0
    %2640 = vmatpush1.msra.mxu0 0.0
    %2641 = vmatprep.subr.mxu0 0.0
    %2642 = vmatpush1.msra.mxu0 0.0
    %2643 = vmatprep.subr.mxu0 0.0
    %2644 = vmatpush1.msra.mxu0 0.0
    %2645 = vmatprep.subr.mxu0 0.0
    %2646 = vmatpush1.msra.mxu0 0.0
    %2647 = vmatprep.subr.mxu0 0.0
    %2648 = vmatpush1.msra.mxu0 0.0
    %2649 = vmatprep.subr.mxu0 0.0
    %2650 = vmatpush1.msra.mxu0 0.0
    %2651 = vmatprep.subr.mxu0 0.0
    %2652 = vmatpush1.msra.mxu0 0.0
    %2653 = vmatprep.subr.mxu0 0.0
    %2654 = vmatpush1.msra.mxu0 0.0
    %2655 = vmatprep.subr.mxu0 0.0
    %2656 = vmatpush1.msra.mxu0 0.0
    %2657 = vmatprep.mubr.f32.mxu0 0.0
    %2658 = vmatmul.mubr.f32.gmra.mrb[0].mxu0 %v2591
    %v2659 = vpop.f32.mrb[0].mxu0
    %v2660 = vadd.f32 0.0, %v2659
    %v2661 = vpop.f32.mrb[0].mxu0
    %2662 = vdwg.mxu0
    %2663 = vrot.lane.b32.xlu0 %v2429, 64
    %v2664 = vpop.permute.xlu0 %2663
    %v2666 = vsel %vm329, %v2660, %v2664
    %v2668 = vsel %vm247, %v2666, 0
    %2670 = vmatprep.subr.mxu0 0.0
    %2671 = vmatpush1.msra.mxu0 %v210
    %2672 = vmatprep.subr.mxu0 0.0
    %2673 = vmatpush1.msra.mxu0 %v211
    %2674 = vmatprep.subr.mxu0 0.0
    %2675 = vmatpush1.msra.mxu0 %v212
    %2676 = vmatprep.subr.mxu0 0.0
    %2677 = vmatpush1.msra.mxu0 %v213
    %2678 = vmatprep.subr.mxu0 0.0
    %2679 = vmatpush1.msra.mxu0 %v214
    %2680 = vmatprep.subr.mxu0 0.0
    %2681 = vmatpush1.msra.mxu0 %v215
    %2682 = vmatprep.subr.mxu0 0.0
    %2683 = vmatpush1.msra.mxu0 %v216
    %2684 = vmatprep.subr.mxu0 0.0
    %2685 = vmatpush1.msra.mxu0 %v217
    %2686 = vmatprep.subr.mxu0 0.0
    %2687 = vmatpush1.msra.mxu0 0.0
    %2688 = vmatprep.subr.mxu0 0.0
    %2689 = vmatpush1.msra.mxu0 0.0
    %2690 = vmatprep.subr.mxu0 0.0
    %2691 = vmatpush1.msra.mxu0 0.0
    %2692 = vmatprep.subr.mxu0 0.0
    %2693 = vmatpush1.msra.mxu0 0.0
    %2694 = vmatprep.subr.mxu0 0.0
    %2695 = vmatpush1.msra.mxu0 0.0
    %2696 = vmatprep.subr.mxu0 0.0
    %2697 = vmatpush1.msra.mxu0 0.0
    %2698 = vmatprep.subr.mxu0 0.0
    %2699 = vmatpush1.msra.mxu0 0.0
    %2700 = vmatprep.subr.mxu0 0.0
    %2701 = vmatpush1.msra.mxu0 0.0
    %2702 = vmatprep.subr.mxu0 0.0
    %2703 = vmatpush1.msra.mxu0 0.0
    %2704 = vmatprep.subr.mxu0 0.0
    %2705 = vmatpush1.msra.mxu0 0.0
    %2706 = vmatprep.subr.mxu0 0.0
    %2707 = vmatpush1.msra.mxu0 0.0
    %2708 = vmatprep.subr.mxu0 0.0
    %2709 = vmatpush1.msra.mxu0 0.0
    %2710 = vmatprep.subr.mxu0 0.0
    %2711 = vmatpush1.msra.mxu0 0.0
    %2712 = vmatprep.subr.mxu0 0.0
    %2713 = vmatpush1.msra.mxu0 0.0
    %2714 = vmatprep.subr.mxu0 0.0
    %2715 = vmatpush1.msra.mxu0 0.0
    %2716 = vmatprep.subr.mxu0 0.0
    %2717 = vmatpush1.msra.mxu0 0.0
    %2718 = vmatprep.subr.mxu0 0.0
    %2719 = vmatpush1.msra.mxu0 0.0
    %2720 = vmatprep.subr.mxu0 0.0
    %2721 = vmatpush1.msra.mxu0 0.0
    %2722 = vmatprep.subr.mxu0 0.0
    %2723 = vmatpush1.msra.mxu0 0.0
    %2724 = vmatprep.subr.mxu0 0.0
    %2725 = vmatpush1.msra.mxu0 0.0
    %2726 = vmatprep.subr.mxu0 0.0
    %2727 = vmatpush1.msra.mxu0 0.0
    %2728 = vmatprep.subr.mxu0 0.0
    %2729 = vmatpush1.msra.mxu0 0.0
    %2730 = vmatprep.subr.mxu0 0.0
    %2731 = vmatpush1.msra.mxu0 0.0
    %2732 = vmatprep.subr.mxu0 0.0
    %2733 = vmatpush1.msra.mxu0 0.0
    %2734 = vmatprep.mubr.f32.mxu0 0.0
    %2735 = vmatmul.mubr.f32.gmra.mrb[0].mxu0 %v2668
    %v2736 = vpop.f32.mrb[0].mxu0
    %v2737 = vadd.f32 0.0, %v2736
    %v2738 = vpop.f32.mrb[0].mxu0
    %2739 = vdwg.mxu0
    %v2741 = vrot.slane %v2737, 2
    %v2743 = vadd.f32 %v1458, %v2741
    %v2744 = vxor.u32 %v2743, 2147483648
    %v2745 = vmul.f32 %v2744, 1.442695
    %v2746 = vpow.pop %v2745
    %v2747 = vadd.f32 %v2746, 1.0
    %v2748 = vrcp.pop %v2747
    %v2749 = vmul.f32 1.0, %v2748
    %v2750 = vtanh.pop %v2743
    %v2752 = vrot.slane %v2421, 6
    %v2754 = vmul.f32 %v2749, %v2752
    %2756 = vrot.lane.b32.xlu0 %v2750, 64
    %v2757 = vpop.permute.xlu0 %2756
    %v2759 = vmul.f32 %v2749, %v2757
    %2761 = vrot.lane.b32.xlu0 %v2759, 32
    %v2762 = vpop.permute.xlu0 %2761
    %v2764 = vadd.f32 %v2754, %v2762
    %v2765 = vtanh.pop %v2764
    %2767 = vrot.lane.b32.xlu0 %v2765, 64
    %v2768 = vpop.permute.xlu0 %2767
    %v2770 = vmul.f32 %v2749, %v2768
    %v2772 = vrot.slane %v2770, 6
    %2773 = vrot.lane.b32.xlu0 %v2772, 32
    %v2774 = vpop.permute.xlu0 %2773
    %v2775 = vsel %vm329, %v2774, 0
    %2777 = vmatprep.subr.mxu0 0.0
    %2778 = vmatpush1.msra.mxu0 %v197
    %2779 = vmatprep.subr.mxu0 0.0
    %2780 = vmatpush1.msra.mxu0 %v198
    %2781 = vmatprep.subr.mxu0 0.0
    %2782 = vmatpush1.msra.mxu0 %v199
    %2783 = vmatprep.subr.mxu0 0.0
    %2784 = vmatpush1.msra.mxu0 %v200
    %2785 = vmatprep.subr.mxu0 0.0
    %2786 = vmatpush1.msra.mxu0 0.0
    %2787 = vmatprep.subr.mxu0 0.0
    %2788 = vmatpush1.msra.mxu0 0.0
    %2789 = vmatprep.subr.mxu0 0.0
    %2790 = vmatpush1.msra.mxu0 0.0
    %2791 = vmatprep.subr.mxu0 0.0
    %2792 = vmatpush1.msra.mxu0 0.0
    %2793 = vmatprep.subr.mxu0 0.0
    %2794 = vmatpush1.msra.mxu0 0.0
    %2795 = vmatprep.subr.mxu0 0.0
    %2796 = vmatpush1.msra.mxu0 0.0
    %2797 = vmatprep.subr.mxu0 0.0
    %2798 = vmatpush1.msra.mxu0 0.0
    %2799 = vmatprep.subr.mxu0 0.0
    %2800 = vmatpush1.msra.mxu0 0.0
    %2801 = vmatprep.subr.mxu0 0.0
    %2802 = vmatpush1.msra.mxu0 0.0
    %2803 = vmatprep.subr.mxu0 0.0
    %2804 = vmatpush1.msra.mxu0 0.0
    %2805 = vmatprep.subr.mxu0 0.0
    %2806 = vmatpush1.msra.mxu0 0.0
    %2807 = vmatprep.subr.mxu0 0.0
    %2808 = vmatpush1.msra.mxu0 0.0
    %2809 = vmatprep.subr.mxu0 0.0
    %2810 = vmatpush1.msra.mxu0 0.0
    %2811 = vmatprep.subr.mxu0 0.0
    %2812 = vmatpush1.msra.mxu0 0.0
    %2813 = vmatprep.subr.mxu0 0.0
    %2814 = vmatpush1.msra.mxu0 0.0
    %2815 = vmatprep.subr.mxu0 0.0
    %2816 = vmatpush1.msra.mxu0 0.0
    %2817 = vmatprep.subr.mxu0 0.0
    %2818 = vmatpush1.msra.mxu0 0.0
    %2819 = vmatprep.subr.mxu0 0.0
    %2820 = vmatpush1.msra.mxu0 0.0
    %2821 = vmatprep.subr.mxu0 0.0
    %2822 = vmatpush1.msra.mxu0 0.0
    %2823 = vmatprep.subr.mxu0 0.0
    %2824 = vmatpush1.msra.mxu0 0.0
    %2825 = vmatprep.subr.mxu0 0.0
    %2826 = vmatpush1.msra.mxu0 0.0
    %2827 = vmatprep.subr.mxu0 0.0
    %2828 = vmatpush1.msra.mxu0 0.0
    %2829 = vmatprep.subr.mxu0 0.0
    %2830 = vmatpush1.msra.mxu0 0.0
    %2831 = vmatprep.subr.mxu0 0.0
    %2832 = vmatpush1.msra.mxu0 0.0
    %2833 = vmatprep.subr.mxu0 0.0
    %2834 = vmatpush1.msra.mxu0 0.0
    %2835 = vmatprep.subr.mxu0 0.0
    %2836 = vmatpush1.msra.mxu0 0.0
    %2837 = vmatprep.subr.mxu0 0.0
    %2838 = vmatpush1.msra.mxu0 0.0
    %2839 = vmatprep.subr.mxu0 0.0
    %2840 = vmatpush1.msra.mxu0 0.0
    %2841 = vmatprep.mubr.f32.mxu0 0.0
    %2842 = vmatmul.mubr.f32.gmra.mrb[0].mxu0 %v2775
    %v2843 = vpop.f32.mrb[0].mxu0
    %v2844 = vadd.f32 %v1741, %v2843
    %v2845 = vpop.f32.mrb[0].mxu0
    %2846 = vdwg.mxu0
    %v2847 = vtanh.pop %v2844
    %v2849 = vsel %vm329, %v2847, 0
    %2851 = vmatprep.subr.mxu0 0.0
    %2852 = vmatpush1.xpose.msra.mxu0 %v1475
    %2853 = vmatprep.subr.mxu0 0.0
    %2854 = vmatpush1.xpose.msra.mxu0 %v1478
    %2855 = vmatprep.subr.mxu0 0.0
    %2856 = vmatpush1.xpose.msra.mxu0 0.0
    %2857 = vmatprep.subr.mxu0 0.0
    %2858 = vmatpush1.xpose.msra.mxu0 0.0
    %2859 = vmatprep.subr.mxu0 0.0
    %2860 = vmatpush1.xpose.msra.mxu0 0.0
    %2861 = vmatprep.subr.mxu0 0.0
    %2862 = vmatpush1.xpose.msra.mxu0 0.0
    %2863 = vmatprep.subr.mxu0 0.0
    %2864 = vmatpush1.xpose.msra.mxu0 0.0
    %2865 = vmatprep.subr.mxu0 0.0
    %2866 = vmatpush1.xpose.msra.mxu0 0.0
    %2867 = vmatprep.subr.mxu0 0.0
    %2868 = vmatpush1.xpose.msra.mxu0 0.0
    %2869 = vmatprep.subr.mxu0 0.0
    %2870 = vmatpush1.xpose.msra.mxu0 0.0
    %2871 = vmatprep.subr.mxu0 0.0
    %2872 = vmatpush1.xpose.msra.mxu0 0.0
    %2873 = vmatprep.subr.mxu0 0.0
    %2874 = vmatpush1.xpose.msra.mxu0 0.0
    %2875 = vmatprep.subr.mxu0 0.0
    %2876 = vmatpush1.xpose.msra.mxu0 0.0
    %2877 = vmatprep.subr.mxu0 0.0
    %2878 = vmatpush1.xpose.msra.mxu0 0.0
    %2879 = vmatprep.subr.mxu0 0.0
    %2880 = vmatpush1.xpose.msra.mxu0 0.0
    %2881 = vmatprep.subr.mxu0 0.0
    %2882 = vmatpush1.xpose.msra.mxu0 0.0
    %2883 = vmatprep.subr.mxu0 0.0
    %2884 = vmatpush1.xpose.msra.mxu0 0.0
    %2885 = vmatprep.subr.mxu0 0.0
    %2886 = vmatpush1.xpose.msra.mxu0 0.0
    %2887 = vmatprep.subr.mxu0 0.0
    %2888 = vmatpush1.xpose.msra.mxu0 0.0
    %2889 = vmatprep.subr.mxu0 0.0
    %2890 = vmatpush1.xpose.msra.mxu0 0.0
    %2891 = vmatprep.subr.mxu0 0.0
    %2892 = vmatpush1.xpose.msra.mxu0 0.0
    %2893 = vmatprep.subr.mxu0 0.0
    %2894 = vmatpush1.xpose.msra.mxu0 0.0
    %2895 = vmatprep.subr.mxu0 0.0
    %2896 = vmatpush1.xpose.msra.mxu0 0.0
    %2897 = vmatprep.subr.mxu0 0.0
    %2898 = vmatpush1.xpose.msra.mxu0 0.0
    %2899 = vmatprep.subr.mxu0 0.0
    %2900 = vmatpush1.xpose.msra.mxu0 0.0
    %2901 = vmatprep.subr.mxu0 0.0
    %2902 = vmatpush1.xpose.msra.mxu0 0.0
    %2903 = vmatprep.subr.mxu0 0.0
    %2904 = vmatpush1.xpose.msra.mxu0 0.0
    %2905 = vmatprep.subr.mxu0 0.0
    %2906 = vmatpush1.xpose.msra.mxu0 0.0
    %2907 = vmatprep.subr.mxu0 0.0
    %2908 = vmatpush1.xpose.msra.mxu0 0.0
    %2909 = vmatprep.subr.mxu0 0.0
    %2910 = vmatpush1.xpose.msra.mxu0 0.0
    %2911 = vmatprep.subr.mxu0 0.0
    %2912 = vmatpush1.xpose.msra.mxu0 0.0
    %2913 = vmatprep.subr.mxu0 0.0
    %2914 = vmatpush1.xpose.msra.mxu0 0.0
    %2915 = vmatprep.mubr.f32.mxu0 0.0
    %2916 = vmatmul.mubr.f32.gmra.mrb[0].mxu0 %v2849
    %v2917 = vpop.f32.mrb[0].mxu0
    %v2918 = vadd.f32 0.0, %v2917
    %v2919 = vpop.f32.mrb[0].mxu0
    %2920 = vdwg.mxu0
    %v2921 = vsel %vm1550, %v2918, -1e+30
    %v2922 = vsel %vm1552, %v2921, -inf
    %2923 = vmax.xlane.f32.xlu0 %v2922
    %v2924 = vpop.xlane.xlu0 %2923
    %v2925 = vsub.f32 %v2921, %v2924
    %v2926 = vmul.f32 %v2925, 1.442695
    %v2927 = vpow.pop %v2926
    %v2928 = vsel %vm1552, %v2927, 0.0
    %2929 = vadd.xlane.f32.xlu0 %v2928
    %v2930 = vpop.xlane.xlu0 %2929
    %v2931 = vrcp.pop %v2930
    %v2932 = vmul.f32 %v2927, %v2931
    %v2934 = vsel %vm1564, %v2932, 0
    %2936 = vmatprep.subr.mxu0 0.0
    %2937 = vmatpush1.msra.mxu0 %v1272
    %2938 = vmatprep.subr.mxu0 0.0
    %2939 = vmatpush1.msra.mxu0 %v1273
    %2940 = vmatprep.subr.mxu0 0.0
    %2941 = vmatpush1.msra.mxu0 0.0
    %2942 = vmatprep.subr.mxu0 0.0
    %2943 = vmatpush1.msra.mxu0 0.0
    %2944 = vmatprep.subr.mxu0 0.0
    %2945 = vmatpush1.msra.mxu0 0.0
    %2946 = vmatprep.subr.mxu0 0.0
    %2947 = vmatpush1.msra.mxu0 0.0
    %2948 = vmatprep.subr.mxu0 0.0
    %2949 = vmatpush1.msra.mxu0 0.0
    %2950 = vmatprep.subr.mxu0 0.0
    %2951 = vmatpush1.msra.mxu0 0.0
    %2952 = vmatprep.subr.mxu0 0.0
    %2953 = vmatpush1.msra.mxu0 0.0
    %2954 = vmatprep.subr.mxu0 0.0
    %2955 = vmatpush1.msra.mxu0 0.0
    %2956 = vmatprep.subr.mxu0 0.0
    %2957 = vmatpush1.msra.mxu0 0.0
    %2958 = vmatprep.subr.mxu0 0.0
    %2959 = vmatpush1.msra.mxu0 0.0
    %2960 = vmatprep.subr.mxu0 0.0
    %2961 = vmatpush1.msra.mxu0 0.0
    %2962 = vmatprep.subr.mxu0 0.0
    %2963 = vmatpush1.msra.mxu0 0.0
    %2964 = vmatprep.subr.mxu0 0.0
    %2965 = vmatpush1.msra.mxu0 0.0
    %2966 = vmatprep.subr.mxu0 0.0
    %2967 = vmatpush1.msra.mxu0 0.0
    %2968 = vmatprep.subr.mxu0 0.0
    %2969 = vmatpush1.msra.mxu0 0.0
    %2970 = vmatprep.subr.mxu0 0.0
    %2971 = vmatpush1.msra.mxu0 0.0
    %2972 = vmatprep.subr.mxu0 0.0
    %2973 = vmatpush1.msra.mxu0 0.0
    %2974 = vmatprep.subr.mxu0 0.0
    %2975 = vmatpush1.msra.mxu0 0.0
    %2976 = vmatprep.subr.mxu0 0.0
    %2977 = vmatpush1.msra.mxu0 0.0
    %2978 = vmatprep.subr.mxu0 0.0
    %2979 = vmatpush1.msra.mxu0 0.0
    %2980 = vmatprep.subr.mxu0 0.0
    %2981 = vmatpush1.msra.mxu0 0.0
    %2982 = vmatprep.subr.mxu0 0.0
    %2983 = vmatpush1.msra.mxu0 0.0
    %2984 = vmatprep.subr.mxu0 0.0
    %2985 = vmatpush1.msra.mxu0 0.0
    %2986 = vmatprep.subr.mxu0 0.0
    %2987 = vmatpush1.msra.mxu0 0.0
    %2988 = vmatprep.subr.mxu0 0.0
    %2989 = vmatpush1.msra.mxu0 0.0
    %2990 = vmatprep.subr.mxu0 0.0
    %2991 = vmatpush1.msra.mxu0 0.0
    %2992 = vmatprep.subr.mxu0 0.0
    %2993 = vmatpush1.msra.mxu0 0.0
    %2994 = vmatprep.subr.mxu0 0.0
    %2995 = vmatpush1.msra.mxu0 0.0
    %2996 = vmatprep.subr.mxu0 0.0
    %2997 = vmatpush1.msra.mxu0 0.0
    %2998 = vmatprep.subr.mxu0 0.0
    %2999 = vmatpush1.msra.mxu0 0.0
    %3000 = vmatprep.mubr.f32.mxu0 0.0
    %3001 = vmatmul.mubr.f32.gmra.mrb[0].mxu0 %v2934
    %v3002 = vpop.f32.mrb[0].mxu0
    %v3003 = vadd.f32 0.0, %v3002
    %v3004 = vpop.f32.mrb[0].mxu0
    %3005 = vdwg.mxu0
    %3006 = vrot.lane.b32.xlu0 %v2772, 64
    %v3007 = vpop.permute.xlu0 %3006
    %v3009 = vsel %vm329, %v3003, %v3007
    %v3011 = vsel %vm247, %v3009, 0
    %3013 = vmatprep.subr.mxu0 0.0
    %3014 = vmatpush1.msra.mxu0 %v210
    %3015 = vmatprep.subr.mxu0 0.0
    %3016 = vmatpush1.msra.mxu0 %v211
    %3017 = vmatprep.subr.mxu0 0.0
    %3018 = vmatpush1.msra.mxu0 %v212
    %3019 = vmatprep.subr.mxu0 0.0
    %3020 = vmatpush1.msra.mxu0 %v213
    %3021 = vmatprep.subr.mxu0 0.0
    %3022 = vmatpush1.msra.mxu0 %v214
    %3023 = vmatprep.subr.mxu0 0.0
    %3024 = vmatpush1.msra.mxu0 %v215
    %3025 = vmatprep.subr.mxu0 0.0
    %3026 = vmatpush1.msra.mxu0 %v216
    %3027 = vmatprep.subr.mxu0 0.0
    %3028 = vmatpush1.msra.mxu0 %v217
    %3029 = vmatprep.subr.mxu0 0.0
    %3030 = vmatpush1.msra.mxu0 0.0
    %3031 = vmatprep.subr.mxu0 0.0
    %3032 = vmatpush1.msra.mxu0 0.0
    %3033 = vmatprep.subr.mxu0 0.0
    %3034 = vmatpush1.msra.mxu0 0.0
    %3035 = vmatprep.subr.mxu0 0.0
    %3036 = vmatpush1.msra.mxu0 0.0
    %3037 = vmatprep.subr.mxu0 0.0
    %3038 = vmatpush1.msra.mxu0 0.0
    %3039 = vmatprep.subr.mxu0 0.0
    %3040 = vmatpush1.msra.mxu0 0.0
    %3041 = vmatprep.subr.mxu0 0.0
    %3042 = vmatpush1.msra.mxu0 0.0
    %3043 = vmatprep.subr.mxu0 0.0
    %3044 = vmatpush1.msra.mxu0 0.0
    %3045 = vmatprep.subr.mxu0 0.0
    %3046 = vmatpush1.msra.mxu0 0.0
    %3047 = vmatprep.subr.mxu0 0.0
    %3048 = vmatpush1.msra.mxu0 0.0
    %3049 = vmatprep.subr.mxu0 0.0
    %3050 = vmatpush1.msra.mxu0 0.0
    %3051 = vmatprep.subr.mxu0 0.0
    %3052 = vmatpush1.msra.mxu0 0.0
    %3053 = vmatprep.subr.mxu0 0.0
    %3054 = vmatpush1.msra.mxu0 0.0
    %3055 = vmatprep.subr.mxu0 0.0
    %3056 = vmatpush1.msra.mxu0 0.0
    %3057 = vmatprep.subr.mxu0 0.0
    %3058 = vmatpush1.msra.mxu0 0.0
    %3059 = vmatprep.subr.mxu0 0.0
    %3060 = vmatpush1.msra.mxu0 0.0
    %3061 = vmatprep.subr.mxu0 0.0
    %3062 = vmatpush1.msra.mxu0 0.0
    %3063 = vmatprep.subr.mxu0 0.0
    %3064 = vmatpush1.msra.mxu0 0.0
    %3065 = vmatprep.subr.mxu0 0.0
    %3066 = vmatpush1.msra.mxu0 0.0
    %3067 = vmatprep.subr.mxu0 0.0
    %3068 = vmatpush1.msra.mxu0 0.0
    %3069 = vmatprep.subr.mxu0 0.0
    %3070 = vmatpush1.msra.mxu0 0.0
    %3071 = vmatprep.subr.mxu0 0.0
    %3072 = vmatpush1.msra.mxu0 0.0
    %3073 = vmatprep.subr.mxu0 0.0
    %3074 = vmatpush1.msra.mxu0 0.0
    %3075 = vmatprep.subr.mxu0 0.0
    %3076 = vmatpush1.msra.mxu0 0.0
    %3077 = vmatprep.mubr.f32.mxu0 0.0
    %3078 = vmatmul.mubr.f32.gmra.mrb[0].mxu0 %v3011
    %v3079 = vpop.f32.mrb[0].mxu0
    %v3080 = vadd.f32 0.0, %v3079
    %v3081 = vpop.f32.mrb[0].mxu0
    %3082 = vdwg.mxu0
    %v3083 = vadd.f32 %v1463, %v3080
    %v3084 = vxor.u32 %v3083, 2147483648
    %v3085 = vmul.f32 %v3084, 1.442695
    %v3086 = vpow.pop %v3085
    %v3087 = vadd.f32 %v3086, 1.0
    %v3088 = vrcp.pop %v3087
    %v3089 = vmul.f32 1.0, %v3088
    %v3090 = vtanh.pop %v3083
    %v3092 = vrot.slane %v2764, 6
    %v3094 = vmul.f32 %v3089, %v3092
    %3096 = vrot.lane.b32.xlu0 %v3090, 64
    %v3097 = vpop.permute.xlu0 %3096
    %v3099 = vmul.f32 %v3089, %v3097
    %3101 = vrot.lane.b32.xlu0 %v3099, 32
    %v3102 = vpop.permute.xlu0 %3101
    %v3104 = vadd.f32 %v3094, %v3102
    %v3105 = vtanh.pop %v3104
    %3107 = vrot.lane.b32.xlu0 %v3105, 64
    %v3108 = vpop.permute.xlu0 %3107
    %v3110 = vmul.f32 %v3089, %v3108
    %3112 = vrot.lane.b32.xlu0 %v3110, 32
    %v3113 = vpop.permute.xlu0 %3112
    %v3114 = vsel %vm329, %v3113, 0
    %3116 = vmatprep.subr.mxu0 0.0
    %3117 = vmatpush1.msra.mxu0 %v197
    %3118 = vmatprep.subr.mxu0 0.0
    %3119 = vmatpush1.msra.mxu0 %v198
    %3120 = vmatprep.subr.mxu0 0.0
    %3121 = vmatpush1.msra.mxu0 %v199
    %3122 = vmatprep.subr.mxu0 0.0
    %3123 = vmatpush1.msra.mxu0 %v200
    %3124 = vmatprep.subr.mxu0 0.0
    %3125 = vmatpush1.msra.mxu0 0.0
    %3126 = vmatprep.subr.mxu0 0.0
    %3127 = vmatpush1.msra.mxu0 0.0
    %3128 = vmatprep.subr.mxu0 0.0
    %3129 = vmatpush1.msra.mxu0 0.0
    %3130 = vmatprep.subr.mxu0 0.0
    %3131 = vmatpush1.msra.mxu0 0.0
    %3132 = vmatprep.subr.mxu0 0.0
    %3133 = vmatpush1.msra.mxu0 0.0
    %3134 = vmatprep.subr.mxu0 0.0
    %3135 = vmatpush1.msra.mxu0 0.0
    %3136 = vmatprep.subr.mxu0 0.0
    %3137 = vmatpush1.msra.mxu0 0.0
    %3138 = vmatprep.subr.mxu0 0.0
    %3139 = vmatpush1.msra.mxu0 0.0
    %3140 = vmatprep.subr.mxu0 0.0
    %3141 = vmatpush1.msra.mxu0 0.0
    %3142 = vmatprep.subr.mxu0 0.0
    %3143 = vmatpush1.msra.mxu0 0.0
    %3144 = vmatprep.subr.mxu0 0.0
    %3145 = vmatpush1.msra.mxu0 0.0
    %3146 = vmatprep.subr.mxu0 0.0
    %3147 = vmatpush1.msra.mxu0 0.0
    %3148 = vmatprep.subr.mxu0 0.0
    %3149 = vmatpush1.msra.mxu0 0.0
    %3150 = vmatprep.subr.mxu0 0.0
    %3151 = vmatpush1.msra.mxu0 0.0
    %3152 = vmatprep.subr.mxu0 0.0
    %3153 = vmatpush1.msra.mxu0 0.0
    %3154 = vmatprep.subr.mxu0 0.0
    %3155 = vmatpush1.msra.mxu0 0.0
    %3156 = vmatprep.subr.mxu0 0.0
    %3157 = vmatpush1.msra.mxu0 0.0
    %3158 = vmatprep.subr.mxu0 0.0
    %3159 = vmatpush1.msra.mxu0 0.0
    %3160 = vmatprep.subr.mxu0 0.0
    %3161 = vmatpush1.msra.mxu0 0.0
    %3162 = vmatprep.subr.mxu0 0.0
    %3163 = vmatpush1.msra.mxu0 0.0
    %3164 = vmatprep.subr.mxu0 0.0
    %3165 = vmatpush1.msra.mxu0 0.0
    %3166 = vmatprep.subr.mxu0 0.0
    %3167 = vmatpush1.msra.mxu0 0.0
    %3168 = vmatprep.subr.mxu0 0.0
    %3169 = vmatpush1.msra.mxu0 0.0
    %3170 = vmatprep.subr.mxu0 0.0
    %3171 = vmatpush1.msra.mxu0 0.0
    %3172 = vmatprep.subr.mxu0 0.0
    %3173 = vmatpush1.msra.mxu0 0.0
    %3174 = vmatprep.subr.mxu0 0.0
    %3175 = vmatpush1.msra.mxu0 0.0
    %3176 = vmatprep.subr.mxu0 0.0
    %3177 = vmatpush1.msra.mxu0 0.0
    %3178 = vmatprep.subr.mxu0 0.0
    %3179 = vmatpush1.msra.mxu0 0.0
    %3180 = vmatprep.mubr.f32.mxu0 0.0
    %3181 = vmatmul.mubr.f32.gmra.mrb[0].mxu0 %v3114
    %v3182 = vpop.f32.mrb[0].mxu0
    %v3183 = vadd.f32 %v1741, %v3182
    %v3184 = vpop.f32.mrb[0].mxu0
    %3185 = vdwg.mxu0
    %v3186 = vtanh.pop %v3183
    %v3188 = vsel %vm329, %v3186, 0
    %3190 = vmatprep.subr.mxu0 0.0
    %3191 = vmatpush1.xpose.msra.mxu0 %v1475
    %3192 = vmatprep.subr.mxu0 0.0
    %3193 = vmatpush1.xpose.msra.mxu0 %v1478
    %3194 = vmatprep.subr.mxu0 0.0
    %3195 = vmatpush1.xpose.msra.mxu0 0.0
    %3196 = vmatprep.subr.mxu0 0.0
    %3197 = vmatpush1.xpose.msra.mxu0 0.0
    %3198 = vmatprep.subr.mxu0 0.0
    %3199 = vmatpush1.xpose.msra.mxu0 0.0
    %3200 = vmatprep.subr.mxu0 0.0
    %3201 = vmatpush1.xpose.msra.mxu0 0.0
    %3202 = vmatprep.subr.mxu0 0.0
    %3203 = vmatpush1.xpose.msra.mxu0 0.0
    %3204 = vmatprep.subr.mxu0 0.0
    %3205 = vmatpush1.xpose.msra.mxu0 0.0
    %3206 = vmatprep.subr.mxu0 0.0
    %3207 = vmatpush1.xpose.msra.mxu0 0.0
    %3208 = vmatprep.subr.mxu0 0.0
    %3209 = vmatpush1.xpose.msra.mxu0 0.0
    %3210 = vmatprep.subr.mxu0 0.0
    %3211 = vmatpush1.xpose.msra.mxu0 0.0
    %3212 = vmatprep.subr.mxu0 0.0
    %3213 = vmatpush1.xpose.msra.mxu0 0.0
    %3214 = vmatprep.subr.mxu0 0.0
    %3215 = vmatpush1.xpose.msra.mxu0 0.0
    %3216 = vmatprep.subr.mxu0 0.0
    %3217 = vmatpush1.xpose.msra.mxu0 0.0
    %3218 = vmatprep.subr.mxu0 0.0
    %3219 = vmatpush1.xpose.msra.mxu0 0.0
    %3220 = vmatprep.subr.mxu0 0.0
    %3221 = vmatpush1.xpose.msra.mxu0 0.0
    %3222 = vmatprep.subr.mxu0 0.0
    %3223 = vmatpush1.xpose.msra.mxu0 0.0
    %3224 = vmatprep.subr.mxu0 0.0
    %3225 = vmatpush1.xpose.msra.mxu0 0.0
    %3226 = vmatprep.subr.mxu0 0.0
    %3227 = vmatpush1.xpose.msra.mxu0 0.0
    %3228 = vmatprep.subr.mxu0 0.0
    %3229 = vmatpush1.xpose.msra.mxu0 0.0
    %3230 = vmatprep.subr.mxu0 0.0
    %3231 = vmatpush1.xpose.msra.mxu0 0.0
    %3232 = vmatprep.subr.mxu0 0.0
    %3233 = vmatpush1.xpose.msra.mxu0 0.0
    %3234 = vmatprep.subr.mxu0 0.0
    %3235 = vmatpush1.xpose.msra.mxu0 0.0
    %3236 = vmatprep.subr.mxu0 0.0
    %3237 = vmatpush1.xpose.msra.mxu0 0.0
    %3238 = vmatprep.subr.mxu0 0.0
    %3239 = vmatpush1.xpose.msra.mxu0 0.0
    %3240 = vmatprep.subr.mxu0 0.0
    %3241 = vmatpush1.xpose.msra.mxu0 0.0
    %3242 = vmatprep.subr.mxu0 0.0
    %3243 = vmatpush1.xpose.msra.mxu0 0.0
    %3244 = vmatprep.subr.mxu0 0.0
    %3245 = vmatpush1.xpose.msra.mxu0 0.0
    %3246 = vmatprep.subr.mxu0 0.0
    %3247 = vmatpush1.xpose.msra.mxu0 0.0
    %3248 = vmatprep.subr.mxu0 0.0
    %3249 = vmatpush1.xpose.msra.mxu0 0.0
    %3250 = vmatprep.subr.mxu0 0.0
    %3251 = vmatpush1.xpose.msra.mxu0 0.0
    %3252 = vmatprep.subr.mxu0 0.0
    %3253 = vmatpush1.xpose.msra.mxu0 0.0
    %3254 = vmatprep.mubr.f32.mxu0 0.0
    %3255 = vmatmul.mubr.f32.gmra.mrb[0].mxu0 %v3188
    %v3256 = vpop.f32.mrb[0].mxu0
    %v3257 = vadd.f32 0.0, %v3256
    %v3258 = vpop.f32.mrb[0].mxu0
    %3259 = vdwg.mxu0
    %v3260 = vsel %vm1550, %v3257, -1e+30
    %v3261 = vsel %vm1552, %v3260, -inf
    %3262 = vmax.xlane.f32.xlu0 %v3261
    %v3263 = vpop.xlane.xlu0 %3262
    %v3264 = vsub.f32 %v3260, %v3263
    %v3265 = vmul.f32 %v3264, 1.442695
    %v3266 = vpow.pop %v3265
    %v3267 = vsel %vm1552, %v3266, 0.0
    %3268 = vadd.xlane.f32.xlu0 %v3267
    %v3269 = vpop.xlane.xlu0 %3268
    %v3270 = vrcp.pop %v3269
    %v3271 = vmul.f32 %v3266, %v3270
    %v3273 = vsel %vm1564, %v3271, 0
    %3275 = vmatprep.subr.mxu0 0.0
    %3276 = vmatpush1.msra.mxu0 %v1272
    %3277 = vmatprep.subr.mxu0 0.0
    %3278 = vmatpush1.msra.mxu0 %v1273
    %3279 = vmatprep.subr.mxu0 0.0
    %3280 = vmatpush1.msra.mxu0 0.0
    %3281 = vmatprep.subr.mxu0 0.0
    %3282 = vmatpush1.msra.mxu0 0.0
    %3283 = vmatprep.subr.mxu0 0.0
    %3284 = vmatpush1.msra.mxu0 0.0
    %3285 = vmatprep.subr.mxu0 0.0
    %3286 = vmatpush1.msra.mxu0 0.0
    %3287 = vmatprep.subr.mxu0 0.0
    %3288 = vmatpush1.msra.mxu0 0.0
    %3289 = vmatprep.subr.mxu0 0.0
    %3290 = vmatpush1.msra.mxu0 0.0
    %3291 = vmatprep.subr.mxu0 0.0
    %3292 = vmatpush1.msra.mxu0 0.0
    %3293 = vmatprep.subr.mxu0 0.0
    %3294 = vmatpush1.msra.mxu0 0.0
    %3295 = vmatprep.subr.mxu0 0.0
    %3296 = vmatpush1.msra.mxu0 0.0
    %3297 = vmatprep.subr.mxu0 0.0
    %3298 = vmatpush1.msra.mxu0 0.0
    %3299 = vmatprep.subr.mxu0 0.0
    %3300 = vmatpush1.msra.mxu0 0.0
    %3301 = vmatprep.subr.mxu0 0.0
    %3302 = vmatpush1.msra.mxu0 0.0
    %3303 = vmatprep.subr.mxu0 0.0
    %3304 = vmatpush1.msra.mxu0 0.0
    %3305 = vmatprep.subr.mxu0 0.0
    %3306 = vmatpush1.msra.mxu0 0.0
    %3307 = vmatprep.subr.mxu0 0.0
    %3308 = vmatpush1.msra.mxu0 0.0
    %3309 = vmatprep.subr.mxu0 0.0
    %3310 = vmatpush1.msra.mxu0 0.0
    %3311 = vmatprep.subr.mxu0 0.0
    %3312 = vmatpush1.msra.mxu0 0.0
    %3313 = vmatprep.subr.mxu0 0.0
    %3314 = vmatpush1.msra.mxu0 0.0
    %3315 = vmatprep.subr.mxu0 0.0
    %3316 = vmatpush1.msra.mxu0 0.0
    %3317 = vmatprep.subr.mxu0 0.0
    %3318 = vmatpush1.msra.mxu0 0.0
    %3319 = vmatprep.subr.mxu0 0.0
    %3320 = vmatpush1.msra.mxu0 0.0
    %3321 = vmatprep.subr.mxu0 0.0
    %3322 = vmatpush1.msra.mxu0 0.0
    %3323 = vmatprep.subr.mxu0 0.0
    %3324 = vmatpush1.msra.mxu0 0.0
    %3325 = vmatprep.subr.mxu0 0.0
    %3326 = vmatpush1.msra.mxu0 0.0
    %3327 = vmatprep.subr.mxu0 0.0
    %3328 = vmatpush1.msra.mxu0 0.0
    %3329 = vmatprep.subr.mxu0 0.0
    %3330 = vmatpush1.msra.mxu0 0.0
    %3331 = vmatprep.subr.mxu0 0.0
    %3332 = vmatpush1.msra.mxu0 0.0
    %3333 = vmatprep.subr.mxu0 0.0
    %3334 = vmatpush1.msra.mxu0 0.0
    %3335 = vmatprep.subr.mxu0 0.0
    %3336 = vmatpush1.msra.mxu0 0.0
    %3337 = vmatprep.subr.mxu0 0.0
    %3338 = vmatpush1.msra.mxu0 0.0
    %3339 = vmatprep.mubr.f32.mxu0 0.0
    %3340 = vmatmul.mubr.f32.gmra.mrb[0].mxu0 %v3273
    %v3341 = vpop.f32.mrb[0].mxu0
    %v3342 = vadd.f32 0.0, %v3341
    %v3343 = vpop.f32.mrb[0].mxu0
    %3344 = vdwg.mxu0
    %3345 = vrot.lane.b32.xlu0 %v3110, 64
    %v3346 = vpop.permute.xlu0 %3345
    %v3348 = vsel %vm329, %v3342, %v3346
    %v3350 = vsel %vm247, %v3348, 0
    %3352 = vmatprep.subr.mxu0 0.0
    %3353 = vmatpush1.msra.mxu0 %v210
    %3354 = vmatprep.subr.mxu0 0.0
    %3355 = vmatpush1.msra.mxu0 %v211
    %3356 = vmatprep.subr.mxu0 0.0
    %3357 = vmatpush1.msra.mxu0 %v212
    %3358 = vmatprep.subr.mxu0 0.0
    %3359 = vmatpush1.msra.mxu0 %v213
    %3360 = vmatprep.subr.mxu0 0.0
    %3361 = vmatpush1.msra.mxu0 %v214
    %3362 = vmatprep.subr.mxu0 0.0
    %3363 = vmatpush1.msra.mxu0 %v215
    %3364 = vmatprep.subr.mxu0 0.0
    %3365 = vmatpush1.msra.mxu0 %v216
    %3366 = vmatprep.subr.mxu0 0.0
    %3367 = vmatpush1.msra.mxu0 %v217
    %3368 = vmatprep.subr.mxu0 0.0
    %3369 = vmatpush1.msra.mxu0 0.0
    %3370 = vmatprep.subr.mxu0 0.0
    %3371 = vmatpush1.msra.mxu0 0.0
    %3372 = vmatprep.subr.mxu0 0.0
    %3373 = vmatpush1.msra.mxu0 0.0
    %3374 = vmatprep.subr.mxu0 0.0
    %3375 = vmatpush1.msra.mxu0 0.0
    %3376 = vmatprep.subr.mxu0 0.0
    %3377 = vmatpush1.msra.mxu0 0.0
    %3378 = vmatprep.subr.mxu0 0.0
    %3379 = vmatpush1.msra.mxu0 0.0
    %3380 = vmatprep.subr.mxu0 0.0
    %3381 = vmatpush1.msra.mxu0 0.0
    %3382 = vmatprep.subr.mxu0 0.0
    %3383 = vmatpush1.msra.mxu0 0.0
    %3384 = vmatprep.subr.mxu0 0.0
    %3385 = vmatpush1.msra.mxu0 0.0
    %3386 = vmatprep.subr.mxu0 0.0
    %3387 = vmatpush1.msra.mxu0 0.0
    %3388 = vmatprep.subr.mxu0 0.0
    %3389 = vmatpush1.msra.mxu0 0.0
    %3390 = vmatprep.subr.mxu0 0.0
    %3391 = vmatpush1.msra.mxu0 0.0
    %3392 = vmatprep.subr.mxu0 0.0
    %3393 = vmatpush1.msra.mxu0 0.0
    %3394 = vmatprep.subr.mxu0 0.0
    %3395 = vmatpush1.msra.mxu0 0.0
    %3396 = vmatprep.subr.mxu0 0.0
    %3397 = vmatpush1.msra.mxu0 0.0
    %3398 = vmatprep.subr.mxu0 0.0
    %3399 = vmatpush1.msra.mxu0 0.0
    %3400 = vmatprep.subr.mxu0 0.0
    %3401 = vmatpush1.msra.mxu0 0.0
    %3402 = vmatprep.subr.mxu0 0.0
    %3403 = vmatpush1.msra.mxu0 0.0
    %3404 = vmatprep.subr.mxu0 0.0
    %3405 = vmatpush1.msra.mxu0 0.0
    %3406 = vmatprep.subr.mxu0 0.0
    %3407 = vmatpush1.msra.mxu0 0.0
    %3408 = vmatprep.subr.mxu0 0.0
    %3409 = vmatpush1.msra.mxu0 0.0
    %3410 = vmatprep.subr.mxu0 0.0
    %3411 = vmatpush1.msra.mxu0 0.0
    %3412 = vmatprep.subr.mxu0 0.0
    %3413 = vmatpush1.msra.mxu0 0.0
    %3414 = vmatprep.subr.mxu0 0.0
    %3415 = vmatpush1.msra.mxu0 0.0
    %3416 = vmatprep.mubr.f32.mxu0 0.0
    %3417 = vmatmul.mubr.f32.gmra.mrb[0].mxu0 %v3350
    %v3418 = vpop.f32.mrb[0].mxu0
    %v3419 = vadd.f32 0.0, %v3418
    %v3420 = vpop.f32.mrb[0].mxu0
    %3421 = vdwg.mxu0
    %v3423 = vrot.slane %v3419, 6
    %v3425 = vadd.f32 %v1463, %v3423
    %v3426 = vxor.u32 %v3425, 2147483648
    %v3427 = vmul.f32 %v3426, 1.442695
    %v3428 = vpow.pop %v3427
    %v3429 = vadd.f32 %v3428, 1.0
    %v3430 = vrcp.pop %v3429
    %v3431 = vmul.f32 1.0, %v3430
    %v3432 = vtanh.pop %v3425
    %v3434 = vrot.slane %v3104, 6
    %v3436 = vmul.f32 %v3431, %v3434
    %3438 = vrot.lane.b32.xlu0 %v3432, 64
    %v3439 = vpop.permute.xlu0 %3438
    %v3441 = vmul.f32 %v3431, %v3439
    %3443 = vrot.lane.b32.xlu0 %v3441, 32
    %v3444 = vpop.permute.xlu0 %3443
    %v3446 = vadd.f32 %v3436, %v3444
    %v3447 = vtanh.pop %v3446
    %3449 = vrot.lane.b32.xlu0 %v3447, 64
    %v3450 = vpop.permute.xlu0 %3449
    %v3452 = vmul.f32 %v3431, %v3450
    %v3454 = vrot.slane %v3452, 2
    %3455 = vrot.lane.b32.xlu0 %v3454, 32
    %v3456 = vpop.permute.xlu0 %3455
    %v3457 = vsel %vm329, %v3456, 0
    %3459 = vmatprep.subr.mxu0 0.0
    %3460 = vmatpush1.msra.mxu0 %v197
    %3461 = vmatprep.subr.mxu0 0.0
    %3462 = vmatpush1.msra.mxu0 %v198
    %3463 = vmatprep.subr.mxu0 0.0
    %3464 = vmatpush1.msra.mxu0 %v199
    %3465 = vmatprep.subr.mxu0 0.0
    %3466 = vmatpush1.msra.mxu0 %v200
    %3467 = vmatprep.subr.mxu0 0.0
    %3468 = vmatpush1.msra.mxu0 0.0
    %3469 = vmatprep.subr.mxu0 0.0
    %3470 = vmatpush1.msra.mxu0 0.0
    %3471 = vmatprep.subr.mxu0 0.0
    %3472 = vmatpush1.msra.mxu0 0.0
    %3473 = vmatprep.subr.mxu0 0.0
    %3474 = vmatpush1.msra.mxu0 0.0
    %3475 = vmatprep.subr.mxu0 0.0
    %3476 = vmatpush1.msra.mxu0 0.0
    %3477 = vmatprep.subr.mxu0 0.0
    %3478 = vmatpush1.msra.mxu0 0.0
    %3479 = vmatprep.subr.mxu0 0.0
    %3480 = vmatpush1.msra.mxu0 0.0
    %3481 = vmatprep.subr.mxu0 0.0
    %3482 = vmatpush1.msra.mxu0 0.0
    %3483 = vmatprep.subr.mxu0 0.0
    %3484 = vmatpush1.msra.mxu0 0.0
    %3485 = vmatprep.subr.mxu0 0.0
    %3486 = vmatpush1.msra.mxu0 0.0
    %3487 = vmatprep.subr.mxu0 0.0
    %3488 = vmatpush1.msra.mxu0 0.0
    %3489 = vmatprep.subr.mxu0 0.0
    %3490 = vmatpush1.msra.mxu0 0.0
    %3491 = vmatprep.subr.mxu0 0.0
    %3492 = vmatpush1.msra.mxu0 0.0
    %3493 = vmatprep.subr.mxu0 0.0
    %3494 = vmatpush1.msra.mxu0 0.0
    %3495 = vmatprep.subr.mxu0 0.0
    %3496 = vmatpush1.msra.mxu0 0.0
    %3497 = vmatprep.subr.mxu0 0.0
    %3498 = vmatpush1.msra.mxu0 0.0
    %3499 = vmatprep.subr.mxu0 0.0
    %3500 = vmatpush1.msra.mxu0 0.0
    %3501 = vmatprep.subr.mxu0 0.0
    %3502 = vmatpush1.msra.mxu0 0.0
    %3503 = vmatprep.subr.mxu0 0.0
    %3504 = vmatpush1.msra.mxu0 0.0
    %3505 = vmatprep.subr.mxu0 0.0
    %3506 = vmatpush1.msra.mxu0 0.0
    %3507 = vmatprep.subr.mxu0 0.0
    %3508 = vmatpush1.msra.mxu0 0.0
    %3509 = vmatprep.subr.mxu0 0.0
    %3510 = vmatpush1.msra.mxu0 0.0
    %3511 = vmatprep.subr.mxu0 0.0
    %3512 = vmatpush1.msra.mxu0 0.0
    %3513 = vmatprep.subr.mxu0 0.0
    %3514 = vmatpush1.msra.mxu0 0.0
    %3515 = vmatprep.subr.mxu0 0.0
    %3516 = vmatpush1.msra.mxu0 0.0
    %3517 = vmatprep.subr.mxu0 0.0
    %3518 = vmatpush1.msra.mxu0 0.0
    %3519 = vmatprep.subr.mxu0 0.0
    %3520 = vmatpush1.msra.mxu0 0.0
    %3521 = vmatprep.subr.mxu0 0.0
    %3522 = vmatpush1.msra.mxu0 0.0
    %3523 = vmatprep.mubr.f32.mxu0 0.0
    %3524 = vmatmul.mubr.f32.gmra.mrb[0].mxu0 %v3457
    %v3525 = vpop.f32.mrb[0].mxu0
    %v3526 = vadd.f32 %v1741, %v3525
    %v3527 = vpop.f32.mrb[0].mxu0
    %3528 = vdwg.mxu0
    %v3529 = vtanh.pop %v3526
    %v3531 = vsel %vm329, %v3529, 0
    %3533 = vmatprep.subr.mxu0 0.0
    %3534 = vmatpush1.xpose.msra.mxu0 %v1475
    %3535 = vmatprep.subr.mxu0 0.0
    %3536 = vmatpush1.xpose.msra.mxu0 %v1478
    %3537 = vmatprep.subr.mxu0 0.0
    %3538 = vmatpush1.xpose.msra.mxu0 0.0
    %3539 = vmatprep.subr.mxu0 0.0
    %3540 = vmatpush1.xpose.msra.mxu0 0.0
    %3541 = vmatprep.subr.mxu0 0.0
    %3542 = vmatpush1.xpose.msra.mxu0 0.0
    %3543 = vmatprep.subr.mxu0 0.0
    %3544 = vmatpush1.xpose.msra.mxu0 0.0
    %3545 = vmatprep.subr.mxu0 0.0
    %3546 = vmatpush1.xpose.msra.mxu0 0.0
    %3547 = vmatprep.subr.mxu0 0.0
    %3548 = vmatpush1.xpose.msra.mxu0 0.0
    %3549 = vmatprep.subr.mxu0 0.0
    %3550 = vmatpush1.xpose.msra.mxu0 0.0
    %3551 = vmatprep.subr.mxu0 0.0
    %3552 = vmatpush1.xpose.msra.mxu0 0.0
    %3553 = vmatprep.subr.mxu0 0.0
    %3554 = vmatpush1.xpose.msra.mxu0 0.0
    %3555 = vmatprep.subr.mxu0 0.0
    %3556 = vmatpush1.xpose.msra.mxu0 0.0
    %3557 = vmatprep.subr.mxu0 0.0
    %3558 = vmatpush1.xpose.msra.mxu0 0.0
    %3559 = vmatprep.subr.mxu0 0.0
    %3560 = vmatpush1.xpose.msra.mxu0 0.0
    %3561 = vmatprep.subr.mxu0 0.0
    %3562 = vmatpush1.xpose.msra.mxu0 0.0
    %3563 = vmatprep.subr.mxu0 0.0
    %3564 = vmatpush1.xpose.msra.mxu0 0.0
    %3565 = vmatprep.subr.mxu0 0.0
    %3566 = vmatpush1.xpose.msra.mxu0 0.0
    %3567 = vmatprep.subr.mxu0 0.0
    %3568 = vmatpush1.xpose.msra.mxu0 0.0
    %3569 = vmatprep.subr.mxu0 0.0
    %3570 = vmatpush1.xpose.msra.mxu0 0.0
    %3571 = vmatprep.subr.mxu0 0.0
    %3572 = vmatpush1.xpose.msra.mxu0 0.0
    %3573 = vmatprep.subr.mxu0 0.0
    %3574 = vmatpush1.xpose.msra.mxu0 0.0
    %3575 = vmatprep.subr.mxu0 0.0
    %3576 = vmatpush1.xpose.msra.mxu0 0.0
    %3577 = vmatprep.subr.mxu0 0.0
    %3578 = vmatpush1.xpose.msra.mxu0 0.0
    %3579 = vmatprep.subr.mxu0 0.0
    %3580 = vmatpush1.xpose.msra.mxu0 0.0
    %3581 = vmatprep.subr.mxu0 0.0
    %3582 = vmatpush1.xpose.msra.mxu0 0.0
    %3583 = vmatprep.subr.mxu0 0.0
    %3584 = vmatpush1.xpose.msra.mxu0 0.0
    %3585 = vmatprep.subr.mxu0 0.0
    %3586 = vmatpush1.xpose.msra.mxu0 0.0
    %3587 = vmatprep.subr.mxu0 0.0
    %3588 = vmatpush1.xpose.msra.mxu0 0.0
    %3589 = vmatprep.subr.mxu0 0.0
    %3590 = vmatpush1.xpose.msra.mxu0 0.0
    %3591 = vmatprep.subr.mxu0 0.0
    %3592 = vmatpush1.xpose.msra.mxu0 0.0
    %3593 = vmatprep.subr.mxu0 0.0
    %3594 = vmatpush1.xpose.msra.mxu0 0.0
    %3595 = vmatprep.subr.mxu0 0.0
    %3596 = vmatpush1.xpose.msra.mxu0 0.0
    %3597 = vmatprep.mubr.f32.mxu0 0.0
    %3598 = vmatmul.mubr.f32.gmra.mrb[0].mxu0 %v3531
    %v3599 = vpop.f32.mrb[0].mxu0
    %v3600 = vadd.f32 0.0, %v3599
    %v3601 = vpop.f32.mrb[0].mxu0
    %3602 = vdwg.mxu0
    %v3603 = vsel %vm1550, %v3600, -1e+30
    %v3604 = vsel %vm1552, %v3603, -inf
    %3605 = vmax.xlane.f32.xlu0 %v3604
    %v3606 = vpop.xlane.xlu0 %3605
    %v3607 = vsub.f32 %v3603, %v3606
    %v3608 = vmul.f32 %v3607, 1.442695
    %v3609 = vpow.pop %v3608
    %v3610 = vsel %vm1552, %v3609, 0.0
    %3611 = vadd.xlane.f32.xlu0 %v3610
    %v3612 = vpop.xlane.xlu0 %3611
    %v3613 = vrcp.pop %v3612
    %v3614 = vmul.f32 %v3609, %v3613
    %v3616 = vsel %vm1564, %v3614, 0
    %3618 = vmatprep.subr.mxu0 0.0
    %3619 = vmatpush1.msra.mxu0 %v1272
    %3620 = vmatprep.subr.mxu0 0.0
    %3621 = vmatpush1.msra.mxu0 %v1273
    %3622 = vmatprep.subr.mxu0 0.0
    %3623 = vmatpush1.msra.mxu0 0.0
    %3624 = vmatprep.subr.mxu0 0.0
    %3625 = vmatpush1.msra.mxu0 0.0
    %3626 = vmatprep.subr.mxu0 0.0
    %3627 = vmatpush1.msra.mxu0 0.0
    %3628 = vmatprep.subr.mxu0 0.0
    %3629 = vmatpush1.msra.mxu0 0.0
    %3630 = vmatprep.subr.mxu0 0.0
    %3631 = vmatpush1.msra.mxu0 0.0
    %3632 = vmatprep.subr.mxu0 0.0
    %3633 = vmatpush1.msra.mxu0 0.0
    %3634 = vmatprep.subr.mxu0 0.0
    %3635 = vmatpush1.msra.mxu0 0.0
    %3636 = vmatprep.subr.mxu0 0.0
    %3637 = vmatpush1.msra.mxu0 0.0
    %3638 = vmatprep.subr.mxu0 0.0
    %3639 = vmatpush1.msra.mxu0 0.0
    %3640 = vmatprep.subr.mxu0 0.0
    %3641 = vmatpush1.msra.mxu0 0.0
    %3642 = vmatprep.subr.mxu0 0.0
    %3643 = vmatpush1.msra.mxu0 0.0
    %3644 = vmatprep.subr.mxu0 0.0
    %3645 = vmatpush1.msra.mxu0 0.0
    %3646 = vmatprep.subr.mxu0 0.0
    %3647 = vmatpush1.msra.mxu0 0.0
    %3648 = vmatprep.subr.mxu0 0.0
    %3649 = vmatpush1.msra.mxu0 0.0
    %3650 = vmatprep.subr.mxu0 0.0
    %3651 = vmatpush1.msra.mxu0 0.0
    %3652 = vmatprep.subr.mxu0 0.0
    %3653 = vmatpush1.msra.mxu0 0.0
    %3654 = vmatprep.subr.mxu0 0.0
    %3655 = vmatpush1.msra.mxu0 0.0
    %3656 = vmatprep.subr.mxu0 0.0
    %3657 = vmatpush1.msra.mxu0 0.0
    %3658 = vmatprep.subr.mxu0 0.0
    %3659 = vmatpush1.msra.mxu0 0.0
    %3660 = vmatprep.subr.mxu0 0.0
    %3661 = vmatpush1.msra.mxu0 0.0
    %3662 = vmatprep.subr.mxu0 0.0
    %3663 = vmatpush1.msra.mxu0 0.0
    %3664 = vmatprep.subr.mxu0 0.0
    %3665 = vmatpush1.msra.mxu0 0.0
    %3666 = vmatprep.subr.mxu0 0.0
    %3667 = vmatpush1.msra.mxu0 0.0
    %3668 = vmatprep.subr.mxu0 0.0
    %3669 = vmatpush1.msra.mxu0 0.0
    %3670 = vmatprep.subr.mxu0 0.0
    %3671 = vmatpush1.msra.mxu0 0.0
    %3672 = vmatprep.subr.mxu0 0.0
    %3673 = vmatpush1.msra.mxu0 0.0
    %3674 = vmatprep.subr.mxu0 0.0
    %3675 = vmatpush1.msra.mxu0 0.0
    %3676 = vmatprep.subr.mxu0 0.0
    %3677 = vmatpush1.msra.mxu0 0.0
    %3678 = vmatprep.subr.mxu0 0.0
    %3679 = vmatpush1.msra.mxu0 0.0
    %3680 = vmatprep.subr.mxu0 0.0
    %3681 = vmatpush1.msra.mxu0 0.0
    %3682 = vmatprep.mubr.f32.mxu0 0.0
    %3683 = vmatmul.mubr.f32.gmra.mrb[0].mxu0 %v3616
    %v3684 = vpop.f32.mrb[0].mxu0
    %v3685 = vadd.f32 0.0, %v3684
    %v3686 = vpop.f32.mrb[0].mxu0
    %3687 = vdwg.mxu0
    %3688 = vrot.lane.b32.xlu0 %v3454, 64
    %v3689 = vpop.permute.xlu0 %3688
    %v3691 = vsel %vm329, %v3685, %v3689
    %v3693 = vsel %vm247, %v3691, 0
    %3695 = vmatprep.subr.mxu0 0.0
    %3696 = vmatpush1.msra.mxu0 %v210
    %3697 = vmatprep.subr.mxu0 0.0
    %3698 = vmatpush1.msra.mxu0 %v211
    %3699 = vmatprep.subr.mxu0 0.0
    %3700 = vmatpush1.msra.mxu0 %v212
    %3701 = vmatprep.subr.mxu0 0.0
    %3702 = vmatpush1.msra.mxu0 %v213
    %3703 = vmatprep.subr.mxu0 0.0
    %3704 = vmatpush1.msra.mxu0 %v214
    %3705 = vmatprep.subr.mxu0 0.0
    %3706 = vmatpush1.msra.mxu0 %v215
    %3707 = vmatprep.subr.mxu0 0.0
    %3708 = vmatpush1.msra.mxu0 %v216
    %3709 = vmatprep.subr.mxu0 0.0
    %3710 = vmatpush1.msra.mxu0 %v217
    %3711 = vmatprep.subr.mxu0 0.0
    %3712 = vmatpush1.msra.mxu0 0.0
    %3713 = vmatprep.subr.mxu0 0.0
    %3714 = vmatpush1.msra.mxu0 0.0
    %3715 = vmatprep.subr.mxu0 0.0
    %3716 = vmatpush1.msra.mxu0 0.0
    %3717 = vmatprep.subr.mxu0 0.0
    %3718 = vmatpush1.msra.mxu0 0.0
    %3719 = vmatprep.subr.mxu0 0.0
    %3720 = vmatpush1.msra.mxu0 0.0
    %3721 = vmatprep.subr.mxu0 0.0
    %3722 = vmatpush1.msra.mxu0 0.0
    %3723 = vmatprep.subr.mxu0 0.0
    %3724 = vmatpush1.msra.mxu0 0.0
    %3725 = vmatprep.subr.mxu0 0.0
    %3726 = vmatpush1.msra.mxu0 0.0
    %3727 = vmatprep.subr.mxu0 0.0
    %3728 = vmatpush1.msra.mxu0 0.0
    %3729 = vmatprep.subr.mxu0 0.0
    %3730 = vmatpush1.msra.mxu0 0.0
    %3731 = vmatprep.subr.mxu0 0.0
    %3732 = vmatpush1.msra.mxu0 0.0
    %3733 = vmatprep.subr.mxu0 0.0
    %3734 = vmatpush1.msra.mxu0 0.0
    %3735 = vmatprep.subr.mxu0 0.0
    %3736 = vmatpush1.msra.mxu0 0.0
    %3737 = vmatprep.subr.mxu0 0.0
    %3738 = vmatpush1.msra.mxu0 0.0
    %3739 = vmatprep.subr.mxu0 0.0
    %3740 = vmatpush1.msra.mxu0 0.0
    %3741 = vmatprep.subr.mxu0 0.0
    %3742 = vmatpush1.msra.mxu0 0.0
    %3743 = vmatprep.subr.mxu0 0.0
    %3744 = vmatpush1.msra.mxu0 0.0
    %3745 = vmatprep.subr.mxu0 0.0
    %3746 = vmatpush1.msra.mxu0 0.0
    %3747 = vmatprep.subr.mxu0 0.0
    %3748 = vmatpush1.msra.mxu0 0.0
    %3749 = vmatprep.subr.mxu0 0.0
    %3750 = vmatpush1.msra.mxu0 0.0
    %3751 = vmatprep.subr.mxu0 0.0
    %3752 = vmatpush1.msra.mxu0 0.0
    %3753 = vmatprep.subr.mxu0 0.0
    %3754 = vmatpush1.msra.mxu0 0.0
    %3755 = vmatprep.subr.mxu0 0.0
    %3756 = vmatpush1.msra.mxu0 0.0
    %3757 = vmatprep.subr.mxu0 0.0
    %3758 = vmatpush1.msra.mxu0 0.0
    %3759 = vmatprep.mubr.f32.mxu0 0.0
    %3760 = vmatmul.mubr.f32.gmra.mrb[0].mxu0 %v3693
    %v3761 = vpop.f32.mrb[0].mxu0
    %v3762 = vadd.f32 0.0, %v3761
    %v3763 = vpop.f32.mrb[0].mxu0
    %3764 = vdwg.mxu0
    %v3766 = vrot.slane %v3762, 4
    %v3768 = vadd.f32 %v1463, %v3766
    %v3769 = vxor.u32 %v3768, 2147483648
    %v3770 = vmul.f32 %v3769, 1.442695
    %v3771 = vpow.pop %v3770
    %v3772 = vadd.f32 %v3771, 1.0
    %v3773 = vrcp.pop %v3772
    %v3774 = vmul.f32 1.0, %v3773
    %v3775 = vtanh.pop %v3768
    %v3777 = vrot.slane %v3446, 6
    %v3779 = vmul.f32 %v3774, %v3777
    %3781 = vrot.lane.b32.xlu0 %v3775, 64
    %v3782 = vpop.permute.xlu0 %3781
    %v3784 = vmul.f32 %v3774, %v3782
    %3786 = vrot.lane.b32.xlu0 %v3784, 32
    %v3787 = vpop.permute.xlu0 %3786
    %v3789 = vadd.f32 %v3779, %v3787
    %v3790 = vtanh.pop %v3789
    %3792 = vrot.lane.b32.xlu0 %v3790, 64
    %v3793 = vpop.permute.xlu0 %3792
    %v3795 = vmul.f32 %v3774, %v3793
    %v3796 = vsel %vm1172, %v1736, %v2084
    %v3797 = vsel %vm1174, %v3796, %v2427
    %v3798 = vsel %vm1176, %v3797, %v2770
    %v3799 = vsel %vm1172, %v3110, %v3452
    %v3800 = vsel %vm1174, %v3799, %v3795
    %v3802 = vlaneseq
    %v3803 = vshrl.u32 %v3802, 7
    %v3804 = vsub.s32 0, %v3803
    %v3805 = vrot.slane %v223, %v3804
    %3809 = vrot.lane.b32.xlu0 %v3798, 32
    %v3810 = vpop.permute.xlu0 %3809
    %3811 = vrot.lane.b32.xlu0 %v3800, 32
    %v3812 = vpop.permute.xlu0 %3811
    %v3813 = vsel %vm329, %v3810, 0
    %v3815 = vsel %vm329, %v3812, 0
    %3817 = vmatprep.subr.mxu0 0.0
    %3818 = vmatpush1.msra.mxu0 %v219
    %3819 = vmatprep.subr.mxu0 0.0
    %3820 = vmatpush1.msra.mxu0 %v220
    %3821 = vmatprep.subr.mxu0 0.0
    %3822 = vmatpush1.msra.mxu0 %v221
    %3823 = vmatprep.subr.mxu0 0.0
    %3824 = vmatpush1.msra.mxu0 %v222
    %3825 = vmatprep.subr.mxu0 0.0
    %3826 = vmatpush1.msra.mxu0 0.0
    %3827 = vmatprep.subr.mxu0 0.0
    %3828 = vmatpush1.msra.mxu0 0.0
    %3829 = vmatprep.subr.mxu0 0.0
    %3830 = vmatpush1.msra.mxu0 0.0
    %3831 = vmatprep.subr.mxu0 0.0
    %3832 = vmatpush1.msra.mxu0 0.0
    %3833 = vmatprep.subr.mxu0 0.0
    %3834 = vmatpush1.msra.mxu0 0.0
    %3835 = vmatprep.subr.mxu0 0.0
    %3836 = vmatpush1.msra.mxu0 0.0
    %3837 = vmatprep.subr.mxu0 0.0
    %3838 = vmatpush1.msra.mxu0 0.0
    %3839 = vmatprep.subr.mxu0 0.0
    %3840 = vmatpush1.msra.mxu0 0.0
    %3841 = vmatprep.subr.mxu0 0.0
    %3842 = vmatpush1.msra.mxu0 0.0
    %3843 = vmatprep.subr.mxu0 0.0
    %3844 = vmatpush1.msra.mxu0 0.0
    %3845 = vmatprep.subr.mxu0 0.0
    %3846 = vmatpush1.msra.mxu0 0.0
    %3847 = vmatprep.subr.mxu0 0.0
    %3848 = vmatpush1.msra.mxu0 0.0
    %3849 = vmatprep.subr.mxu0 0.0
    %3850 = vmatpush1.msra.mxu0 0.0
    %3851 = vmatprep.subr.mxu0 0.0
    %3852 = vmatpush1.msra.mxu0 0.0
    %3853 = vmatprep.subr.mxu0 0.0
    %3854 = vmatpush1.msra.mxu0 0.0
    %3855 = vmatprep.subr.mxu0 0.0
    %3856 = vmatpush1.msra.mxu0 0.0
    %3857 = vmatprep.subr.mxu0 0.0
    %3858 = vmatpush1.msra.mxu0 0.0
    %3859 = vmatprep.subr.mxu0 0.0
    %3860 = vmatpush1.msra.mxu0 0.0
    %3861 = vmatprep.subr.mxu0 0.0
    %3862 = vmatpush1.msra.mxu0 0.0
    %3863 = vmatprep.subr.mxu0 0.0
    %3864 = vmatpush1.msra.mxu0 0.0
    %3865 = vmatprep.subr.mxu0 0.0
    %3866 = vmatpush1.msra.mxu0 0.0
    %3867 = vmatprep.subr.mxu0 0.0
    %3868 = vmatpush1.msra.mxu0 0.0
    %3869 = vmatprep.subr.mxu0 0.0
    %3870 = vmatpush1.msra.mxu0 0.0
    %3871 = vmatprep.subr.mxu0 0.0
    %3872 = vmatpush1.msra.mxu0 0.0
    %3873 = vmatprep.subr.mxu0 0.0
    %3874 = vmatpush1.msra.mxu0 0.0
    %3875 = vmatprep.subr.mxu0 0.0
    %3876 = vmatpush1.msra.mxu0 0.0
    %3877 = vmatprep.subr.mxu0 0.0
    %3878 = vmatpush1.msra.mxu0 0.0
    %3879 = vmatprep.subr.mxu0 0.0
    %3880 = vmatpush1.msra.mxu0 0.0
    %3881 = vmatprep.mubr.f32.mxu0 0.0
    %3882 = vmatmul.mubr.f32.gmra.mrb[0].mxu0 %v3813
    %v3883 = vpop.f32.mrb[0].mxu0
    %v3884 = vadd.f32 %v3805, %v3883
    %v3885 = vpop.f32.mrb[0].mxu0
    %3886 = vmatprep.mubr.f32.mxu0 0.0
    %3887 = vmatmul.mubr.f32.gmra.mrb[0].mxu0 %v3815
    %v3888 = vpop.f32.mrb[0].mxu0
    %v3889 = vadd.f32 %v3805, %v3888
    %v3890 = vpop.f32.mrb[0].mxu0
    %3891 = vdwg.mxu0
    %v3892 = vld [vmem:[%s2] sm:$0xff]
    %v3893 = vld [vmem:[%s2 + $0x8] sm:$0x3f]
    %vm3894 = vcmp.ne.s32.totalorder %v3892, 4294967295
    %vm3895 = vcmp.ne.s32.totalorder %v3893, 4294967295
    %v3896 = vsel %vm3894, %v3892, 0
    %v3897 = vsel %vm3895, %v3893, 0
    %3898 = vset.pattern.permute.xlu0 0
    %3899 = vperm.xlu0 %3898, %v3896
    %v3900 = vpop.permute.xlu0 %3899
    %3901 = vset.pattern.permute.xlu0 0
    %3902 = vperm.xlu0 %3901, %v3897
    %v3903 = vpop.permute.xlu0 %3902
    %vm3904 = vcmp.eq.s32.totalorder %v228, %v3900
    %vm3905 = vcmp.eq.s32.totalorder %v228, %v3903
    %v3906 = vsel %vm3904, 1, 0
    %v3907 = vsel %vm3905, 1, 0
    %v3908 = vcvt.s32.f32 %v3906
    %v3909 = vcvt.s32.f32 %v3907
    %v3910 = vmul.f32 %v3884, %v3908
    %v3911 = vmul.f32 %v3889, %v3909
    %vm3912 = vcmask 392192
    %v3913 = vsel %vm3912, %v3910, 0.0
    %3914 = vadd.xlane.f32.xlu0 %v3913
    %v3915 = vpop.xlane.xlu0 %3914
    %vm3916 = vcmask 390144
    %v3917 = vsel %vm3916, %v3911, 0.0
    %3918 = vadd.xlane.f32.xlu0 %v3917
    %v3919 = vpop.xlane.xlu0 %3918
    %v3920 = vsel %vm3912, %v3884, -inf
    %3921 = vmax.xlane.f32.xlu0 %v3920
    %v3922 = vpop.xlane.xlu0 %3921
    %v3923 = vsel %vm3916, %v3889, -inf
    %3924 = vmax.xlane.f32.xlu0 %v3923
    %v3925 = vpop.xlane.xlu0 %3924
    %v3926 = vsub.f32 %v3884, %v3922
    %v3927 = vsub.f32 %v3889, %v3925
    %v3928 = vmul.f32 %v3926, 1.442695
    %v3929 = vpow.pop %v3928
    %v3930 = vmul.f32 %v3927, 1.442695
    %v3931 = vpow.pop %v3930
    %v3932 = vsel %vm3912, %v3929, 0.0
    %3933 = vadd.xlane.f32.xlu0 %v3932
    %v3934 = vpop.xlane.xlu0 %3933
    %v3935 = vsel %vm3916, %v3931, 0.0
    %3936 = vadd.xlane.f32.xlu0 %v3935
    %v3937 = vpop.xlane.xlu0 %3936
    %v3938 = vlog2.pop %v3934
    %v3939 = vmul.f32 %v3938, 0.6931472
    %v3940 = vlog2.pop %v3937
    %v3941 = vmul.f32 %v3940, 0.6931472
    %v3942 = vadd.f32 %v3922, %v3939
    %v3943 = vadd.f32 %v3925, %v3941
    %v3944 = vsel %vm3894, 1, 0
    %v3945 = vsel %vm3895, 1, 0
    %v3946 = vcvt.s32.f32 %v3944
    %v3947 = vcvt.s32.f32 %v3945
    %v3948 = vsub.f32 %v3942, %v3915
    %v3949 = vsub.f32 %v3943, %v3919
    %v3950 = vmul.f32 %v3948, %v3946
    %v3951 = vmul.f32 %v3949, %v3947
    %vm3952 = vcmask 7168
    %v3953 = vsel %vm3952, %v3950, 0.0
    %vm3954 = vcmask 5120
    %v3955 = vsel %vm3954, %v3951, 0.0
    %v3956 = vadd.f32 %v3953, %v3955
    %3957 = vadd.xlane.f32.xlu0 %v3956
    %v3958 = vpop.xlane.xlu0 %3957
    %v3959 = vrot.slane %v3958, 4
    %v3960 = vadd.f32 %v3958, %v3959
    %v3961 = vrot.slane %v3960, 2
    %v3962 = vadd.f32 %v3960, %v3961
    %v3963 = vrot.slane %v3962, 1
    %v3964 = vadd.f32 %v3962, %v3963
    %s3965 = vtos %v3964
    %v3966 = vstv %s3965
    %v3967 = vsel %vm3952, %v3946, 0.0
    %v3968 = vsel %vm3954, %v3947, 0.0
    %v3969 = vadd.f32 %v3967, %v3968
    %3970 = vadd.xlane.f32.xlu0 %v3969
    %v3971 = vpop.xlane.xlu0 %3970
    %v3972 = vrot.slane %v3971, 4
    %v3973 = vadd.f32 %v3971, %v3972
    %v3974 = vrot.slane %v3973, 2
    %v3975 = vadd.f32 %v3973, %v3974
    %v3976 = vrot.slane %v3975, 1
    %v3977 = vadd.f32 %v3975, %v3976
    %s3978 = vtos %v3977
    %v3979 = vstv %s3978
    %v3980 = vrcp.pop %v3979
    %v3981 = vmul.f32 %v3966, %v3980
    %v3982 = vsub.f32 %v3979, 2.0
    %v3983 = vrcp.pop 2.0
    %v3984 = vmul.f32 %v3982, %v3983
    %v3985 = vmul.f32 %v3981, %v3984
    %vm3986 = vcmask 0
    %3987 = vst.msk [vmem:[#allocation17] sm:$0x1] %vm3986, %v3985
    // Predicated region
    $region110: #{e2e_forward.1} parent=1 // pred_check
      _
    $region111: #{e2e_forward.1} parent=1 // pred_check_branch
      %3989 = sbr.rel (0) target = $region113
    $region112: #{e2e_forward.1} parent=1 // pred_region
      %s3991 = ssub.s32 16, 16
      %3992 = vsyncadd [#allocation4], %s3991
      %s3994 = sshll.u32 [#allocation17], 4
      %s3995 = int_to_ptr.vmem [resolvable:$true] %s3994
      %3997 = dma.vmem_to_hbm [thread:$0]  %s3995, 16, %s18, [#allocation4]
    $region113: #{e2e_forward.1} parent=1 // pred_fallthru
      _
    // Predicated region
    $region114: #{e2e_forward.1} parent=1 // pred_check
      _
    $region115: #{e2e_forward.1} parent=1 // pred_check_branch
      %3999 = sbr.rel (0) target = $region117
    $region116: #{e2e_forward.1} parent=1 // pred_region
      %4000 = dma.done [#allocation4], 16
    $region117: #{e2e_forward.1} parent=1 // pred_fallthru
      _
    %4001 = vsyncpa [#allocation3], 1
    %4002 = vsyncpa [#allocation6], 1
    %4003 = vsyncpa [#allocation9], 1
    %4004 = vsyncpa [#allocation12], 1
    %4005 = vsyncpa [#allocation15], 1
    %4006 = vsyncpa [#allocation4], 1

</llo_original>
